<compile_context>
chip_gen: v7x
topology: tpu7x:2x2x1
jax: 0.10.0
libtpu: 0.0.40
codegen_flags: <defaults>
</compile_context>

<pallas_src>
import jax
import jax.numpy as jnp
from jax.experimental import pallas as pl
from jax.experimental.pallas import tpu as pltpu

# ---------------- problem sizes (consistent with in_features=d) ---------------
D = 8            # in_features (number of observed variables)
K = 4            # hidden units per feature in the masked MLP
H = D * K        # hidden width
TAU = 1.0        # Gumbel-Sinkhorn temperature
N_SINKHORN = 10  # Sinkhorn normalization iterations
NEG_SLOPE = 0.01 # torch.nn.LeakyReLU default


def _ocd_kernel(logits_ref, x_ref, w1_ref, b1_ref, ws_ref, bs_ref,
                wt_ref, bt_ref, o_ref):
    """One batch-tile of the OCD forward, batch on the lane axis.

    logits_ref : (D, D, TB)   gamma + gumbel noise, [i, j, b]
    x_ref      : (D, TB)      inputs, [j, b]
    w1_ref     : (K, D, D, 1) input->hidden weights, [k, i, j, 1] = W1[k*D+i, j]
    b1_ref     : (K, D, 1)    [k, i, 1] = b1[k*D+i]
    ws_ref     : (K, D, D, 1) hidden->scale weights, [k, i, j, 1] = Ws[i, k*D+j]
    bs_ref     : (D, 1)
    wt_ref     : (K, D, D, 1) hidden->shift weights
    bt_ref     : (D, 1)
    o_ref      : (1, TB)      log_prob per sample (lane-dense)
    """
    f32 = jnp.float32

    # ---- 1. Sinkhorn -> soft permutation P[i, j, b] --------------------------
    # One stabilizing max-subtraction + exp, then linear-space row/col
    # normalizations (mathematically identical to the log-space iteration).
    la = logits_ref[...].astype(f32) * (1.0 / TAU)            # (D, D, TB)
    m = jnp.max(la, axis=0, keepdims=True)                    # (1, D, TB)
    m = jnp.max(m, axis=1, keepdims=True)                     # (1, 1, TB)
    P = jnp.exp(la - m)
    for _ in range(N_SINKHORN):
        row_sum = jnp.sum(P, axis=1, keepdims=True)           # (D, 1, TB)
        P = P * pl.reciprocal(row_sum, approx=True)
        col_sum = jnp.sum(P, axis=0, keepdims=True)           # (1, D, TB)
        P = P * pl.reciprocal(col_sum, approx=True)

    # ---- 2. Soft dependency mask A = P^T L P ---------------------------------
    # A[i, l, b] = sum_j P[j, i, b] * M[j, l, b],  M[j] = sum_{k<j} P[k]
    # (exclusive cumsum over axis 0 + 7 unrolled outer-product FMAs; the j=0
    #  term vanishes because M[0] = 0).
    m_acc = P[0]                                              # M[1]   : (D, TB)
    A = P[1][:, None, :] * m_acc[None, :, :]                  # (D, D, TB)
    for j in range(2, D):
        m_acc = m_acc + P[j - 1]                              # M[j]
        A = A + P[j][:, None, :] * m_acc[None, :, :]

    # ---- 3. Per-sample masked MLP (masks applied implicitly via A) -----------
    x = x_ref[...].astype(f32)                                # (D, TB), [j, b]
    u = A * x[None, :, :]                                     # (D, D, TB) = A[i,j,b]*x[j,b]

    w1 = w1_ref[...].astype(f32)                              # (K, D, D, 1)
    b1 = b1_ref[...].astype(f32)                              # (K, D, 1)
    # hidden[k, i, b] = leaky_relu( sum_j W1[k*D+i, j] * A[i,j,b] * x[j,b] + b1 )
    hidden = jnp.sum(w1 * u[None, :, :, :], axis=2) + b1      # (K, D, TB)
    hidden = jnp.where(hidden > 0, hidden, NEG_SLOPE * hidden)

    ws = ws_ref[...].astype(f32)                              # (K, D, D, 1)
    wt = wt_ref[...].astype(f32)
    bs = bs_ref[...].astype(f32)                              # (D, 1)
    bt = bt_ref[...].astype(f32)

    # v[i, j, b] = sum_k W[i, k*D+j] * hidden[k, j, b]
    hkb = hidden[:, None, :, :]                               # (K, 1, D, TB)
    v_s = jnp.sum(ws * hkb, axis=0)                           # (D, D, TB)
    v_t = jnp.sum(wt * hkb, axis=0)                           # (D, D, TB)
    # s[i, b] = sum_j A[i,j,b] * v_s[i,j,b] + bs[i]
    s = jnp.sum(A * v_s, axis=1) + bs                         # (D, TB)
    t = jnp.sum(A * v_t, axis=1) + bt                         # (D, TB)

    # ---- 4. Affine flow + standard-normal base log-prob ----------------------
    z = x * jnp.exp(s) + t                                    # (D, TB)
    log2pi = jnp.log(2.0 * jnp.pi)
    base_lp = jnp.sum(-0.5 * (z * z + log2pi), axis=0, keepdims=True)  # (1, TB)
    log_det = jnp.sum(s, axis=0, keepdims=True)                        # (1, TB)
    o_ref[...] = base_lp + log_det


def ocd_forward(x, params, key, *, tile_b=256):
    """OCD.forward(inputs) with soft=True, permute=True, return_log_prob=True,
    elementwise_perm=True (one permutation sample per input row)."""
    gamma, w1, b1, ws, bs, wt, bt = (params[k] for k in
                                     ("gamma", "w1", "b1", "ws", "bs", "wt", "bt"))
    bsz, d = x.shape
    assert d == D and tile_b % 128 == 0
    padded = ((bsz + tile_b - 1) // tile_b) * tile_b

    # Gumbel noise (LearnablePermutation, return_noise=True path) -- sampled
    # directly in the batch-on-lanes layout so no transpose of (B,D,D) is needed.
    u = jax.random.uniform(key, (D, D, padded), dtype=jnp.float32,
                           minval=1e-6, maxval=1.0 - 1e-6)
    gumbel = -jnp.log(-jnp.log(u))
    logits_t = gamma[:, :, None] + gumbel                     # (D, D, padded)

    x_pad = x if padded == bsz else jnp.pad(x, ((0, padded - bsz), (0, 0)))
    x_t = x_pad.T.astype(jnp.float32)                         # (D, padded)

    # Tiny weight relayout (XLA side): put the contraction dims on sublanes and
    # leave a size-1 lane dim so the kernel only needs a lane broadcast.
    w1_b = w1.reshape(K, D, D)[..., None]                            # [k,i,j,1]
    b1_b = b1.reshape(K, D)[..., None]                               # [k,i,1]
    ws_b = jnp.transpose(ws.reshape(D, K, D), (1, 0, 2))[..., None]  # [k,i,j,1]
    bs_b = bs.reshape(D)[:, None]                                    # [i,1]
    wt_b = jnp.transpose(wt.reshape(D, K, D), (1, 0, 2))[..., None]
    bt_b = bt.reshape(D)[:, None]

    grid = (padded // tile_b,)
    out = pl.pallas_call(
        _ocd_kernel,
        out_shape=jax.ShapeDtypeStruct((1, padded), jnp.float32),
        grid=grid,
        in_specs=[
            pl.BlockSpec((D, D, tile_b), lambda b: (0, 0, b)),     # logits
            pl.BlockSpec((D, tile_b),    lambda b: (0, b)),        # x
            pl.BlockSpec((K, D, D, 1),   lambda b: (0, 0, 0, 0)),  # w1
            pl.BlockSpec((K, D, 1),      lambda b: (0, 0, 0)),     # b1
            pl.BlockSpec((K, D, D, 1),   lambda b: (0, 0, 0, 0)),  # ws
            pl.BlockSpec((D, 1),         lambda b: (0, 0)),        # bs
            pl.BlockSpec((K, D, D, 1),   lambda b: (0, 0, 0, 0)),  # wt
            pl.BlockSpec((D, 1),         lambda b: (0, 0)),        # bt
        ],
        out_specs=pl.BlockSpec((1, tile_b), lambda b: (0, b)),     # lane-dense
        compiler_params=pltpu.CompilerParams(
            dimension_semantics=("parallel",)),
    )(logits_t, x_t, w1_b, b1_b, ws_b, bs_b, wt_b, bt_b)

    return {"log_prob": out[0, :bsz]}


def init_params(key):
    ks = jax.random.split(key, 7)
    scale1 = 1.0 / jnp.sqrt(D)
    scale2 = 1.0 / jnp.sqrt(H)
    return {
        "gamma": 0.1 * jax.random.normal(ks[0], (D, D), jnp.float32),
        "w1":    scale1 * jax.random.normal(ks[1], (H, D), jnp.float32),
        "b1":    jnp.zeros((1, H), jnp.float32),
        "ws":    scale2 * jax.random.normal(ks[2], (D, H), jnp.float32),
        "bs":    jnp.zeros((1, D), jnp.float32),
        "wt":    scale2 * jax.random.normal(ks[3], (D, H), jnp.float32),
        "bt":    jnp.zeros((1, D), jnp.float32),
    }


if __name__ == "__main__":
    root = jax.random.PRNGKey(0)
    k_param, k_x, k_noise = jax.random.split(root, 3)

    params = init_params(k_param)
    BATCH = 512                      # 2 grid steps at tile_b=256 (both v7x TCs busy)
    x = jax.random.normal(k_x, (BATCH, D), jnp.float32)

    results = ocd_forward(x, params, k_noise, tile_b=256)
    log_prob = jax.block_until_ready(results["log_prob"])
    assert log_prob.shape == (BATCH,)
    assert bool(jnp.all(jnp.isfinite(log_prob)))
    print("KERNEL_OK")
</pallas_src>

<mosaic_0001>
module attributes {stable_mosaic.version = 11 : i64} {
  func.func @_ocd_kernel(%arg0: i32, %arg1: memref<8x8x256xf32, #tpu.memory_space<vmem>>, %arg2: memref<8x256xf32, #tpu.memory_space<vmem>>, %arg3: memref<4x8x8x1xf32, #tpu.memory_space<vmem>>, %arg4: memref<4x8x1xf32, #tpu.memory_space<vmem>>, %arg5: memref<4x8x8x1xf32, #tpu.memory_space<vmem>>, %arg6: memref<8x1xf32, #tpu.memory_space<vmem>>, %arg7: memref<4x8x8x1xf32, #tpu.memory_space<vmem>>, %arg8: memref<8x1xf32, #tpu.memory_space<vmem>>, %arg9: memref<1x256xf32, #tpu.memory_space<vmem>>) attributes {dimension_semantics = [#tpu.dimension_semantics<parallel>], iteration_bounds = array<i64: 2>, scalar_prefetch = 0 : i64, scratch_operands = 0 : i64, tpu.core_type = #tpu.core_type<tc>, window_params = [{transform_indices = @transform_0, window_bounds = array<i64: 8, 8, 256>}, {transform_indices = @transform_1, window_bounds = array<i64: 8, 256>}, {pipeline_mode = #tpu.pipeline_mode<synchronous>, transform_indices = @transform_2, window_bounds = array<i64: 4, 8, 8, 1>}, {pipeline_mode = #tpu.pipeline_mode<synchronous>, transform_indices = @transform_3, window_bounds = array<i64: 4, 8, 1>}, {pipeline_mode = #tpu.pipeline_mode<synchronous>, transform_indices = @transform_4, window_bounds = array<i64: 4, 8, 8, 1>}, {pipeline_mode = #tpu.pipeline_mode<synchronous>, transform_indices = @transform_5, window_bounds = array<i64: 8, 1>}, {pipeline_mode = #tpu.pipeline_mode<synchronous>, transform_indices = @transform_6, window_bounds = array<i64: 4, 8, 8, 1>}, {pipeline_mode = #tpu.pipeline_mode<synchronous>, transform_indices = @transform_7, window_bounds = array<i64: 8, 1>}, {transform_indices = @transform_8, window_bounds = array<i64: 1, 256>}]} {
    %c0 = arith.constant 0 : index
    %c0_0 = arith.constant 0 : index
    %c0_1 = arith.constant 0 : index
    %0 = vector.load %arg1[%c0, %c0_0, %c0_1] : memref<8x8x256xf32, #tpu.memory_space<vmem>>, vector<8x8x256xf32>
    %cst = arith.constant 1.000000e+00 : f32
    %1 = vector.broadcast %cst : f32 to vector<8x8x256xf32>
    %2 = arith.mulf %0, %1 : vector<8x8x256xf32>
    %cst_2 = arith.constant dense<0xFF800000> : vector<8x256xf32>
    %3 = vector.multi_reduction <maximumf>, %2, %cst_2 [0] : vector<8x8x256xf32> to vector<8x256xf32>
    %4 = vector.shape_cast %3 : vector<8x256xf32> to vector<1x8x256xf32>
    %cst_3 = arith.constant dense<0xFF800000> : vector<1x256xf32>
    %5 = vector.multi_reduction <maximumf>, %4, %cst_3 [1] : vector<1x8x256xf32> to vector<1x256xf32>
    %6 = vector.shape_cast %5 : vector<1x256xf32> to vector<1x1x256xf32>
    %7 = vector.broadcast %6 : vector<1x1x256xf32> to vector<8x8x256xf32>
    %8 = arith.subf %2, %7 : vector<8x8x256xf32>
    %9 = math.exp %8 : vector<8x8x256xf32>
    %cst_4 = arith.constant dense<0.000000e+00> : vector<8x256xf32>
    %10 = vector.multi_reduction <add>, %9, %cst_4 [1] : vector<8x8x256xf32> to vector<8x256xf32>
    %11 = vector.shape_cast %10 : vector<8x256xf32> to vector<8x1x256xf32>
    %12 = tpu.reciprocal %11 {approx = true} : vector<8x1x256xf32> -> vector<8x1x256xf32>
    %13 = vector.broadcast %12 : vector<8x1x256xf32> to vector<8x8x256xf32>
    %14 = arith.mulf %9, %13 : vector<8x8x256xf32>
    %cst_5 = arith.constant dense<0.000000e+00> : vector<8x256xf32>
    %15 = vector.multi_reduction <add>, %14, %cst_5 [0] : vector<8x8x256xf32> to vector<8x256xf32>
    %16 = vector.shape_cast %15 : vector<8x256xf32> to vector<1x8x256xf32>
    %17 = tpu.reciprocal %16 {approx = true} : vector<1x8x256xf32> -> vector<1x8x256xf32>
    %18 = vector.broadcast %17 : vector<1x8x256xf32> to vector<8x8x256xf32>
    %19 = arith.mulf %14, %18 : vector<8x8x256xf32>
    %cst_6 = arith.constant dense<0.000000e+00> : vector<8x256xf32>
    %20 = vector.multi_reduction <add>, %19, %cst_6 [1] : vector<8x8x256xf32> to vector<8x256xf32>
    %21 = vector.shape_cast %20 : vector<8x256xf32> to vector<8x1x256xf32>
    %22 = tpu.reciprocal %21 {approx = true} : vector<8x1x256xf32> -> vector<8x1x256xf32>
    %23 = vector.broadcast %22 : vector<8x1x256xf32> to vector<8x8x256xf32>
    %24 = arith.mulf %19, %23 : vector<8x8x256xf32>
    %cst_7 = arith.constant dense<0.000000e+00> : vector<8x256xf32>
    %25 = vector.multi_reduction <add>, %24, %cst_7 [0] : vector<8x8x256xf32> to vector<8x256xf32>
    %26 = vector.shape_cast %25 : vector<8x256xf32> to vector<1x8x256xf32>
    %27 = tpu.reciprocal %26 {approx = true} : vector<1x8x256xf32> -> vector<1x8x256xf32>
    %28 = vector.broadcast %27 : vector<1x8x256xf32> to vector<8x8x256xf32>
    %29 = arith.mulf %24, %28 : vector<8x8x256xf32>
    %cst_8 = arith.constant dense<0.000000e+00> : vector<8x256xf32>
    %30 = vector.multi_reduction <add>, %29, %cst_8 [1] : vector<8x8x256xf32> to vector<8x256xf32>
    %31 = vector.shape_cast %30 : vector<8x256xf32> to vector<8x1x256xf32>
    %32 = tpu.reciprocal %31 {approx = true} : vector<8x1x256xf32> -> vector<8x1x256xf32>
    %33 = vector.broadcast %32 : vector<8x1x256xf32> to vector<8x8x256xf32>
    %34 = arith.mulf %29, %33 : vector<8x8x256xf32>
    %cst_9 = arith.constant dense<0.000000e+00> : vector<8x256xf32>
    %35 = vector.multi_reduction <add>, %34, %cst_9 [0] : vector<8x8x256xf32> to vector<8x256xf32>
    %36 = vector.shape_cast %35 : vector<8x256xf32> to vector<1x8x256xf32>
    %37 = tpu.reciprocal %36 {approx = true} : vector<1x8x256xf32> -> vector<1x8x256xf32>
    %38 = vector.broadcast %37 : vector<1x8x256xf32> to vector<8x8x256xf32>
    %39 = arith.mulf %34, %38 : vector<8x8x256xf32>
    %cst_10 = arith.constant dense<0.000000e+00> : vector<8x256xf32>
    %40 = vector.multi_reduction <add>, %39, %cst_10 [1] : vector<8x8x256xf32> to vector<8x256xf32>
    %41 = vector.shape_cast %40 : vector<8x256xf32> to vector<8x1x256xf32>
    %42 = tpu.reciprocal %41 {approx = true} : vector<8x1x256xf32> -> vector<8x1x256xf32>
    %43 = vector.broadcast %42 : vector<8x1x256xf32> to vector<8x8x256xf32>
    %44 = arith.mulf %39, %43 : vector<8x8x256xf32>
    %cst_11 = arith.constant dense<0.000000e+00> : vector<8x256xf32>
    %45 = vector.multi_reduction <add>, %44, %cst_11 [0] : vector<8x8x256xf32> to vector<8x256xf32>
    %46 = vector.shape_cast %45 : vector<8x256xf32> to vector<1x8x256xf32>
    %47 = tpu.reciprocal %46 {approx = true} : vector<1x8x256xf32> -> vector<1x8x256xf32>
    %48 = vector.broadcast %47 : vector<1x8x256xf32> to vector<8x8x256xf32>
    %49 = arith.mulf %44, %48 : vector<8x8x256xf32>
    %cst_12 = arith.constant dense<0.000000e+00> : vector<8x256xf32>
    %50 = vector.multi_reduction <add>, %49, %cst_12 [1] : vector<8x8x256xf32> to vector<8x256xf32>
    %51 = vector.shape_cast %50 : vector<8x256xf32> to vector<8x1x256xf32>
    %52 = tpu.reciprocal %51 {approx = true} : vector<8x1x256xf32> -> vector<8x1x256xf32>
    %53 = vector.broadcast %52 : vector<8x1x256xf32> to vector<8x8x256xf32>
    %54 = arith.mulf %49, %53 : vector<8x8x256xf32>
    %cst_13 = arith.constant dense<0.000000e+00> : vector<8x256xf32>
    %55 = vector.multi_reduction <add>, %54, %cst_13 [0] : vector<8x8x256xf32> to vector<8x256xf32>
    %56 = vector.shape_cast %55 : vector<8x256xf32> to vector<1x8x256xf32>
    %57 = tpu.reciprocal %56 {approx = true} : vector<1x8x256xf32> -> vector<1x8x256xf32>
    %58 = vector.broadcast %57 : vector<1x8x256xf32> to vector<8x8x256xf32>
    %59 = arith.mulf %54, %58 : vector<8x8x256xf32>
    %cst_14 = arith.constant dense<0.000000e+00> : vector<8x256xf32>
    %60 = vector.multi_reduction <add>, %59, %cst_14 [1] : vector<8x8x256xf32> to vector<8x256xf32>
    %61 = vector.shape_cast %60 : vector<8x256xf32> to vector<8x1x256xf32>
    %62 = tpu.reciprocal %61 {approx = true} : vector<8x1x256xf32> -> vector<8x1x256xf32>
    %63 = vector.broadcast %62 : vector<8x1x256xf32> to vector<8x8x256xf32>
    %64 = arith.mulf %59, %63 : vector<8x8x256xf32>
    %cst_15 = arith.constant dense<0.000000e+00> : vector<8x256xf32>
    %65 = vector.multi_reduction <add>, %64, %cst_15 [0] : vector<8x8x256xf32> to vector<8x256xf32>
    %66 = vector.shape_cast %65 : vector<8x256xf32> to vector<1x8x256xf32>
    %67 = tpu.reciprocal %66 {approx = true} : vector<1x8x256xf32> -> vector<1x8x256xf32>
    %68 = vector.broadcast %67 : vector<1x8x256xf32> to vector<8x8x256xf32>
    %69 = arith.mulf %64, %68 : vector<8x8x256xf32>
    %cst_16 = arith.constant dense<0.000000e+00> : vector<8x256xf32>
    %70 = vector.multi_reduction <add>, %69, %cst_16 [1] : vector<8x8x256xf32> to vector<8x256xf32>
    %71 = vector.shape_cast %70 : vector<8x256xf32> to vector<8x1x256xf32>
    %72 = tpu.reciprocal %71 {approx = true} : vector<8x1x256xf32> -> vector<8x1x256xf32>
    %73 = vector.broadcast %72 : vector<8x1x256xf32> to vector<8x8x256xf32>
    %74 = arith.mulf %69, %73 : vector<8x8x256xf32>
    %cst_17 = arith.constant dense<0.000000e+00> : vector<8x256xf32>
    %75 = vector.multi_reduction <add>, %74, %cst_17 [0] : vector<8x8x256xf32> to vector<8x256xf32>
    %76 = vector.shape_cast %75 : vector<8x256xf32> to vector<1x8x256xf32>
    %77 = tpu.reciprocal %76 {approx = true} : vector<1x8x256xf32> -> vector<1x8x256xf32>
    %78 = vector.broadcast %77 : vector<1x8x256xf32> to vector<8x8x256xf32>
    %79 = arith.mulf %74, %78 : vector<8x8x256xf32>
    %cst_18 = arith.constant dense<0.000000e+00> : vector<8x256xf32>
    %80 = vector.multi_reduction <add>, %79, %cst_18 [1] : vector<8x8x256xf32> to vector<8x256xf32>
    %81 = vector.shape_cast %80 : vector<8x256xf32> to vector<8x1x256xf32>
    %82 = tpu.reciprocal %81 {approx = true} : vector<8x1x256xf32> -> vector<8x1x256xf32>
    %83 = vector.broadcast %82 : vector<8x1x256xf32> to vector<8x8x256xf32>
    %84 = arith.mulf %79, %83 : vector<8x8x256xf32>
    %cst_19 = arith.constant dense<0.000000e+00> : vector<8x256xf32>
    %85 = vector.multi_reduction <add>, %84, %cst_19 [0] : vector<8x8x256xf32> to vector<8x256xf32>
    %86 = vector.shape_cast %85 : vector<8x256xf32> to vector<1x8x256xf32>
    %87 = tpu.reciprocal %86 {approx = true} : vector<1x8x256xf32> -> vector<1x8x256xf32>
    %88 = vector.broadcast %87 : vector<1x8x256xf32> to vector<8x8x256xf32>
    %89 = arith.mulf %84, %88 : vector<8x8x256xf32>
    %cst_20 = arith.constant dense<0.000000e+00> : vector<8x256xf32>
    %90 = vector.multi_reduction <add>, %89, %cst_20 [1] : vector<8x8x256xf32> to vector<8x256xf32>
    %91 = vector.shape_cast %90 : vector<8x256xf32> to vector<8x1x256xf32>
    %92 = tpu.reciprocal %91 {approx = true} : vector<8x1x256xf32> -> vector<8x1x256xf32>
    %93 = vector.broadcast %92 : vector<8x1x256xf32> to vector<8x8x256xf32>
    %94 = arith.mulf %89, %93 : vector<8x8x256xf32>
    %cst_21 = arith.constant dense<0.000000e+00> : vector<8x256xf32>
    %95 = vector.multi_reduction <add>, %94, %cst_21 [0] : vector<8x8x256xf32> to vector<8x256xf32>
    %96 = vector.shape_cast %95 : vector<8x256xf32> to vector<1x8x256xf32>
    %97 = tpu.reciprocal %96 {approx = true} : vector<1x8x256xf32> -> vector<1x8x256xf32>
    %98 = vector.broadcast %97 : vector<1x8x256xf32> to vector<8x8x256xf32>
    %99 = arith.mulf %94, %98 : vector<8x8x256xf32>
    %cst_22 = arith.constant dense<0.000000e+00> : vector<8x256xf32>
    %100 = vector.multi_reduction <add>, %99, %cst_22 [1] : vector<8x8x256xf32> to vector<8x256xf32>
    %101 = vector.shape_cast %100 : vector<8x256xf32> to vector<8x1x256xf32>
    %102 = tpu.reciprocal %101 {approx = true} : vector<8x1x256xf32> -> vector<8x1x256xf32>
    %103 = vector.broadcast %102 : vector<8x1x256xf32> to vector<8x8x256xf32>
    %104 = arith.mulf %99, %103 : vector<8x8x256xf32>
    %cst_23 = arith.constant dense<0.000000e+00> : vector<8x256xf32>
    %105 = vector.multi_reduction <add>, %104, %cst_23 [0] : vector<8x8x256xf32> to vector<8x256xf32>
    %106 = vector.shape_cast %105 : vector<8x256xf32> to vector<1x8x256xf32>
    %107 = tpu.reciprocal %106 {approx = true} : vector<1x8x256xf32> -> vector<1x8x256xf32>
    %108 = vector.broadcast %107 : vector<1x8x256xf32> to vector<8x8x256xf32>
    %109 = arith.mulf %104, %108 : vector<8x8x256xf32>
    %110 = vector.extract_strided_slice %109 {offsets = [0, 0, 0], sizes = [1, 8, 256], strides = [1, 1, 1]} : vector<8x8x256xf32> to vector<1x8x256xf32>
    %111 = vector.shape_cast %110 : vector<1x8x256xf32> to vector<8x256xf32>
    %112 = vector.extract_strided_slice %109 {offsets = [1, 0, 0], sizes = [1, 8, 256], strides = [1, 1, 1]} : vector<8x8x256xf32> to vector<1x8x256xf32>
    %113 = vector.shape_cast %112 : vector<1x8x256xf32> to vector<8x256xf32>
    %114 = vector.shape_cast %113 : vector<8x256xf32> to vector<8x1x256xf32>
    %115 = vector.shape_cast %111 : vector<8x256xf32> to vector<1x8x256xf32>
    %116 = vector.broadcast %114 : vector<8x1x256xf32> to vector<8x8x256xf32>
    %117 = vector.broadcast %115 : vector<1x8x256xf32> to vector<8x8x256xf32>
    %118 = arith.mulf %116, %117 : vector<8x8x256xf32>
    %119 = vector.extract_strided_slice %109 {offsets = [1, 0, 0], sizes = [1, 8, 256], strides = [1, 1, 1]} : vector<8x8x256xf32> to vector<1x8x256xf32>
    %120 = vector.shape_cast %119 : vector<1x8x256xf32> to vector<8x256xf32>
    %121 = arith.addf %111, %120 : vector<8x256xf32>
    %122 = vector.extract_strided_slice %109 {offsets = [2, 0, 0], sizes = [1, 8, 256], strides = [1, 1, 1]} : vector<8x8x256xf32> to vector<1x8x256xf32>
    %123 = vector.shape_cast %122 : vector<1x8x256xf32> to vector<8x256xf32>
    %124 = vector.shape_cast %123 : vector<8x256xf32> to vector<8x1x256xf32>
    %125 = vector.shape_cast %121 : vector<8x256xf32> to vector<1x8x256xf32>
    %126 = vector.broadcast %124 : vector<8x1x256xf32> to vector<8x8x256xf32>
    %127 = vector.broadcast %125 : vector<1x8x256xf32> to vector<8x8x256xf32>
    %128 = arith.mulf %126, %127 : vector<8x8x256xf32>
    %129 = arith.addf %118, %128 : vector<8x8x256xf32>
    %130 = vector.extract_strided_slice %109 {offsets = [2, 0, 0], sizes = [1, 8, 256], strides = [1, 1, 1]} : vector<8x8x256xf32> to vector<1x8x256xf32>
    %131 = vector.shape_cast %130 : vector<1x8x256xf32> to vector<8x256xf32>
    %132 = arith.addf %121, %131 : vector<8x256xf32>
    %133 = vector.extract_strided_slice %109 {offsets = [3, 0, 0], sizes = [1, 8, 256], strides = [1, 1, 1]} : vector<8x8x256xf32> to vector<1x8x256xf32>
    %134 = vector.shape_cast %133 : vector<1x8x256xf32> to vector<8x256xf32>
    %135 = vector.shape_cast %134 : vector<8x256xf32> to vector<8x1x256xf32>
    %136 = vector.shape_cast %132 : vector<8x256xf32> to vector<1x8x256xf32>
    %137 = vector.broadcast %135 : vector<8x1x256xf32> to vector<8x8x256xf32>
    %138 = vector.broadcast %136 : vector<1x8x256xf32> to vector<8x8x256xf32>
    %139 = arith.mulf %137, %138 : vector<8x8x256xf32>
    %140 = arith.addf %129, %139 : vector<8x8x256xf32>
    %141 = vector.extract_strided_slice %109 {offsets = [3, 0, 0], sizes = [1, 8, 256], strides = [1, 1, 1]} : vector<8x8x256xf32> to vector<1x8x256xf32>
    %142 = vector.shape_cast %141 : vector<1x8x256xf32> to vector<8x256xf32>
    %143 = arith.addf %132, %142 : vector<8x256xf32>
    %144 = vector.extract_strided_slice %109 {offsets = [4, 0, 0], sizes = [1, 8, 256], strides = [1, 1, 1]} : vector<8x8x256xf32> to vector<1x8x256xf32>
    %145 = vector.shape_cast %144 : vector<1x8x256xf32> to vector<8x256xf32>
    %146 = vector.shape_cast %145 : vector<8x256xf32> to vector<8x1x256xf32>
    %147 = vector.shape_cast %143 : vector<8x256xf32> to vector<1x8x256xf32>
    %148 = vector.broadcast %146 : vector<8x1x256xf32> to vector<8x8x256xf32>
    %149 = vector.broadcast %147 : vector<1x8x256xf32> to vector<8x8x256xf32>
    %150 = arith.mulf %148, %149 : vector<8x8x256xf32>
    %151 = arith.addf %140, %150 : vector<8x8x256xf32>
    %152 = vector.extract_strided_slice %109 {offsets = [4, 0, 0], sizes = [1, 8, 256], strides = [1, 1, 1]} : vector<8x8x256xf32> to vector<1x8x256xf32>
    %153 = vector.shape_cast %152 : vector<1x8x256xf32> to vector<8x256xf32>
    %154 = arith.addf %143, %153 : vector<8x256xf32>
    %155 = vector.extract_strided_slice %109 {offsets = [5, 0, 0], sizes = [1, 8, 256], strides = [1, 1, 1]} : vector<8x8x256xf32> to vector<1x8x256xf32>
    %156 = vector.shape_cast %155 : vector<1x8x256xf32> to vector<8x256xf32>
    %157 = vector.shape_cast %156 : vector<8x256xf32> to vector<8x1x256xf32>
    %158 = vector.shape_cast %154 : vector<8x256xf32> to vector<1x8x256xf32>
    %159 = vector.broadcast %157 : vector<8x1x256xf32> to vector<8x8x256xf32>
    %160 = vector.broadcast %158 : vector<1x8x256xf32> to vector<8x8x256xf32>
    %161 = arith.mulf %159, %160 : vector<8x8x256xf32>
    %162 = arith.addf %151, %161 : vector<8x8x256xf32>
    %163 = vector.extract_strided_slice %109 {offsets = [5, 0, 0], sizes = [1, 8, 256], strides = [1, 1, 1]} : vector<8x8x256xf32> to vector<1x8x256xf32>
    %164 = vector.shape_cast %163 : vector<1x8x256xf32> to vector<8x256xf32>
    %165 = arith.addf %154, %164 : vector<8x256xf32>
    %166 = vector.extract_strided_slice %109 {offsets = [6, 0, 0], sizes = [1, 8, 256], strides = [1, 1, 1]} : vector<8x8x256xf32> to vector<1x8x256xf32>
    %167 = vector.shape_cast %166 : vector<1x8x256xf32> to vector<8x256xf32>
    %168 = vector.shape_cast %167 : vector<8x256xf32> to vector<8x1x256xf32>
    %169 = vector.shape_cast %165 : vector<8x256xf32> to vector<1x8x256xf32>
    %170 = vector.broadcast %168 : vector<8x1x256xf32> to vector<8x8x256xf32>
    %171 = vector.broadcast %169 : vector<1x8x256xf32> to vector<8x8x256xf32>
    %172 = arith.mulf %170, %171 : vector<8x8x256xf32>
    %173 = arith.addf %162, %172 : vector<8x8x256xf32>
    %174 = vector.extract_strided_slice %109 {offsets = [6, 0, 0], sizes = [1, 8, 256], strides = [1, 1, 1]} : vector<8x8x256xf32> to vector<1x8x256xf32>
    %175 = vector.shape_cast %174 : vector<1x8x256xf32> to vector<8x256xf32>
    %176 = arith.addf %165, %175 : vector<8x256xf32>
    %177 = vector.extract_strided_slice %109 {offsets = [7, 0, 0], sizes = [1, 8, 256], strides = [1, 1, 1]} : vector<8x8x256xf32> to vector<1x8x256xf32>
    %178 = vector.shape_cast %177 : vector<1x8x256xf32> to vector<8x256xf32>
    %179 = vector.shape_cast %178 : vector<8x256xf32> to vector<8x1x256xf32>
    %180 = vector.shape_cast %176 : vector<8x256xf32> to vector<1x8x256xf32>
    %181 = vector.broadcast %179 : vector<8x1x256xf32> to vector<8x8x256xf32>
    %182 = vector.broadcast %180 : vector<1x8x256xf32> to vector<8x8x256xf32>
    %183 = arith.mulf %181, %182 : vector<8x8x256xf32>
    %184 = arith.addf %173, %183 : vector<8x8x256xf32>
    %c0_24 = arith.constant 0 : index
    %c0_25 = arith.constant 0 : index
    %185 = vector.load %arg2[%c0_24, %c0_25] : memref<8x256xf32, #tpu.memory_space<vmem>>, vector<8x256xf32>
    %186 = vector.shape_cast %185 : vector<8x256xf32> to vector<1x8x256xf32>
    %187 = vector.broadcast %186 : vector<1x8x256xf32> to vector<8x8x256xf32>
    %188 = arith.mulf %184, %187 : vector<8x8x256xf32>
    %c0_26 = arith.constant 0 : index
    %c0_27 = arith.constant 0 : index
    %c0_28 = arith.constant 0 : index
    %c0_29 = arith.constant 0 : index
    %189 = vector.load %arg3[%c0_26, %c0_27, %c0_28, %c0_29] : memref<4x8x8x1xf32, #tpu.memory_space<vmem>>, vector<4x8x8x1xf32>
    %c0_30 = arith.constant 0 : index
    %c0_31 = arith.constant 0 : index
    %c0_32 = arith.constant 0 : index
    %190 = vector.load %arg4[%c0_30, %c0_31, %c0_32] : memref<4x8x1xf32, #tpu.memory_space<vmem>>, vector<4x8x1xf32>
    %191 = vector.shape_cast %188 : vector<8x8x256xf32> to vector<1x8x8x256xf32>
    %192 = vector.broadcast %189 : vector<4x8x8x1xf32> to vector<4x8x8x256xf32>
    %193 = vector.broadcast %191 : vector<1x8x8x256xf32> to vector<4x8x8x256xf32>
    %194 = arith.mulf %192, %193 : vector<4x8x8x256xf32>
    %cst_33 = arith.constant dense<0.000000e+00> : vector<4x8x256xf32>
    %195 = vector.multi_reduction <add>, %194, %cst_33 [2] : vector<4x8x8x256xf32> to vector<4x8x256xf32>
    %196 = vector.broadcast %190 : vector<4x8x1xf32> to vector<4x8x256xf32>
    %197 = arith.addf %195, %196 : vector<4x8x256xf32>
    %cst_34 = arith.constant 0.000000e+00 : f32
    %198 = vector.broadcast %cst_34 : f32 to vector<4x8x256xf32>
    %199 = arith.cmpf ogt, %197, %198 : vector<4x8x256xf32>
    %cst_35 = arith.constant 0.00999999977 : f32
    %200 = vector.broadcast %cst_35 : f32 to vector<4x8x256xf32>
    %201 = arith.mulf %200, %197 : vector<4x8x256xf32>
    %202 = arith.select %199, %197, %201 : vector<4x8x256xi1>, vector<4x8x256xf32>
    %c0_36 = arith.constant 0 : index
    %c0_37 = arith.constant 0 : index
    %c0_38 = arith.constant 0 : index
    %c0_39 = arith.constant 0 : index
    %203 = vector.load %arg5[%c0_36, %c0_37, %c0_38, %c0_39] : memref<4x8x8x1xf32, #tpu.memory_space<vmem>>, vector<4x8x8x1xf32>
    %c0_40 = arith.constant 0 : index
    %c0_41 = arith.constant 0 : index
    %c0_42 = arith.constant 0 : index
    %c0_43 = arith.constant 0 : index
    %204 = vector.load %arg7[%c0_40, %c0_41, %c0_42, %c0_43] : memref<4x8x8x1xf32, #tpu.memory_space<vmem>>, vector<4x8x8x1xf32>
    %c0_44 = arith.constant 0 : index
    %c0_45 = arith.constant 0 : index
    %205 = vector.load %arg6[%c0_44, %c0_45] : memref<8x1xf32, #tpu.memory_space<vmem>>, vector<8x1xf32>
    %c0_46 = arith.constant 0 : index
    %c0_47 = arith.constant 0 : index
    %206 = vector.load %arg8[%c0_46, %c0_47] : memref<8x1xf32, #tpu.memory_space<vmem>>, vector<8x1xf32>
    %207 = vector.shape_cast %202 : vector<4x8x256xf32> to vector<4x1x8x256xf32>
    %208 = vector.broadcast %203 : vector<4x8x8x1xf32> to vector<4x8x8x256xf32>
    %209 = vector.broadcast %207 : vector<4x1x8x256xf32> to vector<4x8x8x256xf32>
    %210 = arith.mulf %208, %209 : vector<4x8x8x256xf32>
    %cst_48 = arith.constant dense<0.000000e+00> : vector<8x8x256xf32>
    %211 = vector.multi_reduction <add>, %210, %cst_48 [0] : vector<4x8x8x256xf32> to vector<8x8x256xf32>
    %212 = vector.broadcast %204 : vector<4x8x8x1xf32> to vector<4x8x8x256xf32>
    %213 = vector.broadcast %207 : vector<4x1x8x256xf32> to vector<4x8x8x256xf32>
    %214 = arith.mulf %212, %213 : vector<4x8x8x256xf32>
    %cst_49 = arith.constant dense<0.000000e+00> : vector<8x8x256xf32>
    %215 = vector.multi_reduction <add>, %214, %cst_49 [0] : vector<4x8x8x256xf32> to vector<8x8x256xf32>
    %216 = arith.mulf %184, %211 : vector<8x8x256xf32>
    %cst_50 = arith.constant dense<0.000000e+00> : vector<8x256xf32>
    %217 = vector.multi_reduction <add>, %216, %cst_50 [1] : vector<8x8x256xf32> to vector<8x256xf32>
    %218 = vector.broadcast %205 : vector<8x1xf32> to vector<8x256xf32>
    %219 = arith.addf %217, %218 : vector<8x256xf32>
    %220 = arith.mulf %184, %215 : vector<8x8x256xf32>
    %cst_51 = arith.constant dense<0.000000e+00> : vector<8x256xf32>
    %221 = vector.multi_reduction <add>, %220, %cst_51 [1] : vector<8x8x256xf32> to vector<8x256xf32>
    %222 = vector.broadcast %206 : vector<8x1xf32> to vector<8x256xf32>
    %223 = arith.addf %221, %222 : vector<8x256xf32>
    %224 = math.exp %219 : vector<8x256xf32>
    %225 = arith.mulf %185, %224 : vector<8x256xf32>
    %226 = arith.addf %225, %223 : vector<8x256xf32>
    %cst_52 = arith.constant 6.28318548 : f32
    %227 = math.log %cst_52 : f32
    %228 = arith.mulf %226, %226 : vector<8x256xf32>
    %229 = vector.broadcast %227 : f32 to vector<8x256xf32>
    %230 = arith.addf %228, %229 : vector<8x256xf32>
    %cst_53 = arith.constant -5.000000e-01 : f32
    %231 = vector.broadcast %cst_53 : f32 to vector<8x256xf32>
    %232 = arith.mulf %231, %230 : vector<8x256xf32>
    %cst_54 = arith.constant dense<0.000000e+00> : vector<256xf32>
    %233 = vector.multi_reduction <add>, %232, %cst_54 [0] : vector<8x256xf32> to vector<256xf32>
    %234 = vector.shape_cast %233 : vector<256xf32> to vector<1x256xf32>
    %cst_55 = arith.constant dense<0.000000e+00> : vector<256xf32>
    %235 = vector.multi_reduction <add>, %219, %cst_55 [0] : vector<8x256xf32> to vector<256xf32>
    %236 = vector.shape_cast %235 : vector<256xf32> to vector<1x256xf32>
    %237 = arith.addf %234, %236 : vector<1x256xf32>
    %c0_56 = arith.constant 0 : index
    %c0_57 = arith.constant 0 : index
    %238 = vector.load %arg9[%c0_56, %c0_57] : memref<1x256xf32, #tpu.memory_space<vmem>>, vector<1x256xf32>
    tpu.vector_store %arg9[%c0_56, %c0_57], %237 {strides = array<i32>} : memref<1x256xf32, #tpu.memory_space<vmem>>, vector<1x256xf32>,
    return
  }
  func.func @transform_0(%arg0: i32) -> (i32, i32, i32) {
    %c0_i32 = arith.constant 0 : i32
    %c0_i32_0 = arith.constant 0 : i32
    %c0_i32_1 = arith.constant 0 : i32
    return %c0_i32, %c0_i32_0, %arg0 : i32, i32, i32
  }
  func.func @transform_1(%arg0: i32) -> (i32, i32) {
    %c0_i32 = arith.constant 0 : i32
    %c0_i32_0 = arith.constant 0 : i32
    return %c0_i32, %arg0 : i32, i32
  }
  func.func @transform_2(%arg0: i32) -> (i32, i32, i32, i32) {
    %c0_i32 = arith.constant 0 : i32
    %c0_i32_0 = arith.constant 0 : i32
    %c0_i32_1 = arith.constant 0 : i32
    %c0_i32_2 = arith.constant 0 : i32
    %c0_i32_3 = arith.constant 0 : i32
    return %c0_i32, %c0_i32_0, %c0_i32_1, %c0_i32_2 : i32, i32, i32, i32
  }
  func.func @transform_3(%arg0: i32) -> (i32, i32, i32) {
    %c0_i32 = arith.constant 0 : i32
    %c0_i32_0 = arith.constant 0 : i32
    %c0_i32_1 = arith.constant 0 : i32
    %c0_i32_2 = arith.constant 0 : i32
    return %c0_i32, %c0_i32_0, %c0_i32_1 : i32, i32, i32
  }
  func.func @transform_4(%arg0: i32) -> (i32, i32, i32, i32) {
    %c0_i32 = arith.constant 0 : i32
    %c0_i32_0 = arith.constant 0 : i32
    %c0_i32_1 = arith.constant 0 : i32
    %c0_i32_2 = arith.constant 0 : i32
    %c0_i32_3 = arith.constant 0 : i32
    return %c0_i32, %c0_i32_0, %c0_i32_1, %c0_i32_2 : i32, i32, i32, i32
  }
  func.func @transform_5(%arg0: i32) -> (i32, i32) {
    %c0_i32 = arith.constant 0 : i32
    %c0_i32_0 = arith.constant 0 : i32
    %c0_i32_1 = arith.constant 0 : i32
    return %c0_i32, %c0_i32_0 : i32, i32
  }
  func.func @transform_6(%arg0: i32) -> (i32, i32, i32, i32) {
    %c0_i32 = arith.constant 0 : i32
    %c0_i32_0 = arith.constant 0 : i32
    %c0_i32_1 = arith.constant 0 : i32
    %c0_i32_2 = arith.constant 0 : i32
    %c0_i32_3 = arith.constant 0 : i32
    return %c0_i32, %c0_i32_0, %c0_i32_1, %c0_i32_2 : i32, i32, i32, i32
  }
  func.func @transform_7(%arg0: i32) -> (i32, i32) {
    %c0_i32 = arith.constant 0 : i32
    %c0_i32_0 = arith.constant 0 : i32
    %c0_i32_1 = arith.constant 0 : i32
    return %c0_i32, %c0_i32_0 : i32, i32
  }
  func.func @transform_8(%arg0: i32) -> (i32, i32) {
    %c0_i32 = arith.constant 0 : i32
    %c0_i32_0 = arith.constant 0 : i32
    return %c0_i32, %arg0 : i32, i32
  }
}

</mosaic_0001>

<llo_original>
// kernel: tpu_custom_call.1
$region0: #{tpu_custom_call.1}
  #allocation0 [shape = 'u32[]', space=smem, size = 0x4, offset = 0x4, fixed_abs, tag = 'smem constant byte address 0x4 - core index']
  #allocation1 [shape = 'u32[144,128]{1,0:T(1,128)}', space=vmem, size = 0x12000, scoped, tag = 'internal scratch']
  %s0 = inlined_call_operand.vmem [shape: f32[8,8,512], index: 0, kind: input, shape index: {}]
  %s1 = inlined_call_operand.vmem [shape: f32[8,512], index: 1, kind: input, shape index: {}]
  %s2 = inlined_call_operand.vmem [shape: f32[4,8,8,1], index: 2, kind: input, shape index: {}]
  %s3 = inlined_call_operand.vmem [shape: f32[4,8,1], index: 3, kind: input, shape index: {}]
  %s4 = inlined_call_operand.vmem [shape: f32[4,8,8,1], index: 4, kind: input, shape index: {}]
  %s5 = inlined_call_operand.vmem [shape: f32[8,1], index: 5, kind: input, shape index: {}]
  %s6 = inlined_call_operand.vmem [shape: f32[4,8,8,1], index: 6, kind: input, shape index: {}]
  %s7 = inlined_call_operand.vmem [shape: f32[8,1], index: 7, kind: input, shape index: {}]
  %s8 = inlined_call_operand.hbm [shape: f32[1,512], index: 8, kind: output, shape index: {}]
  %s9 = sld [smem:[#allocation0]]
  $region88: #{tpu_custom_call.1} parent=0
    _
  %s11 = ssub.s32 1, %s9
  %s12 = scalar_select 0, %s11, %s9
  $region1: #{tpu_custom_call.1} parent=0
    #allocation2 [shape = 'u8[131072]{0}', space=vmem, size = 0x20000, scoped, tag = 'input window, operand 0']
    #allocation3 [shape = 'u8[2048]{0}', space=vmem, size = 0x800, scoped, tag = 'output window, operand 0']
    #allocation4 [shape = 's32[2]{0}', space=sflag, size = 0x8, scoped, tag = 'scoped memory for tpu_custom_call.1']
    %13 = vsyncpa [#allocation4], 0
    %s14 = scalar_lea.sflag [#allocation4], 1
    %15 = vsyncpa %s14, 0
    loop: start=0, step=1, limit=4
    $region2: #{tpu_custom_call.1} parent=1 // loop_pre_header
      _
    $region3: #{tpu_custom_call.1} parent=1 // loop_header
      %s17 = sphi 0, %s21
      %p18 = scmp.ge.s32.totalorder %s17, 4
      %s27 = sphi 0, %s29
      %s30 = sphi 0, %s27
      %s31 = sphi 0, %s30
      %s47 = sphi 0, %s31
      %s53 = sphi 0, %s55
      %s56 = sphi 0, %s53
      %s57 = sphi 0, %s56
      %s73 = sphi 0, %s57
      %s77 = sphi 0, %s77
      %s79 = sphi 0, %s77
      %s80 = sphi 0, %s79
      %s94 = sphi 0, %s80
      %s98 = sphi 0, %s98
      %s100 = sphi 0, %s98
      %s101 = sphi 0, %s100
      %s115 = sphi 0, %s101
      %s119 = sphi 0, %s119
      %s121 = sphi 0, %s119
      %s122 = sphi 0, %s121
      %s136 = sphi 0, %s122
      %s140 = sphi 0, %s140
      %s142 = sphi 0, %s140
      %s143 = sphi 0, %s142
      %s157 = sphi 0, %s143
      %s161 = sphi 0, %s161
      %s163 = sphi 0, %s161
      %s164 = sphi 0, %s163
      %s178 = sphi 0, %s164
      %s182 = sphi 0, %s182
      %s184 = sphi 0, %s182
      %s185 = sphi 0, %s184
      %s199 = sphi 0, %s185
      %s205 = sphi 0, %s207
      %s208 = sphi 0, %s205
      %s209 = sphi 0, %s208
      %s225 = sphi 0, %s209
    $region4: #{tpu_custom_call.1} parent=1 // loop_header_branch
      %20 = sbr.rel (%p18) target = $region8
    $region5: #{tpu_custom_call.1} parent=1 // loop_body
      %s22 = ssub.s32 %s17, 1
      %s23 = ssub.s32 %s17, 2
      %s24 = sadd.s32 %s17, 1
      %s25 = ssub.s32 %s17, %s24
      %p26 = scmp.eq.s32.totalorder %s25, 0
      %s28 = sadd.s32 %s27, 1
      %s29 = scalar_select %p26, %s27, %s28
      %p32 = pneg %p26
      %p33 = scmp.eq.s32.totalorder %s17, 1
      %p34 = por %p32, %p33
      %p35 = scmp.ne.s32.totalorder %s27, %s30
      %p36 = scmp.eq.s32.totalorder %s17, 0
      %p37 = por %p35, %p36
      %p38 = scmp.ne.s32.totalorder %s27, %s30
      %p39 = scmp.eq.s32.totalorder %s22, 1
      %p40 = por %p38, %p39
      %p41 = scmp.ne.s32.totalorder %s30, %s31
      %p42 = scmp.eq.s32.totalorder %s22, 0
      %p43 = por %p41, %p42
      %p44 = scmp.ne.s32.totalorder %s30, %s31
      %p45 = scmp.eq.s32.totalorder %s23, 1
      %p46 = por %p44, %p45
      %p48 = scmp.ne.s32.totalorder %s31, %s47
      %p49 = scmp.eq.s32.totalorder %s23, 0
      %p50 = por %p48, %p49
      %s51 = ssub.s32 %s17, %s24
      %p52 = scmp.eq.s32.totalorder %s51, 0
      %s54 = sadd.s32 %s53, 1
      %s55 = scalar_select %p52, %s53, %s54
      %p58 = pneg %p52
      %p59 = scmp.eq.s32.totalorder %s17, 1
      %p60 = por %p58, %p59
      %p61 = scmp.ne.s32.totalorder %s53, %s56
      %p62 = scmp.eq.s32.totalorder %s17, 0
      %p63 = por %p61, %p62
      %p64 = scmp.ne.s32.totalorder %s53, %s56
      %p65 = scmp.eq.s32.totalorder %s22, 1
      %p66 = por %p64, %p65
      %p67 = scmp.ne.s32.totalorder %s56, %s57
      %p68 = scmp.eq.s32.totalorder %s22, 0
      %p69 = por %p67, %p68
      %p70 = scmp.ne.s32.totalorder %s56, %s57
      %p71 = scmp.eq.s32.totalorder %s23, 1
      %p72 = por %p70, %p71
      %p74 = scmp.ne.s32.totalorder %s57, %s73
      %p75 = scmp.eq.s32.totalorder %s23, 0
      %p76 = por %p74, %p75
      %s78 = sadd.s32 %s77, 1
      %p81 = scmp.eq.s32.totalorder %s17, 1
      %p82 = scmp.ne.s32.totalorder %s77, %s79
      %p83 = scmp.eq.s32.totalorder %s17, 0
      %p84 = por %p82, %p83
      %p85 = scmp.ne.s32.totalorder %s77, %s79
      %p86 = scmp.eq.s32.totalorder %s22, 1
      %p87 = por %p85, %p86
      %p88 = scmp.ne.s32.totalorder %s79, %s80
      %p89 = scmp.eq.s32.totalorder %s22, 0
      %p90 = por %p88, %p89
      %p91 = scmp.ne.s32.totalorder %s79, %s80
      %p92 = scmp.eq.s32.totalorder %s23, 1
      %p93 = por %p91, %p92
      %p95 = scmp.ne.s32.totalorder %s80, %s94
      %p96 = scmp.eq.s32.totalorder %s23, 0
      %p97 = por %p95, %p96
      %s99 = sadd.s32 %s98, 1
      %p102 = scmp.eq.s32.totalorder %s17, 1
      %p103 = scmp.ne.s32.totalorder %s98, %s100
      %p104 = scmp.eq.s32.totalorder %s17, 0
      %p105 = por %p103, %p104
      %p106 = scmp.ne.s32.totalorder %s98, %s100
      %p107 = scmp.eq.s32.totalorder %s22, 1
      %p108 = por %p106, %p107
      %p109 = scmp.ne.s32.totalorder %s100, %s101
      %p110 = scmp.eq.s32.totalorder %s22, 0
      %p111 = por %p109, %p110
      %p112 = scmp.ne.s32.totalorder %s100, %s101
      %p113 = scmp.eq.s32.totalorder %s23, 1
      %p114 = por %p112, %p113
      %p116 = scmp.ne.s32.totalorder %s101, %s115
      %p117 = scmp.eq.s32.totalorder %s23, 0
      %p118 = por %p116, %p117
      %s120 = sadd.s32 %s119, 1
      %p123 = scmp.eq.s32.totalorder %s17, 1
      %p124 = scmp.ne.s32.totalorder %s119, %s121
      %p125 = scmp.eq.s32.totalorder %s17, 0
      %p126 = por %p124, %p125
      %p127 = scmp.ne.s32.totalorder %s119, %s121
      %p128 = scmp.eq.s32.totalorder %s22, 1
      %p129 = por %p127, %p128
      %p130 = scmp.ne.s32.totalorder %s121, %s122
      %p131 = scmp.eq.s32.totalorder %s22, 0
      %p132 = por %p130, %p131
      %p133 = scmp.ne.s32.totalorder %s121, %s122
      %p134 = scmp.eq.s32.totalorder %s23, 1
      %p135 = por %p133, %p134
      %p137 = scmp.ne.s32.totalorder %s122, %s136
      %p138 = scmp.eq.s32.totalorder %s23, 0
      %p139 = por %p137, %p138
      %s141 = sadd.s32 %s140, 1
      %p144 = scmp.eq.s32.totalorder %s17, 1
      %p145 = scmp.ne.s32.totalorder %s140, %s142
      %p146 = scmp.eq.s32.totalorder %s17, 0
      %p147 = por %p145, %p146
      %p148 = scmp.ne.s32.totalorder %s140, %s142
      %p149 = scmp.eq.s32.totalorder %s22, 1
      %p150 = por %p148, %p149
      %p151 = scmp.ne.s32.totalorder %s142, %s143
      %p152 = scmp.eq.s32.totalorder %s22, 0
      %p153 = por %p151, %p152
      %p154 = scmp.ne.s32.totalorder %s142, %s143
      %p155 = scmp.eq.s32.totalorder %s23, 1
      %p156 = por %p154, %p155
      %p158 = scmp.ne.s32.totalorder %s143, %s157
      %p159 = scmp.eq.s32.totalorder %s23, 0
      %p160 = por %p158, %p159
      %s162 = sadd.s32 %s161, 1
      %p165 = scmp.eq.s32.totalorder %s17, 1
      %p166 = scmp.ne.s32.totalorder %s161, %s163
      %p167 = scmp.eq.s32.totalorder %s17, 0
      %p168 = por %p166, %p167
      %p169 = scmp.ne.s32.totalorder %s161, %s163
      %p170 = scmp.eq.s32.totalorder %s22, 1
      %p171 = por %p169, %p170
      %p172 = scmp.ne.s32.totalorder %s163, %s164
      %p173 = scmp.eq.s32.totalorder %s22, 0
      %p174 = por %p172, %p173
      %p175 = scmp.ne.s32.totalorder %s163, %s164
      %p176 = scmp.eq.s32.totalorder %s23, 1
      %p177 = por %p175, %p176
      %p179 = scmp.ne.s32.totalorder %s164, %s178
      %p180 = scmp.eq.s32.totalorder %s23, 0
      %p181 = por %p179, %p180
      %s183 = sadd.s32 %s182, 1
      %p186 = scmp.eq.s32.totalorder %s17, 1
      %p187 = scmp.ne.s32.totalorder %s182, %s184
      %p188 = scmp.eq.s32.totalorder %s17, 0
      %p189 = por %p187, %p188
      %p190 = scmp.ne.s32.totalorder %s182, %s184
      %p191 = scmp.eq.s32.totalorder %s22, 1
      %p192 = por %p190, %p191
      %p193 = scmp.ne.s32.totalorder %s184, %s185
      %p194 = scmp.eq.s32.totalorder %s22, 0
      %p195 = por %p193, %p194
      %p196 = scmp.ne.s32.totalorder %s184, %s185
      %p197 = scmp.eq.s32.totalorder %s23, 1
      %p198 = por %p196, %p197
      %p200 = scmp.ne.s32.totalorder %s185, %s199
      %p201 = scmp.eq.s32.totalorder %s23, 0
      %p202 = por %p200, %p201
      %s203 = ssub.s32 %s17, %s24
      %p204 = scmp.eq.s32.totalorder %s203, 0
      %s206 = sadd.s32 %s205, 1
      %s207 = scalar_select %p204, %s205, %s206
      %p210 = pneg %p204
      %p211 = scmp.eq.s32.totalorder %s17, 1
      %p212 = por %p210, %p211
      %p213 = scmp.ne.s32.totalorder %s205, %s208
      %p214 = scmp.eq.s32.totalorder %s17, 0
      %p215 = por %p213, %p214
      %p216 = scmp.ne.s32.totalorder %s205, %s208
      %p217 = scmp.eq.s32.totalorder %s22, 1
      %p218 = por %p216, %p217
      %p219 = scmp.ne.s32.totalorder %s208, %s209
      %p220 = scmp.eq.s32.totalorder %s22, 0
      %p221 = por %p219, %p220
      %p222 = scmp.ne.s32.totalorder %s208, %s209
      %p223 = scmp.eq.s32.totalorder %s23, 1
      %p224 = por %p222, %p223
      %p226 = scmp.ne.s32.totalorder %s209, %s225
      %p227 = scmp.eq.s32.totalorder %s23, 0
      %p228 = por %p226, %p227
      %p229 = scmp.le.s32.totalorder 1, %s17
      %p230 = scmp.lt.s32.totalorder %s17, 3
      %p231 = pnand %p229, %p230
      %p232 = pneg %p231
      // Predicated region
      $region9: #{tpu_custom_call.1} parent=5 // pred_check
        _
      $region10: #{tpu_custom_call.1} parent=5 // pred_check_branch
        %234 = sbr.rel (%p231) target = $region12
      $region11: #{tpu_custom_call.1} parent=5 // pred_region
        %s235 = ssub.s32 %s17, 1
        // Predicated region
        $region13: #{tpu_custom_call.1} parent=11 // pred_check
          %p236 = pneg %p90
        $region14: #{tpu_custom_call.1} parent=11 // pred_check_branch
          %238 = sbr.rel (%p236) target = $region16
        $region15: #{tpu_custom_call.1} parent=11 // pred_region
          _
        $region16: #{tpu_custom_call.1} parent=11 // pred_fallthru
          _
        // Predicated region
        $region17: #{tpu_custom_call.1} parent=11 // pred_check
          %p239 = pneg %p111
        $region18: #{tpu_custom_call.1} parent=11 // pred_check_branch
          %241 = sbr.rel (%p239) target = $region20
        $region19: #{tpu_custom_call.1} parent=11 // pred_region
          _
        $region20: #{tpu_custom_call.1} parent=11 // pred_fallthru
          _
        // Predicated region
        $region21: #{tpu_custom_call.1} parent=11 // pred_check
          %p242 = pneg %p132
        $region22: #{tpu_custom_call.1} parent=11 // pred_check_branch
          %244 = sbr.rel (%p242) target = $region24
        $region23: #{tpu_custom_call.1} parent=11 // pred_region
          _
        $region24: #{tpu_custom_call.1} parent=11 // pred_fallthru
          _
        // Predicated region
        $region25: #{tpu_custom_call.1} parent=11 // pred_check
          %p245 = pneg %p153
        $region26: #{tpu_custom_call.1} parent=11 // pred_check_branch
          %247 = sbr.rel (%p245) target = $region28
        $region27: #{tpu_custom_call.1} parent=11 // pred_region
          _
        $region28: #{tpu_custom_call.1} parent=11 // pred_fallthru
          _
        // Predicated region
        $region29: #{tpu_custom_call.1} parent=11 // pred_check
          %p248 = pneg %p174
        $region30: #{tpu_custom_call.1} parent=11 // pred_check_branch
          %250 = sbr.rel (%p248) target = $region32
        $region31: #{tpu_custom_call.1} parent=11 // pred_region
          _
        $region32: #{tpu_custom_call.1} parent=11 // pred_fallthru
          _
        // Predicated region
        $region33: #{tpu_custom_call.1} parent=11 // pred_check
          %p251 = pneg %p195
        $region34: #{tpu_custom_call.1} parent=11 // pred_check_branch
          %253 = sbr.rel (%p251) target = $region36
        $region35: #{tpu_custom_call.1} parent=11 // pred_region
          _
        $region36: #{tpu_custom_call.1} parent=11 // pred_fallthru
          _
      $region12: #{tpu_custom_call.1} parent=5 // pred_fallthru
        _
      %p254 = scmp.lt.s32.totalorder %s17, 2
      // Predicated region
      $region37: #{tpu_custom_call.1} parent=5 // pred_check
        %p255 = pneg %p254
      $region38: #{tpu_custom_call.1} parent=5 // pred_check_branch
        %257 = sbr.rel (%p255) target = $region40
      $region39: #{tpu_custom_call.1} parent=5 // pred_region
        // Predicated region
        $region41: #{tpu_custom_call.1} parent=39 // pred_check
          %p258 = pneg %p37
        $region42: #{tpu_custom_call.1} parent=39 // pred_check_branch
          %260 = sbr.rel (%p258) target = $region44
        $region43: #{tpu_custom_call.1} parent=39 // pred_region
          %s261 = sand.u32 %s27, 1
          %s262 = sand.u32 %s27, 1
          %s263 = smul.addr %s262, 128
          %s264 = scalar_lea.vmem [#allocation2], %s263
          %s265 = smul.u32 2, %s17
          %s266 = smul.addr %s265, 8
          %s267 = scalar_lea.vmem %s0, %s266
          // Predicated region
          $region45: #{tpu_custom_call.1} parent=43 // pred_check
            _
          $region46: #{tpu_custom_call.1} parent=43 // pred_check_branch
            %269 = sbr.rel (0) target = $region48
          $region47: #{tpu_custom_call.1} parent=43 // pred_region
            // Predicated region
            $region49: #{tpu_custom_call.1} parent=47 // pred_check
              _
            $region50: #{tpu_custom_call.1} parent=47 // pred_check_branch
              %271 = sbr.rel (0) target = $region52
            $region51: #{tpu_custom_call.1} parent=47 // pred_region
              loop: start=0, step=1, limit=1
              $region53: #{tpu_custom_call.1} parent=51 // loop_pre_header
                _
              $region54: #{tpu_custom_call.1} parent=51 // loop_header
                %s273 = sphi 0, %s277
                %p274 = scmp.ge.s32.totalorder %s273, 1
                %s278 = sphi %s267, %s267
                %s279 = sphi %s264, %s264
              $region55: #{tpu_custom_call.1} parent=51 // loop_header_branch
                %276 = sbr.rel (%p274) target = $region59
              $region56: #{tpu_custom_call.1} parent=51 // loop_body
                %v280 = vld [vmem:[%s278] sm:$0xff]
                %281 = vst [vmem:[%s279] sm:$0xff] %v280
                %v282 = vld [vmem:[%s278 + $0x8] sm:$0xff]
                %283 = vst [vmem:[%s279 + $0x8] sm:$0xff] %v282
                %v284 = vld [vmem:[%s278 + $0x20] sm:$0xff]
                %285 = vst [vmem:[%s279 + $0x10] sm:$0xff] %v284
                %v286 = vld [vmem:[%s278 + $0x28] sm:$0xff]
                %287 = vst [vmem:[%s279 + $0x18] sm:$0xff] %v286
                %v288 = vld [vmem:[%s278 + $0x40] sm:$0xff]
                %289 = vst [vmem:[%s279 + $0x20] sm:$0xff] %v288
                %v290 = vld [vmem:[%s278 + $0x48] sm:$0xff]
                %291 = vst [vmem:[%s279 + $0x28] sm:$0xff] %v290
                %v292 = vld [vmem:[%s278 + $0x60] sm:$0xff]
                %293 = vst [vmem:[%s279 + $0x30] sm:$0xff] %v292
                %v294 = vld [vmem:[%s278 + $0x68] sm:$0xff]
                %295 = vst [vmem:[%s279 + $0x38] sm:$0xff] %v294
                %v296 = vld [vmem:[%s278 + $0x80] sm:$0xff]
                %297 = vst [vmem:[%s279 + $0x40] sm:$0xff] %v296
                %v298 = vld [vmem:[%s278 + $0x88] sm:$0xff]
                %299 = vst [vmem:[%s279 + $0x48] sm:$0xff] %v298
                %v300 = vld [vmem:[%s278 + $0xa0] sm:$0xff]
                %301 = vst [vmem:[%s279 + $0x50] sm:$0xff] %v300
                %v302 = vld [vmem:[%s278 + $0xa8] sm:$0xff]
                %303 = vst [vmem:[%s279 + $0x58] sm:$0xff] %v302
                %v304 = vld [vmem:[%s278 + $0xc0] sm:$0xff]
                %305 = vst [vmem:[%s279 + $0x60] sm:$0xff] %v304
                %v306 = vld [vmem:[%s278 + $0xc8] sm:$0xff]
                %307 = vst [vmem:[%s279 + $0x68] sm:$0xff] %v306
                %v308 = vld [vmem:[%s278 + $0xe0] sm:$0xff]
                %309 = vst [vmem:[%s279 + $0x70] sm:$0xff] %v308
                %v310 = vld [vmem:[%s278 + $0xe8] sm:$0xff]
                %311 = vst [vmem:[%s279 + $0x78] sm:$0xff] %v310
              $region57: #{tpu_custom_call.1} parent=51 // loop_footer
                %s277 = sadd.s32 1, %s273
              $region58: #{tpu_custom_call.1} parent=51 // loop_footer_branch
                %272 = sbr.rel target = $region54
              $region59: #{tpu_custom_call.1} parent=51 // loop_exit
                _
            $region52: #{tpu_custom_call.1} parent=47 // pred_fallthru
              _
            // Predicated region
            $region60: #{tpu_custom_call.1} parent=47 // pred_check
              _
            $region61: #{tpu_custom_call.1} parent=47 // pred_check_branch
              %313 = sbr.rel target = $region63
            $region62: #{tpu_custom_call.1} parent=47 // pred_region
              _
            $region63: #{tpu_custom_call.1} parent=47 // pred_fallthru
              _
          $region48: #{tpu_custom_call.1} parent=43 // pred_fallthru
            _
          %314 = vnop
        $region44: #{tpu_custom_call.1} parent=39 // pred_fallthru
          _
        // Predicated region
        $region64: #{tpu_custom_call.1} parent=39 // pred_check
          %p315 = pneg %p63
        $region65: #{tpu_custom_call.1} parent=39 // pred_check_branch
          %317 = sbr.rel (%p315) target = $region67
        $region66: #{tpu_custom_call.1} parent=39 // pred_region
          %s318 = smul.u32 2, %s17
          %p319 = scmp.lt.s32.totalorder %s318, 3
          %s320 = scalar_select %p319, %s318, 3
          %s321 = smul.addr %s320, 8
          %s322 = scalar_lea.vmem %s1, %s321
          %s323 = smul.u32 2, %s17
        $region67: #{tpu_custom_call.1} parent=39 // pred_fallthru
          _
      $region40: #{tpu_custom_call.1} parent=5 // pred_fallthru
        _
      %p324 = scmp.le.s32.totalorder 1, %s17
      %p325 = scmp.lt.s32.totalorder %s17, 3
      %p326 = pnand %p324, %p325
      %p327 = pneg %p326
      // Predicated region
      $region68: #{tpu_custom_call.1} parent=5 // pred_check
        _
      $region69: #{tpu_custom_call.1} parent=5 // pred_check_branch
        %329 = sbr.rel (%p326) target = $region71
      $region70: #{tpu_custom_call.1} parent=5 // pred_region
        %s330 = ssub.s32 %s17, 1
        %s331 = sand.u32 %s30, 1
        %s332 = sand.u32 %s30, 1
        %s333 = smul.addr %s332, 128
        %s334 = scalar_lea.vmem [#allocation2], %s333
        // Predicated region
        $region72: #{tpu_custom_call.1} parent=70 // pred_check
          %p335 = pneg %p43
        $region73: #{tpu_custom_call.1} parent=70 // pred_check_branch
          %337 = sbr.rel (%p335) target = $region75
        $region74: #{tpu_custom_call.1} parent=70 // pred_region
          _
        $region75: #{tpu_custom_call.1} parent=70 // pred_fallthru
          _
        %s338 = sand.u32 %s30, 1
        %s339 = sand.u32 %s30, 1
        %s340 = smul.addr %s339, 128
        %s341 = scalar_lea.vmem [#allocation2], %s340
        %p342 = pneg %p43
        %p343 = pneg %p40
        %s344 = smul.u32 2, %s22
        %p345 = scmp.lt.s32.totalorder %s344, 3
        %s346 = scalar_select %p345, %s344, 3
        %s347 = smul.addr %s346, 8
        %s348 = scalar_lea.vmem %s1, %s347
        %p349 = pneg %p69
        %p350 = pneg %p66
        %p351 = pneg %p90
        %p352 = pneg %p87
        %p353 = pneg %p111
        %p354 = pneg %p108
        %p355 = pneg %p132
        %p356 = pneg %p129
        %p357 = pneg %p153
        %p358 = pneg %p150
        %p359 = pneg %p174
        %p360 = pneg %p171
        %p361 = pneg %p195
        %p362 = pneg %p192
        %p363 = pneg %p221
        %p364 = pneg %p218
        %s365 = sand.u32 %s208, 1
        %s366 = scalar_lea.sflag [#allocation4], %s365
        %s367 = sand.u32 %s208, 1
        %s368 = smul.addr %s367, 2
        %s369 = scalar_lea.vmem [#allocation3], %s368
        %s370 = smul.u32 2, %s22
        %s371 = smul.u32 2, %s22
        %p372 = scmp.lt.s32.totalorder %s371, 3
        %s373 = scalar_select %p372, %s371, 3
        %s374 = smul.addr %s373, 8
        %s375 = scalar_lea.vmem %s1, %s374
        %s376 = smul.u32 2, %s22
        %s377 = smul.u32 2, %s22
        %v378 = vld [vmem:[%s334] sm:$0xff]
        %v379 = vld [vmem:[%s334 + $0x8] sm:$0xff]
        %v380 = vld [vmem:[%s334 + $0x10] sm:$0xff]
        %v381 = vld [vmem:[%s334 + $0x18] sm:$0xff]
        %v382 = vld [vmem:[%s334 + $0x20] sm:$0xff]
        %v383 = vld [vmem:[%s334 + $0x28] sm:$0xff]
        %v384 = vld [vmem:[%s334 + $0x30] sm:$0xff]
        %v385 = vld [vmem:[%s334 + $0x38] sm:$0xff]
        %v386 = vld [vmem:[%s334 + $0x40] sm:$0xff]
        %v387 = vld [vmem:[%s334 + $0x48] sm:$0xff]
        %v388 = vld [vmem:[%s334 + $0x50] sm:$0xff]
        %v389 = vld [vmem:[%s334 + $0x58] sm:$0xff]
        %v390 = vld [vmem:[%s334 + $0x60] sm:$0xff]
        %v391 = vld [vmem:[%s334 + $0x68] sm:$0xff]
        %v392 = vld [vmem:[%s334 + $0x70] sm:$0xff]
        %v393 = vld [vmem:[%s334 + $0x78] sm:$0xff]
        %v394 = vmax.f32 %v378, %v382
        %v395 = vmax.f32 %v380, %v384
        %v396 = vmax.f32 %v394, %v386
        %v397 = vmax.f32 %v395, %v388
        %v398 = vmax.f32 %v396, %v390
        %v399 = vmax.f32 %v397, %v392
        %v400 = vmax.f32 %v398, %v399
        %v401 = vmax.f32 %v379, %v383
        %v402 = vmax.f32 %v381, %v385
        %v403 = vmax.f32 %v401, %v387
        %v404 = vmax.f32 %v402, %v389
        %v405 = vmax.f32 %v403, %v391
        %v406 = vmax.f32 %v404, %v393
        %v407 = vmax.f32 %v405, %v406
        %v408 = vrot.slane %v400, 4
        %v409 = vmax.f32 %v400, %v408
        %v410 = vrot.slane %v409, 2
        %v411 = vmax.f32 %v409, %v410
        %v412 = vrot.slane %v411, 1
        %v413 = vmax.f32 %v411, %v412
        %v414 = vrot.slane %v407, 4
        %v415 = vmax.f32 %v407, %v414
        %v416 = vrot.slane %v415, 2
        %v417 = vmax.f32 %v415, %v416
        %v418 = vrot.slane %v417, 1
        %v419 = vmax.f32 %v417, %v418
        %v420 = vsub.f32 %v378, %v413
        %v421 = vsub.f32 %v379, %v419
        %v422 = vsub.f32 %v380, %v413
        %v423 = vsub.f32 %v381, %v419
        %v424 = vsub.f32 %v382, %v413
        %v425 = vsub.f32 %v383, %v419
        %v426 = vsub.f32 %v384, %v413
        %v427 = vsub.f32 %v385, %v419
        %v428 = vsub.f32 %v386, %v413
        %v429 = vsub.f32 %v387, %v419
        %v430 = vsub.f32 %v388, %v413
        %v431 = vsub.f32 %v389, %v419
        %v432 = vsub.f32 %v390, %v413
        %v433 = vsub.f32 %v391, %v419
        %v434 = vsub.f32 %v392, %v413
        %v435 = vsub.f32 %v393, %v419
        %v436 = vmul.f32 %v420, 1.442695
        %v437 = vpow.pop %v436
        %v438 = vmul.f32 %v421, 1.442695
        %v439 = vpow.pop %v438
        %v440 = vmul.f32 %v422, 1.442695
        %v441 = vpow.pop %v440
        %v442 = vmul.f32 %v423, 1.442695
        %v443 = vpow.pop %v442
        %v444 = vmul.f32 %v424, 1.442695
        %v445 = vpow.pop %v444
        %v446 = vmul.f32 %v425, 1.442695
        %v447 = vpow.pop %v446
        %v448 = vmul.f32 %v426, 1.442695
        %v449 = vpow.pop %v448
        %v450 = vmul.f32 %v427, 1.442695
        %v451 = vpow.pop %v450
        %v452 = vmul.f32 %v428, 1.442695
        %v453 = vpow.pop %v452
        %v454 = vmul.f32 %v429, 1.442695
        %v455 = vpow.pop %v454
        %v456 = vmul.f32 %v430, 1.442695
        %v457 = vpow.pop %v456
        %v458 = vmul.f32 %v431, 1.442695
        %v459 = vpow.pop %v458
        %v460 = vmul.f32 %v432, 1.442695
        %v461 = vpow.pop %v460
        %v462 = vmul.f32 %v433, 1.442695
        %v463 = vpow.pop %v462
        %v464 = vmul.f32 %v434, 1.442695
        %v465 = vpow.pop %v464
        %v466 = vmul.f32 %v435, 1.442695
        %v467 = vpow.pop %v466
        %v468 = vrot.slane %v437, 4
        %v469 = vadd.f32 %v437, %v468
        %v470 = vrot.slane %v469, 2
        %v471 = vadd.f32 %v469, %v470
        %v472 = vrot.slane %v471, 1
        %v473 = vadd.f32 %v471, %v472
        %v474 = vrot.slane %v439, 4
        %v475 = vadd.f32 %v439, %v474
        %v476 = vrot.slane %v475, 2
        %v477 = vadd.f32 %v475, %v476
        %v478 = vrot.slane %v477, 1
        %v479 = vadd.f32 %v477, %v478
        %v480 = vrot.slane %v441, 4
        %v481 = vadd.f32 %v441, %v480
        %v482 = vrot.slane %v481, 2
        %v483 = vadd.f32 %v481, %v482
        %v484 = vrot.slane %v483, 1
        %v485 = vadd.f32 %v483, %v484
        %v486 = vrot.slane %v443, 4
        %v487 = vadd.f32 %v443, %v486
        %v488 = vrot.slane %v487, 2
        %v489 = vadd.f32 %v487, %v488
        %v490 = vrot.slane %v489, 1
        %v491 = vadd.f32 %v489, %v490
        %v492 = vrot.slane %v445, 4
        %v493 = vadd.f32 %v445, %v492
        %v494 = vrot.slane %v493, 2
        %v495 = vadd.f32 %v493, %v494
        %v496 = vrot.slane %v495, 1
        %v497 = vadd.f32 %v495, %v496
        %v498 = vrot.slane %v447, 4
        %v499 = vadd.f32 %v447, %v498
        %v500 = vrot.slane %v499, 2
        %v501 = vadd.f32 %v499, %v500
        %v502 = vrot.slane %v501, 1
        %v503 = vadd.f32 %v501, %v502
        %v504 = vrot.slane %v449, 4
        %v505 = vadd.f32 %v449, %v504
        %v506 = vrot.slane %v505, 2
        %v507 = vadd.f32 %v505, %v506
        %v508 = vrot.slane %v507, 1
        %v509 = vadd.f32 %v507, %v508
        %v510 = vrot.slane %v451, 4
        %v511 = vadd.f32 %v451, %v510
        %v512 = vrot.slane %v511, 2
        %v513 = vadd.f32 %v511, %v512
        %v514 = vrot.slane %v513, 1
        %v515 = vadd.f32 %v513, %v514
        %v516 = vrot.slane %v453, 4
        %v517 = vadd.f32 %v453, %v516
        %v518 = vrot.slane %v517, 2
        %v519 = vadd.f32 %v517, %v518
        %v520 = vrot.slane %v519, 1
        %v521 = vadd.f32 %v519, %v520
        %v522 = vrot.slane %v455, 4
        %v523 = vadd.f32 %v455, %v522
        %v524 = vrot.slane %v523, 2
        %v525 = vadd.f32 %v523, %v524
        %v526 = vrot.slane %v525, 1
        %v527 = vadd.f32 %v525, %v526
        %v528 = vrot.slane %v457, 4
        %v529 = vadd.f32 %v457, %v528
        %v530 = vrot.slane %v529, 2
        %v531 = vadd.f32 %v529, %v530
        %v532 = vrot.slane %v531, 1
        %v533 = vadd.f32 %v531, %v532
        %v534 = vrot.slane %v459, 4
        %v535 = vadd.f32 %v459, %v534
        %v536 = vrot.slane %v535, 2
        %v537 = vadd.f32 %v535, %v536
        %v538 = vrot.slane %v537, 1
        %v539 = vadd.f32 %v537, %v538
        %v540 = vrot.slane %v461, 4
        %v541 = vadd.f32 %v461, %v540
        %v542 = vrot.slane %v541, 2
        %v543 = vadd.f32 %v541, %v542
        %v544 = vrot.slane %v543, 1
        %v545 = vadd.f32 %v543, %v544
        %v546 = vrot.slane %v463, 4
        %v547 = vadd.f32 %v463, %v546
        %v548 = vrot.slane %v547, 2
        %v549 = vadd.f32 %v547, %v548
        %v550 = vrot.slane %v549, 1
        %v551 = vadd.f32 %v549, %v550
        %v552 = vrot.slane %v465, 4
        %v553 = vadd.f32 %v465, %v552
        %v554 = vrot.slane %v553, 2
        %v555 = vadd.f32 %v553, %v554
        %v556 = vrot.slane %v555, 1
        %v557 = vadd.f32 %v555, %v556
        %v558 = vrot.slane %v467, 4
        %v559 = vadd.f32 %v467, %v558
        %v560 = vrot.slane %v559, 2
        %v561 = vadd.f32 %v559, %v560
        %v562 = vrot.slane %v561, 1
        %v563 = vadd.f32 %v561, %v562
        %v564 = vrcp.pop %v473
        %v565 = vrcp.pop %v479
        %v566 = vrcp.pop %v485
        %v567 = vrcp.pop %v491
        %v568 = vrcp.pop %v497
        %v569 = vrcp.pop %v503
        %v570 = vrcp.pop %v509
        %v571 = vrcp.pop %v515
        %v572 = vrcp.pop %v521
        %v573 = vrcp.pop %v527
        %v574 = vrcp.pop %v533
        %v575 = vrcp.pop %v539
        %v576 = vrcp.pop %v545
        %v577 = vrcp.pop %v551
        %v578 = vrcp.pop %v557
        %v579 = vrcp.pop %v563
        %v580 = vmul.f32 %v437, %v564
        %v581 = vmul.f32 %v439, %v565
        %v582 = vmul.f32 %v441, %v566
        %v583 = vmul.f32 %v443, %v567
        %v584 = vmul.f32 %v445, %v568
        %v585 = vmul.f32 %v447, %v569
        %v586 = vmul.f32 %v449, %v570
        %v587 = vmul.f32 %v451, %v571
        %v588 = vmul.f32 %v453, %v572
        %v589 = vmul.f32 %v455, %v573
        %v590 = vmul.f32 %v457, %v574
        %v591 = vmul.f32 %v459, %v575
        %v592 = vmul.f32 %v461, %v576
        %v593 = vmul.f32 %v463, %v577
        %v594 = vmul.f32 %v465, %v578
        %v595 = vmul.f32 %v467, %v579
        %v596 = vadd.f32 %v580, %v582
        %v597 = vadd.f32 %v596, %v584
        %v598 = vadd.f32 %v597, %v586
        %v599 = vadd.f32 %v598, %v588
        %v600 = vadd.f32 %v599, %v590
        %v601 = vadd.f32 %v600, %v592
        %v602 = vadd.f32 %v601, %v594
        %v603 = vadd.f32 %v581, %v583
        %v604 = vadd.f32 %v603, %v585
        %v605 = vadd.f32 %v604, %v587
        %v606 = vadd.f32 %v605, %v589
        %v607 = vadd.f32 %v606, %v591
        %v608 = vadd.f32 %v607, %v593
        %v609 = vadd.f32 %v608, %v595
        %v610 = vrcp.pop %v602
        %v611 = vrcp.pop %v609
        %v612 = vmul.f32 %v580, %v610
        %v613 = vmul.f32 %v581, %v611
        %v614 = vmul.f32 %v582, %v610
        %v615 = vmul.f32 %v583, %v611
        %v616 = vmul.f32 %v584, %v610
        %v617 = vmul.f32 %v585, %v611
        %v618 = vmul.f32 %v586, %v610
        %v619 = vmul.f32 %v587, %v611
        %v620 = vmul.f32 %v588, %v610
        %v621 = vmul.f32 %v589, %v611
        %v622 = vmul.f32 %v590, %v610
        %v623 = vmul.f32 %v591, %v611
        %v624 = vmul.f32 %v592, %v610
        %v625 = vmul.f32 %v593, %v611
        %v626 = vmul.f32 %v594, %v610
        %v627 = vmul.f32 %v595, %v611
        %v628 = vrot.slane %v612, 4
        %v629 = vadd.f32 %v612, %v628
        %v630 = vrot.slane %v629, 2
        %v631 = vadd.f32 %v629, %v630
        %v632 = vrot.slane %v631, 1
        %v633 = vadd.f32 %v631, %v632
        %v634 = vrot.slane %v613, 4
        %v635 = vadd.f32 %v613, %v634
        %v636 = vrot.slane %v635, 2
        %v637 = vadd.f32 %v635, %v636
        %v638 = vrot.slane %v637, 1
        %v639 = vadd.f32 %v637, %v638
        %v640 = vrot.slane %v614, 4
        %v641 = vadd.f32 %v614, %v640
        %v642 = vrot.slane %v641, 2
        %v643 = vadd.f32 %v641, %v642
        %v644 = vrot.slane %v643, 1
        %v645 = vadd.f32 %v643, %v644
        %v646 = vrot.slane %v615, 4
        %v647 = vadd.f32 %v615, %v646
        %v648 = vrot.slane %v647, 2
        %v649 = vadd.f32 %v647, %v648
        %v650 = vrot.slane %v649, 1
        %v651 = vadd.f32 %v649, %v650
        %v652 = vrot.slane %v616, 4
        %v653 = vadd.f32 %v616, %v652
        %v654 = vrot.slane %v653, 2
        %v655 = vadd.f32 %v653, %v654
        %v656 = vrot.slane %v655, 1
        %v657 = vadd.f32 %v655, %v656
        %v658 = vrot.slane %v617, 4
        %v659 = vadd.f32 %v617, %v658
        %v660 = vrot.slane %v659, 2
        %v661 = vadd.f32 %v659, %v660
        %v662 = vrot.slane %v661, 1
        %v663 = vadd.f32 %v661, %v662
        %v664 = vrot.slane %v618, 4
        %v665 = vadd.f32 %v618, %v664
        %v666 = vrot.slane %v665, 2
        %v667 = vadd.f32 %v665, %v666
        %v668 = vrot.slane %v667, 1
        %v669 = vadd.f32 %v667, %v668
        %v670 = vrot.slane %v619, 4
        %v671 = vadd.f32 %v619, %v670
        %v672 = vrot.slane %v671, 2
        %v673 = vadd.f32 %v671, %v672
        %v674 = vrot.slane %v673, 1
        %v675 = vadd.f32 %v673, %v674
        %v676 = vrot.slane %v620, 4
        %v677 = vadd.f32 %v620, %v676
        %v678 = vrot.slane %v677, 2
        %v679 = vadd.f32 %v677, %v678
        %v680 = vrot.slane %v679, 1
        %v681 = vadd.f32 %v679, %v680
        %v682 = vrot.slane %v621, 4
        %v683 = vadd.f32 %v621, %v682
        %v684 = vrot.slane %v683, 2
        %v685 = vadd.f32 %v683, %v684
        %v686 = vrot.slane %v685, 1
        %v687 = vadd.f32 %v685, %v686
        %v688 = vrot.slane %v622, 4
        %v689 = vadd.f32 %v622, %v688
        %v690 = vrot.slane %v689, 2
        %v691 = vadd.f32 %v689, %v690
        %v692 = vrot.slane %v691, 1
        %v693 = vadd.f32 %v691, %v692
        %v694 = vrot.slane %v623, 4
        %v695 = vadd.f32 %v623, %v694
        %v696 = vrot.slane %v695, 2
        %v697 = vadd.f32 %v695, %v696
        %v698 = vrot.slane %v697, 1
        %v699 = vadd.f32 %v697, %v698
        %v700 = vrot.slane %v624, 4
        %v701 = vadd.f32 %v624, %v700
        %v702 = vrot.slane %v701, 2
        %v703 = vadd.f32 %v701, %v702
        %v704 = vrot.slane %v703, 1
        %v705 = vadd.f32 %v703, %v704
        %v706 = vrot.slane %v625, 4
        %v707 = vadd.f32 %v625, %v706
        %v708 = vrot.slane %v707, 2
        %v709 = vadd.f32 %v707, %v708
        %v710 = vrot.slane %v709, 1
        %v711 = vadd.f32 %v709, %v710
        %v712 = vrot.slane %v626, 4
        %v713 = vadd.f32 %v626, %v712
        %v714 = vrot.slane %v713, 2
        %v715 = vadd.f32 %v713, %v714
        %v716 = vrot.slane %v715, 1
        %v717 = vadd.f32 %v715, %v716
        %v718 = vrot.slane %v627, 4
        %v719 = vadd.f32 %v627, %v718
        %v720 = vrot.slane %v719, 2
        %v721 = vadd.f32 %v719, %v720
        %v722 = vrot.slane %v721, 1
        %v723 = vadd.f32 %v721, %v722
        %v724 = vrcp.pop %v633
        %v725 = vrcp.pop %v639
        %v726 = vrcp.pop %v645
        %v727 = vrcp.pop %v651
        %v728 = vrcp.pop %v657
        %v729 = vrcp.pop %v663
        %v730 = vrcp.pop %v669
        %v731 = vrcp.pop %v675
        %v732 = vrcp.pop %v681
        %v733 = vrcp.pop %v687
        %v734 = vrcp.pop %v693
        %v735 = vrcp.pop %v699
        %v736 = vrcp.pop %v705
        %v737 = vrcp.pop %v711
        %v738 = vrcp.pop %v717
        %v739 = vrcp.pop %v723
        %v740 = vmul.f32 %v612, %v724
        %v741 = vmul.f32 %v613, %v725
        %v742 = vmul.f32 %v614, %v726
        %v743 = vmul.f32 %v615, %v727
        %v744 = vmul.f32 %v616, %v728
        %v745 = vmul.f32 %v617, %v729
        %v746 = vmul.f32 %v618, %v730
        %v747 = vmul.f32 %v619, %v731
        %v748 = vmul.f32 %v620, %v732
        %v749 = vmul.f32 %v621, %v733
        %v750 = vmul.f32 %v622, %v734
        %v751 = vmul.f32 %v623, %v735
        %v752 = vmul.f32 %v624, %v736
        %v753 = vmul.f32 %v625, %v737
        %v754 = vmul.f32 %v626, %v738
        %v755 = vmul.f32 %v627, %v739
        %v756 = vadd.f32 %v740, %v742
        %v757 = vadd.f32 %v756, %v744
        %v758 = vadd.f32 %v757, %v746
        %v759 = vadd.f32 %v758, %v748
        %v760 = vadd.f32 %v759, %v750
        %v761 = vadd.f32 %v760, %v752
        %v762 = vadd.f32 %v761, %v754
        %v763 = vadd.f32 %v741, %v743
        %v764 = vadd.f32 %v763, %v745
        %v765 = vadd.f32 %v764, %v747
        %v766 = vadd.f32 %v765, %v749
        %v767 = vadd.f32 %v766, %v751
        %v768 = vadd.f32 %v767, %v753
        %v769 = vadd.f32 %v768, %v755
        %v770 = vrcp.pop %v762
        %v771 = vrcp.pop %v769
        %v772 = vmul.f32 %v740, %v770
        %v773 = vmul.f32 %v741, %v771
        %v774 = vmul.f32 %v742, %v770
        %v775 = vmul.f32 %v743, %v771
        %v776 = vmul.f32 %v744, %v770
        %v777 = vmul.f32 %v745, %v771
        %v778 = vmul.f32 %v746, %v770
        %v779 = vmul.f32 %v747, %v771
        %v780 = vmul.f32 %v748, %v770
        %v781 = vmul.f32 %v749, %v771
        %v782 = vmul.f32 %v750, %v770
        %v783 = vmul.f32 %v751, %v771
        %v784 = vmul.f32 %v752, %v770
        %v785 = vmul.f32 %v753, %v771
        %v786 = vmul.f32 %v754, %v770
        %v787 = vmul.f32 %v755, %v771
        %v788 = vrot.slane %v772, 4
        %v789 = vadd.f32 %v772, %v788
        %v790 = vrot.slane %v789, 2
        %v791 = vadd.f32 %v789, %v790
        %v792 = vrot.slane %v791, 1
        %v793 = vadd.f32 %v791, %v792
        %v794 = vrot.slane %v773, 4
        %v795 = vadd.f32 %v773, %v794
        %v796 = vrot.slane %v795, 2
        %v797 = vadd.f32 %v795, %v796
        %v798 = vrot.slane %v797, 1
        %v799 = vadd.f32 %v797, %v798
        %v800 = vrot.slane %v774, 4
        %v801 = vadd.f32 %v774, %v800
        %v802 = vrot.slane %v801, 2
        %v803 = vadd.f32 %v801, %v802
        %v804 = vrot.slane %v803, 1
        %v805 = vadd.f32 %v803, %v804
        %v806 = vrot.slane %v775, 4
        %v807 = vadd.f32 %v775, %v806
        %v808 = vrot.slane %v807, 2
        %v809 = vadd.f32 %v807, %v808
        %v810 = vrot.slane %v809, 1
        %v811 = vadd.f32 %v809, %v810
        %v812 = vrot.slane %v776, 4
        %v813 = vadd.f32 %v776, %v812
        %v814 = vrot.slane %v813, 2
        %v815 = vadd.f32 %v813, %v814
        %v816 = vrot.slane %v815, 1
        %v817 = vadd.f32 %v815, %v816
        %v818 = vrot.slane %v777, 4
        %v819 = vadd.f32 %v777, %v818
        %v820 = vrot.slane %v819, 2
        %v821 = vadd.f32 %v819, %v820
        %v822 = vrot.slane %v821, 1
        %v823 = vadd.f32 %v821, %v822
        %v824 = vrot.slane %v778, 4
        %v825 = vadd.f32 %v778, %v824
        %v826 = vrot.slane %v825, 2
        %v827 = vadd.f32 %v825, %v826
        %v828 = vrot.slane %v827, 1
        %v829 = vadd.f32 %v827, %v828
        %v830 = vrot.slane %v779, 4
        %v831 = vadd.f32 %v779, %v830
        %v832 = vrot.slane %v831, 2
        %v833 = vadd.f32 %v831, %v832
        %v834 = vrot.slane %v833, 1
        %v835 = vadd.f32 %v833, %v834
        %v836 = vrot.slane %v780, 4
        %v837 = vadd.f32 %v780, %v836
        %v838 = vrot.slane %v837, 2
        %v839 = vadd.f32 %v837, %v838
        %v840 = vrot.slane %v839, 1
        %v841 = vadd.f32 %v839, %v840
        %v842 = vrot.slane %v781, 4
        %v843 = vadd.f32 %v781, %v842
        %v844 = vrot.slane %v843, 2
        %v845 = vadd.f32 %v843, %v844
        %v846 = vrot.slane %v845, 1
        %v847 = vadd.f32 %v845, %v846
        %v848 = vrot.slane %v782, 4
        %v849 = vadd.f32 %v782, %v848
        %v850 = vrot.slane %v849, 2
        %v851 = vadd.f32 %v849, %v850
        %v852 = vrot.slane %v851, 1
        %v853 = vadd.f32 %v851, %v852
        %v854 = vrot.slane %v783, 4
        %v855 = vadd.f32 %v783, %v854
        %v856 = vrot.slane %v855, 2
        %v857 = vadd.f32 %v855, %v856
        %v858 = vrot.slane %v857, 1
        %v859 = vadd.f32 %v857, %v858
        %v860 = vrot.slane %v784, 4
        %v861 = vadd.f32 %v784, %v860
        %v862 = vrot.slane %v861, 2
        %v863 = vadd.f32 %v861, %v862
        %v864 = vrot.slane %v863, 1
        %v865 = vadd.f32 %v863, %v864
        %v866 = vrot.slane %v785, 4
        %v867 = vadd.f32 %v785, %v866
        %v868 = vrot.slane %v867, 2
        %v869 = vadd.f32 %v867, %v868
        %v870 = vrot.slane %v869, 1
        %v871 = vadd.f32 %v869, %v870
        %v872 = vrot.slane %v786, 4
        %v873 = vadd.f32 %v786, %v872
        %v874 = vrot.slane %v873, 2
        %v875 = vadd.f32 %v873, %v874
        %v876 = vrot.slane %v875, 1
        %v877 = vadd.f32 %v875, %v876
        %v878 = vrot.slane %v787, 4
        %v879 = vadd.f32 %v787, %v878
        %v880 = vrot.slane %v879, 2
        %v881 = vadd.f32 %v879, %v880
        %v882 = vrot.slane %v881, 1
        %v883 = vadd.f32 %v881, %v882
        %v884 = vrcp.pop %v793
        %v885 = vrcp.pop %v799
        %v886 = vrcp.pop %v805
        %v887 = vrcp.pop %v811
        %v888 = vrcp.pop %v817
        %v889 = vrcp.pop %v823
        %v890 = vrcp.pop %v829
        %v891 = vrcp.pop %v835
        %v892 = vrcp.pop %v841
        %v893 = vrcp.pop %v847
        %v894 = vrcp.pop %v853
        %v895 = vrcp.pop %v859
        %v896 = vrcp.pop %v865
        %v897 = vrcp.pop %v871
        %v898 = vrcp.pop %v877
        %v899 = vrcp.pop %v883
        %v900 = vmul.f32 %v772, %v884
        %v901 = vmul.f32 %v773, %v885
        %v902 = vmul.f32 %v774, %v886
        %v903 = vmul.f32 %v775, %v887
        %v904 = vmul.f32 %v776, %v888
        %v905 = vmul.f32 %v777, %v889
        %v906 = vmul.f32 %v778, %v890
        %v907 = vmul.f32 %v779, %v891
        %v908 = vmul.f32 %v780, %v892
        %v909 = vmul.f32 %v781, %v893
        %v910 = vmul.f32 %v782, %v894
        %v911 = vmul.f32 %v783, %v895
        %v912 = vmul.f32 %v784, %v896
        %v913 = vmul.f32 %v785, %v897
        %v914 = vmul.f32 %v786, %v898
        %v915 = vmul.f32 %v787, %v899
        %v916 = vadd.f32 %v900, %v902
        %v917 = vadd.f32 %v916, %v904
        %v918 = vadd.f32 %v917, %v906
        %v919 = vadd.f32 %v918, %v908
        %v920 = vadd.f32 %v919, %v910
        %v921 = vadd.f32 %v920, %v912
        %v922 = vadd.f32 %v921, %v914
        %v923 = vadd.f32 %v901, %v903
        %v924 = vadd.f32 %v923, %v905
        %v925 = vadd.f32 %v924, %v907
        %v926 = vadd.f32 %v925, %v909
        %v927 = vadd.f32 %v926, %v911
        %v928 = vadd.f32 %v927, %v913
        %v929 = vadd.f32 %v928, %v915
        %v930 = vrcp.pop %v922
        %v931 = vrcp.pop %v929
        %v932 = vmul.f32 %v900, %v930
        %v933 = vmul.f32 %v901, %v931
        %v934 = vmul.f32 %v902, %v930
        %v935 = vmul.f32 %v903, %v931
        %v936 = vmul.f32 %v904, %v930
        %v937 = vmul.f32 %v905, %v931
        %v938 = vmul.f32 %v906, %v930
        %v939 = vmul.f32 %v907, %v931
        %v940 = vmul.f32 %v908, %v930
        %v941 = vmul.f32 %v909, %v931
        %v942 = vmul.f32 %v910, %v930
        %v943 = vmul.f32 %v911, %v931
        %v944 = vmul.f32 %v912, %v930
        %v945 = vmul.f32 %v913, %v931
        %v946 = vmul.f32 %v914, %v930
        %v947 = vmul.f32 %v915, %v931
        %v948 = vrot.slane %v932, 4
        %v949 = vadd.f32 %v932, %v948
        %v950 = vrot.slane %v949, 2
        %v951 = vadd.f32 %v949, %v950
        %v952 = vrot.slane %v951, 1
        %v953 = vadd.f32 %v951, %v952
        %v954 = vrot.slane %v933, 4
        %v955 = vadd.f32 %v933, %v954
        %v956 = vrot.slane %v955, 2
        %v957 = vadd.f32 %v955, %v956
        %v958 = vrot.slane %v957, 1
        %v959 = vadd.f32 %v957, %v958
        %v960 = vrot.slane %v934, 4
        %v961 = vadd.f32 %v934, %v960
        %v962 = vrot.slane %v961, 2
        %v963 = vadd.f32 %v961, %v962
        %v964 = vrot.slane %v963, 1
        %v965 = vadd.f32 %v963, %v964
        %v966 = vrot.slane %v935, 4
        %v967 = vadd.f32 %v935, %v966
        %v968 = vrot.slane %v967, 2
        %v969 = vadd.f32 %v967, %v968
        %v970 = vrot.slane %v969, 1
        %v971 = vadd.f32 %v969, %v970
        %v972 = vrot.slane %v936, 4
        %v973 = vadd.f32 %v936, %v972
        %v974 = vrot.slane %v973, 2
        %v975 = vadd.f32 %v973, %v974
        %v976 = vrot.slane %v975, 1
        %v977 = vadd.f32 %v975, %v976
        %v978 = vrot.slane %v937, 4
        %v979 = vadd.f32 %v937, %v978
        %v980 = vrot.slane %v979, 2
        %v981 = vadd.f32 %v979, %v980
        %v982 = vrot.slane %v981, 1
        %v983 = vadd.f32 %v981, %v982
        %v984 = vrot.slane %v938, 4
        %v985 = vadd.f32 %v938, %v984
        %v986 = vrot.slane %v985, 2
        %v987 = vadd.f32 %v985, %v986
        %v988 = vrot.slane %v987, 1
        %v989 = vadd.f32 %v987, %v988
        %v990 = vrot.slane %v939, 4
        %v991 = vadd.f32 %v939, %v990
        %v992 = vrot.slane %v991, 2
        %v993 = vadd.f32 %v991, %v992
        %v994 = vrot.slane %v993, 1
        %v995 = vadd.f32 %v993, %v994
        %v996 = vrot.slane %v940, 4
        %v997 = vadd.f32 %v940, %v996
        %v998 = vrot.slane %v997, 2
        %v999 = vadd.f32 %v997, %v998
        %v1000 = vrot.slane %v999, 1
        %v1001 = vadd.f32 %v999, %v1000
        %v1002 = vrot.slane %v941, 4
        %v1003 = vadd.f32 %v941, %v1002
        %v1004 = vrot.slane %v1003, 2
        %v1005 = vadd.f32 %v1003, %v1004
        %v1006 = vrot.slane %v1005, 1
        %v1007 = vadd.f32 %v1005, %v1006
        %v1008 = vrot.slane %v942, 4
        %v1009 = vadd.f32 %v942, %v1008
        %v1010 = vrot.slane %v1009, 2
        %v1011 = vadd.f32 %v1009, %v1010
        %v1012 = vrot.slane %v1011, 1
        %v1013 = vadd.f32 %v1011, %v1012
        %v1014 = vrot.slane %v943, 4
        %v1015 = vadd.f32 %v943, %v1014
        %v1016 = vrot.slane %v1015, 2
        %v1017 = vadd.f32 %v1015, %v1016
        %v1018 = vrot.slane %v1017, 1
        %v1019 = vadd.f32 %v1017, %v1018
        %v1020 = vrot.slane %v944, 4
        %v1021 = vadd.f32 %v944, %v1020
        %v1022 = vrot.slane %v1021, 2
        %v1023 = vadd.f32 %v1021, %v1022
        %v1024 = vrot.slane %v1023, 1
        %v1025 = vadd.f32 %v1023, %v1024
        %v1026 = vrot.slane %v945, 4
        %v1027 = vadd.f32 %v945, %v1026
        %v1028 = vrot.slane %v1027, 2
        %v1029 = vadd.f32 %v1027, %v1028
        %v1030 = vrot.slane %v1029, 1
        %v1031 = vadd.f32 %v1029, %v1030
        %v1032 = vrot.slane %v946, 4
        %v1033 = vadd.f32 %v946, %v1032
        %v1034 = vrot.slane %v1033, 2
        %v1035 = vadd.f32 %v1033, %v1034
        %v1036 = vrot.slane %v1035, 1
        %v1037 = vadd.f32 %v1035, %v1036
        %v1038 = vrot.slane %v947, 4
        %v1039 = vadd.f32 %v947, %v1038
        %v1040 = vrot.slane %v1039, 2
        %v1041 = vadd.f32 %v1039, %v1040
        %v1042 = vrot.slane %v1041, 1
        %v1043 = vadd.f32 %v1041, %v1042
        %v1044 = vrcp.pop %v953
        %v1045 = vrcp.pop %v959
        %v1046 = vrcp.pop %v965
        %v1047 = vrcp.pop %v971
        %v1048 = vrcp.pop %v977
        %v1049 = vrcp.pop %v983
        %v1050 = vrcp.pop %v989
        %v1051 = vrcp.pop %v995
        %v1052 = vrcp.pop %v1001
        %v1053 = vrcp.pop %v1007
        %v1054 = vrcp.pop %v1013
        %v1055 = vrcp.pop %v1019
        %v1056 = vrcp.pop %v1025
        %v1057 = vrcp.pop %v1031
        %v1058 = vrcp.pop %v1037
        %v1059 = vrcp.pop %v1043
        %v1060 = vmul.f32 %v932, %v1044
        %v1061 = vmul.f32 %v933, %v1045
        %v1062 = vmul.f32 %v934, %v1046
        %v1063 = vmul.f32 %v935, %v1047
        %v1064 = vmul.f32 %v936, %v1048
        %v1065 = vmul.f32 %v937, %v1049
        %v1066 = vmul.f32 %v938, %v1050
        %v1067 = vmul.f32 %v939, %v1051
        %v1068 = vmul.f32 %v940, %v1052
        %v1069 = vmul.f32 %v941, %v1053
        %v1070 = vmul.f32 %v942, %v1054
        %v1071 = vmul.f32 %v943, %v1055
        %v1072 = vmul.f32 %v944, %v1056
        %v1073 = vmul.f32 %v945, %v1057
        %v1074 = vmul.f32 %v946, %v1058
        %v1075 = vmul.f32 %v947, %v1059
        %v1076 = vadd.f32 %v1060, %v1062
        %v1077 = vadd.f32 %v1076, %v1064
        %v1078 = vadd.f32 %v1077, %v1066
        %v1079 = vadd.f32 %v1078, %v1068
        %v1080 = vadd.f32 %v1079, %v1070
        %v1081 = vadd.f32 %v1080, %v1072
        %v1082 = vadd.f32 %v1081, %v1074
        %v1083 = vadd.f32 %v1061, %v1063
        %v1084 = vadd.f32 %v1083, %v1065
        %v1085 = vadd.f32 %v1084, %v1067
        %v1086 = vadd.f32 %v1085, %v1069
        %v1087 = vadd.f32 %v1086, %v1071
        %v1088 = vadd.f32 %v1087, %v1073
        %v1089 = vadd.f32 %v1088, %v1075
        %v1090 = vrcp.pop %v1082
        %v1091 = vrcp.pop %v1089
        %v1092 = vmul.f32 %v1060, %v1090
        %v1093 = vmul.f32 %v1061, %v1091
        %v1094 = vmul.f32 %v1062, %v1090
        %v1095 = vmul.f32 %v1063, %v1091
        %v1096 = vmul.f32 %v1064, %v1090
        %v1097 = vmul.f32 %v1065, %v1091
        %v1098 = vmul.f32 %v1066, %v1090
        %v1099 = vmul.f32 %v1067, %v1091
        %v1100 = vmul.f32 %v1068, %v1090
        %v1101 = vmul.f32 %v1069, %v1091
        %v1102 = vmul.f32 %v1070, %v1090
        %v1103 = vmul.f32 %v1071, %v1091
        %v1104 = vmul.f32 %v1072, %v1090
        %v1105 = vmul.f32 %v1073, %v1091
        %v1106 = vmul.f32 %v1074, %v1090
        %v1107 = vmul.f32 %v1075, %v1091
        %v1108 = vrot.slane %v1092, 4
        %v1109 = vadd.f32 %v1092, %v1108
        %v1110 = vrot.slane %v1109, 2
        %v1111 = vadd.f32 %v1109, %v1110
        %v1112 = vrot.slane %v1111, 1
        %v1113 = vadd.f32 %v1111, %v1112
        %v1114 = vrot.slane %v1093, 4
        %v1115 = vadd.f32 %v1093, %v1114
        %v1116 = vrot.slane %v1115, 2
        %v1117 = vadd.f32 %v1115, %v1116
        %v1118 = vrot.slane %v1117, 1
        %v1119 = vadd.f32 %v1117, %v1118
        %v1120 = vrot.slane %v1094, 4
        %v1121 = vadd.f32 %v1094, %v1120
        %v1122 = vrot.slane %v1121, 2
        %v1123 = vadd.f32 %v1121, %v1122
        %v1124 = vrot.slane %v1123, 1
        %v1125 = vadd.f32 %v1123, %v1124
        %v1126 = vrot.slane %v1095, 4
        %v1127 = vadd.f32 %v1095, %v1126
        %v1128 = vrot.slane %v1127, 2
        %v1129 = vadd.f32 %v1127, %v1128
        %v1130 = vrot.slane %v1129, 1
        %v1131 = vadd.f32 %v1129, %v1130
        %v1132 = vrot.slane %v1096, 4
        %v1133 = vadd.f32 %v1096, %v1132
        %v1134 = vrot.slane %v1133, 2
        %v1135 = vadd.f32 %v1133, %v1134
        %v1136 = vrot.slane %v1135, 1
        %v1137 = vadd.f32 %v1135, %v1136
        %v1138 = vrot.slane %v1097, 4
        %v1139 = vadd.f32 %v1097, %v1138
        %v1140 = vrot.slane %v1139, 2
        %v1141 = vadd.f32 %v1139, %v1140
        %v1142 = vrot.slane %v1141, 1
        %v1143 = vadd.f32 %v1141, %v1142
        %v1144 = vrot.slane %v1098, 4
        %v1145 = vadd.f32 %v1098, %v1144
        %v1146 = vrot.slane %v1145, 2
        %v1147 = vadd.f32 %v1145, %v1146
        %v1148 = vrot.slane %v1147, 1
        %v1149 = vadd.f32 %v1147, %v1148
        %v1150 = vrot.slane %v1099, 4
        %v1151 = vadd.f32 %v1099, %v1150
        %v1152 = vrot.slane %v1151, 2
        %v1153 = vadd.f32 %v1151, %v1152
        %v1154 = vrot.slane %v1153, 1
        %v1155 = vadd.f32 %v1153, %v1154
        %v1156 = vrot.slane %v1100, 4
        %v1157 = vadd.f32 %v1100, %v1156
        %v1158 = vrot.slane %v1157, 2
        %v1159 = vadd.f32 %v1157, %v1158
        %v1160 = vrot.slane %v1159, 1
        %v1161 = vadd.f32 %v1159, %v1160
        %v1162 = vrot.slane %v1101, 4
        %v1163 = vadd.f32 %v1101, %v1162
        %v1164 = vrot.slane %v1163, 2
        %v1165 = vadd.f32 %v1163, %v1164
        %v1166 = vrot.slane %v1165, 1
        %v1167 = vadd.f32 %v1165, %v1166
        %v1168 = vrot.slane %v1102, 4
        %v1169 = vadd.f32 %v1102, %v1168
        %v1170 = vrot.slane %v1169, 2
        %v1171 = vadd.f32 %v1169, %v1170
        %v1172 = vrot.slane %v1171, 1
        %v1173 = vadd.f32 %v1171, %v1172
        %v1174 = vrot.slane %v1103, 4
        %v1175 = vadd.f32 %v1103, %v1174
        %v1176 = vrot.slane %v1175, 2
        %v1177 = vadd.f32 %v1175, %v1176
        %v1178 = vrot.slane %v1177, 1
        %v1179 = vadd.f32 %v1177, %v1178
        %v1180 = vrot.slane %v1104, 4
        %v1181 = vadd.f32 %v1104, %v1180
        %v1182 = vrot.slane %v1181, 2
        %v1183 = vadd.f32 %v1181, %v1182
        %v1184 = vrot.slane %v1183, 1
        %v1185 = vadd.f32 %v1183, %v1184
        %v1186 = vrot.slane %v1105, 4
        %v1187 = vadd.f32 %v1105, %v1186
        %v1188 = vrot.slane %v1187, 2
        %v1189 = vadd.f32 %v1187, %v1188
        %v1190 = vrot.slane %v1189, 1
        %v1191 = vadd.f32 %v1189, %v1190
        %v1192 = vrot.slane %v1106, 4
        %v1193 = vadd.f32 %v1106, %v1192
        %v1194 = vrot.slane %v1193, 2
        %v1195 = vadd.f32 %v1193, %v1194
        %v1196 = vrot.slane %v1195, 1
        %v1197 = vadd.f32 %v1195, %v1196
        %v1198 = vrot.slane %v1107, 4
        %v1199 = vadd.f32 %v1107, %v1198
        %v1200 = vrot.slane %v1199, 2
        %v1201 = vadd.f32 %v1199, %v1200
        %v1202 = vrot.slane %v1201, 1
        %v1203 = vadd.f32 %v1201, %v1202
        %v1204 = vrcp.pop %v1113
        %v1205 = vrcp.pop %v1119
        %v1206 = vrcp.pop %v1125
        %v1207 = vrcp.pop %v1131
        %v1208 = vrcp.pop %v1137
        %v1209 = vrcp.pop %v1143
        %v1210 = vrcp.pop %v1149
        %v1211 = vrcp.pop %v1155
        %v1212 = vrcp.pop %v1161
        %v1213 = vrcp.pop %v1167
        %v1214 = vrcp.pop %v1173
        %v1215 = vrcp.pop %v1179
        %v1216 = vrcp.pop %v1185
        %v1217 = vrcp.pop %v1191
        %v1218 = vrcp.pop %v1197
        %v1219 = vrcp.pop %v1203
        %v1220 = vmul.f32 %v1092, %v1204
        %v1221 = vmul.f32 %v1093, %v1205
        %v1222 = vmul.f32 %v1094, %v1206
        %v1223 = vmul.f32 %v1095, %v1207
        %v1224 = vmul.f32 %v1096, %v1208
        %v1225 = vmul.f32 %v1097, %v1209
        %v1226 = vmul.f32 %v1098, %v1210
        %v1227 = vmul.f32 %v1099, %v1211
        %v1228 = vmul.f32 %v1100, %v1212
        %v1229 = vmul.f32 %v1101, %v1213
        %v1230 = vmul.f32 %v1102, %v1214
        %v1231 = vmul.f32 %v1103, %v1215
        %v1232 = vmul.f32 %v1104, %v1216
        %v1233 = vmul.f32 %v1105, %v1217
        %v1234 = vmul.f32 %v1106, %v1218
        %v1235 = vmul.f32 %v1107, %v1219
        %v1236 = vadd.f32 %v1220, %v1222
        %v1237 = vadd.f32 %v1236, %v1224
        %v1238 = vadd.f32 %v1237, %v1226
        %v1239 = vadd.f32 %v1238, %v1228
        %v1240 = vadd.f32 %v1239, %v1230
        %v1241 = vadd.f32 %v1240, %v1232
        %v1242 = vadd.f32 %v1241, %v1234
        %v1243 = vadd.f32 %v1221, %v1223
        %v1244 = vadd.f32 %v1243, %v1225
        %v1245 = vadd.f32 %v1244, %v1227
        %v1246 = vadd.f32 %v1245, %v1229
        %v1247 = vadd.f32 %v1246, %v1231
        %v1248 = vadd.f32 %v1247, %v1233
        %v1249 = vadd.f32 %v1248, %v1235
        %v1250 = vrcp.pop %v1242
        %v1251 = vrcp.pop %v1249
        %v1252 = vmul.f32 %v1220, %v1250
        %v1253 = vmul.f32 %v1221, %v1251
        %v1254 = vmul.f32 %v1222, %v1250
        %v1255 = vmul.f32 %v1223, %v1251
        %v1256 = vmul.f32 %v1224, %v1250
        %v1257 = vmul.f32 %v1225, %v1251
        %v1258 = vmul.f32 %v1226, %v1250
        %v1259 = vmul.f32 %v1227, %v1251
        %v1260 = vmul.f32 %v1228, %v1250
        %v1261 = vmul.f32 %v1229, %v1251
        %v1262 = vmul.f32 %v1230, %v1250
        %v1263 = vmul.f32 %v1231, %v1251
        %v1264 = vmul.f32 %v1232, %v1250
        %v1265 = vmul.f32 %v1233, %v1251
        %v1266 = vmul.f32 %v1234, %v1250
        %v1267 = vmul.f32 %v1235, %v1251
        %v1268 = vrot.slane %v1252, 4
        %v1269 = vadd.f32 %v1252, %v1268
        %v1270 = vrot.slane %v1269, 2
        %v1271 = vadd.f32 %v1269, %v1270
        %v1272 = vrot.slane %v1271, 1
        %v1273 = vadd.f32 %v1271, %v1272
        %v1274 = vrot.slane %v1253, 4
        %v1275 = vadd.f32 %v1253, %v1274
        %v1276 = vrot.slane %v1275, 2
        %v1277 = vadd.f32 %v1275, %v1276
        %v1278 = vrot.slane %v1277, 1
        %v1279 = vadd.f32 %v1277, %v1278
        %v1280 = vrot.slane %v1254, 4
        %v1281 = vadd.f32 %v1254, %v1280
        %v1282 = vrot.slane %v1281, 2
        %v1283 = vadd.f32 %v1281, %v1282
        %v1284 = vrot.slane %v1283, 1
        %v1285 = vadd.f32 %v1283, %v1284
        %v1286 = vrot.slane %v1255, 4
        %v1287 = vadd.f32 %v1255, %v1286
        %v1288 = vrot.slane %v1287, 2
        %v1289 = vadd.f32 %v1287, %v1288
        %v1290 = vrot.slane %v1289, 1
        %v1291 = vadd.f32 %v1289, %v1290
        %v1292 = vrot.slane %v1256, 4
        %v1293 = vadd.f32 %v1256, %v1292
        %v1294 = vrot.slane %v1293, 2
        %v1295 = vadd.f32 %v1293, %v1294
        %v1296 = vrot.slane %v1295, 1
        %v1297 = vadd.f32 %v1295, %v1296
        %v1298 = vrot.slane %v1257, 4
        %v1299 = vadd.f32 %v1257, %v1298
        %v1300 = vrot.slane %v1299, 2
        %v1301 = vadd.f32 %v1299, %v1300
        %v1302 = vrot.slane %v1301, 1
        %v1303 = vadd.f32 %v1301, %v1302
        %v1304 = vrot.slane %v1258, 4
        %v1305 = vadd.f32 %v1258, %v1304
        %v1306 = vrot.slane %v1305, 2
        %v1307 = vadd.f32 %v1305, %v1306
        %v1308 = vrot.slane %v1307, 1
        %v1309 = vadd.f32 %v1307, %v1308
        %v1310 = vrot.slane %v1259, 4
        %v1311 = vadd.f32 %v1259, %v1310
        %v1312 = vrot.slane %v1311, 2
        %v1313 = vadd.f32 %v1311, %v1312
        %v1314 = vrot.slane %v1313, 1
        %v1315 = vadd.f32 %v1313, %v1314
        %v1316 = vrot.slane %v1260, 4
        %v1317 = vadd.f32 %v1260, %v1316
        %v1318 = vrot.slane %v1317, 2
        %v1319 = vadd.f32 %v1317, %v1318
        %v1320 = vrot.slane %v1319, 1
        %v1321 = vadd.f32 %v1319, %v1320
        %v1322 = vrot.slane %v1261, 4
        %v1323 = vadd.f32 %v1261, %v1322
        %v1324 = vrot.slane %v1323, 2
        %v1325 = vadd.f32 %v1323, %v1324
        %v1326 = vrot.slane %v1325, 1
        %v1327 = vadd.f32 %v1325, %v1326
        %v1328 = vrot.slane %v1262, 4
        %v1329 = vadd.f32 %v1262, %v1328
        %v1330 = vrot.slane %v1329, 2
        %v1331 = vadd.f32 %v1329, %v1330
        %v1332 = vrot.slane %v1331, 1
        %v1333 = vadd.f32 %v1331, %v1332
        %v1334 = vrot.slane %v1263, 4
        %v1335 = vadd.f32 %v1263, %v1334
        %v1336 = vrot.slane %v1335, 2
        %v1337 = vadd.f32 %v1335, %v1336
        %v1338 = vrot.slane %v1337, 1
        %v1339 = vadd.f32 %v1337, %v1338
        %v1340 = vrot.slane %v1264, 4
        %v1341 = vadd.f32 %v1264, %v1340
        %v1342 = vrot.slane %v1341, 2
        %v1343 = vadd.f32 %v1341, %v1342
        %v1344 = vrot.slane %v1343, 1
        %v1345 = vadd.f32 %v1343, %v1344
        %v1346 = vrot.slane %v1265, 4
        %v1347 = vadd.f32 %v1265, %v1346
        %v1348 = vrot.slane %v1347, 2
        %v1349 = vadd.f32 %v1347, %v1348
        %v1350 = vrot.slane %v1349, 1
        %v1351 = vadd.f32 %v1349, %v1350
        %v1352 = vrot.slane %v1266, 4
        %v1353 = vadd.f32 %v1266, %v1352
        %v1354 = vrot.slane %v1353, 2
        %v1355 = vadd.f32 %v1353, %v1354
        %v1356 = vrot.slane %v1355, 1
        %v1357 = vadd.f32 %v1355, %v1356
        %v1358 = vrot.slane %v1267, 4
        %v1359 = vadd.f32 %v1267, %v1358
        %v1360 = vrot.slane %v1359, 2
        %v1361 = vadd.f32 %v1359, %v1360
        %v1362 = vrot.slane %v1361, 1
        %v1363 = vadd.f32 %v1361, %v1362
        %v1364 = vrcp.pop %v1273
        %v1365 = vrcp.pop %v1279
        %v1366 = vrcp.pop %v1285
        %v1367 = vrcp.pop %v1291
        %v1368 = vrcp.pop %v1297
        %v1369 = vrcp.pop %v1303
        %v1370 = vrcp.pop %v1309
        %v1371 = vrcp.pop %v1315
        %v1372 = vrcp.pop %v1321
        %v1373 = vrcp.pop %v1327
        %v1374 = vrcp.pop %v1333
        %v1375 = vrcp.pop %v1339
        %v1376 = vrcp.pop %v1345
        %v1377 = vrcp.pop %v1351
        %v1378 = vrcp.pop %v1357
        %v1379 = vrcp.pop %v1363
        %v1380 = vmul.f32 %v1252, %v1364
        %v1381 = vmul.f32 %v1253, %v1365
        %v1382 = vmul.f32 %v1254, %v1366
        %v1383 = vmul.f32 %v1255, %v1367
        %v1384 = vmul.f32 %v1256, %v1368
        %v1385 = vmul.f32 %v1257, %v1369
        %v1386 = vmul.f32 %v1258, %v1370
        %v1387 = vmul.f32 %v1259, %v1371
        %v1388 = vmul.f32 %v1260, %v1372
        %v1389 = vmul.f32 %v1261, %v1373
        %v1390 = vmul.f32 %v1262, %v1374
        %v1391 = vmul.f32 %v1263, %v1375
        %v1392 = vmul.f32 %v1264, %v1376
        %v1393 = vmul.f32 %v1265, %v1377
        %v1394 = vmul.f32 %v1266, %v1378
        %v1395 = vmul.f32 %v1267, %v1379
        %v1396 = vadd.f32 %v1380, %v1382
        %v1397 = vadd.f32 %v1396, %v1384
        %v1398 = vadd.f32 %v1397, %v1386
        %v1399 = vadd.f32 %v1398, %v1388
        %v1400 = vadd.f32 %v1399, %v1390
        %v1401 = vadd.f32 %v1400, %v1392
        %v1402 = vadd.f32 %v1401, %v1394
        %v1403 = vadd.f32 %v1381, %v1383
        %v1404 = vadd.f32 %v1403, %v1385
        %v1405 = vadd.f32 %v1404, %v1387
        %v1406 = vadd.f32 %v1405, %v1389
        %v1407 = vadd.f32 %v1406, %v1391
        %v1408 = vadd.f32 %v1407, %v1393
        %v1409 = vadd.f32 %v1408, %v1395
        %v1410 = vrcp.pop %v1402
        %v1411 = vrcp.pop %v1409
        %v1412 = vmul.f32 %v1380, %v1410
        %v1413 = vmul.f32 %v1381, %v1411
        %v1414 = vmul.f32 %v1382, %v1410
        %v1415 = vmul.f32 %v1383, %v1411
        %v1416 = vmul.f32 %v1384, %v1410
        %v1417 = vmul.f32 %v1385, %v1411
        %v1418 = vmul.f32 %v1386, %v1410
        %v1419 = vmul.f32 %v1387, %v1411
        %v1420 = vmul.f32 %v1388, %v1410
        %v1421 = vmul.f32 %v1389, %v1411
        %v1422 = vmul.f32 %v1390, %v1410
        %v1423 = vmul.f32 %v1391, %v1411
        %v1424 = vmul.f32 %v1392, %v1410
        %v1425 = vmul.f32 %v1393, %v1411
        %v1426 = vmul.f32 %v1394, %v1410
        %v1427 = vmul.f32 %v1395, %v1411
        %v1428 = vrot.slane %v1412, 4
        %v1429 = vadd.f32 %v1412, %v1428
        %v1430 = vrot.slane %v1429, 2
        %v1431 = vadd.f32 %v1429, %v1430
        %v1432 = vrot.slane %v1431, 1
        %v1433 = vadd.f32 %v1431, %v1432
        %v1434 = vrot.slane %v1413, 4
        %v1435 = vadd.f32 %v1413, %v1434
        %v1436 = vrot.slane %v1435, 2
        %v1437 = vadd.f32 %v1435, %v1436
        %v1438 = vrot.slane %v1437, 1
        %v1439 = vadd.f32 %v1437, %v1438
        %v1440 = vrot.slane %v1414, 4
        %v1441 = vadd.f32 %v1414, %v1440
        %v1442 = vrot.slane %v1441, 2
        %v1443 = vadd.f32 %v1441, %v1442
        %v1444 = vrot.slane %v1443, 1
        %v1445 = vadd.f32 %v1443, %v1444
        %v1446 = vrot.slane %v1415, 4
        %v1447 = vadd.f32 %v1415, %v1446
        %v1448 = vrot.slane %v1447, 2
        %v1449 = vadd.f32 %v1447, %v1448
        %v1450 = vrot.slane %v1449, 1
        %v1451 = vadd.f32 %v1449, %v1450
        %v1452 = vrot.slane %v1416, 4
        %v1453 = vadd.f32 %v1416, %v1452
        %v1454 = vrot.slane %v1453, 2
        %v1455 = vadd.f32 %v1453, %v1454
        %v1456 = vrot.slane %v1455, 1
        %v1457 = vadd.f32 %v1455, %v1456
        %v1458 = vrot.slane %v1417, 4
        %v1459 = vadd.f32 %v1417, %v1458
        %v1460 = vrot.slane %v1459, 2
        %v1461 = vadd.f32 %v1459, %v1460
        %v1462 = vrot.slane %v1461, 1
        %v1463 = vadd.f32 %v1461, %v1462
        %v1464 = vrot.slane %v1418, 4
        %v1465 = vadd.f32 %v1418, %v1464
        %v1466 = vrot.slane %v1465, 2
        %v1467 = vadd.f32 %v1465, %v1466
        %v1468 = vrot.slane %v1467, 1
        %v1469 = vadd.f32 %v1467, %v1468
        %v1470 = vrot.slane %v1419, 4
        %v1471 = vadd.f32 %v1419, %v1470
        %v1472 = vrot.slane %v1471, 2
        %v1473 = vadd.f32 %v1471, %v1472
        %v1474 = vrot.slane %v1473, 1
        %v1475 = vadd.f32 %v1473, %v1474
        %v1476 = vrot.slane %v1420, 4
        %v1477 = vadd.f32 %v1420, %v1476
        %v1478 = vrot.slane %v1477, 2
        %v1479 = vadd.f32 %v1477, %v1478
        %v1480 = vrot.slane %v1479, 1
        %v1481 = vadd.f32 %v1479, %v1480
        %v1482 = vrot.slane %v1421, 4
        %v1483 = vadd.f32 %v1421, %v1482
        %v1484 = vrot.slane %v1483, 2
        %v1485 = vadd.f32 %v1483, %v1484
        %v1486 = vrot.slane %v1485, 1
        %v1487 = vadd.f32 %v1485, %v1486
        %v1488 = vrot.slane %v1422, 4
        %v1489 = vadd.f32 %v1422, %v1488
        %v1490 = vrot.slane %v1489, 2
        %v1491 = vadd.f32 %v1489, %v1490
        %v1492 = vrot.slane %v1491, 1
        %v1493 = vadd.f32 %v1491, %v1492
        %v1494 = vrot.slane %v1423, 4
        %v1495 = vadd.f32 %v1423, %v1494
        %v1496 = vrot.slane %v1495, 2
        %v1497 = vadd.f32 %v1495, %v1496
        %v1498 = vrot.slane %v1497, 1
        %v1499 = vadd.f32 %v1497, %v1498
        %v1500 = vrot.slane %v1424, 4
        %v1501 = vadd.f32 %v1424, %v1500
        %v1502 = vrot.slane %v1501, 2
        %v1503 = vadd.f32 %v1501, %v1502
        %v1504 = vrot.slane %v1503, 1
        %v1505 = vadd.f32 %v1503, %v1504
        %v1506 = vrot.slane %v1425, 4
        %v1507 = vadd.f32 %v1425, %v1506
        %v1508 = vrot.slane %v1507, 2
        %v1509 = vadd.f32 %v1507, %v1508
        %v1510 = vrot.slane %v1509, 1
        %v1511 = vadd.f32 %v1509, %v1510
        %v1512 = vrot.slane %v1426, 4
        %v1513 = vadd.f32 %v1426, %v1512
        %v1514 = vrot.slane %v1513, 2
        %v1515 = vadd.f32 %v1513, %v1514
        %v1516 = vrot.slane %v1515, 1
        %v1517 = vadd.f32 %v1515, %v1516
        %v1518 = vrot.slane %v1427, 4
        %v1519 = vadd.f32 %v1427, %v1518
        %v1520 = vrot.slane %v1519, 2
        %v1521 = vadd.f32 %v1519, %v1520
        %v1522 = vrot.slane %v1521, 1
        %v1523 = vadd.f32 %v1521, %v1522
        %v1524 = vrcp.pop %v1433
        %v1525 = vrcp.pop %v1439
        %v1526 = vrcp.pop %v1445
        %v1527 = vrcp.pop %v1451
        %v1528 = vrcp.pop %v1457
        %v1529 = vrcp.pop %v1463
        %v1530 = vrcp.pop %v1469
        %v1531 = vrcp.pop %v1475
        %v1532 = vrcp.pop %v1481
        %v1533 = vrcp.pop %v1487
        %v1534 = vrcp.pop %v1493
        %v1535 = vrcp.pop %v1499
        %v1536 = vrcp.pop %v1505
        %v1537 = vrcp.pop %v1511
        %v1538 = vrcp.pop %v1517
        %v1539 = vrcp.pop %v1523
        %v1540 = vmul.f32 %v1412, %v1524
        %v1541 = vmul.f32 %v1413, %v1525
        %v1542 = vmul.f32 %v1414, %v1526
        %v1543 = vmul.f32 %v1415, %v1527
        %v1544 = vmul.f32 %v1416, %v1528
        %v1545 = vmul.f32 %v1417, %v1529
        %v1546 = vmul.f32 %v1418, %v1530
        %v1547 = vmul.f32 %v1419, %v1531
        %v1548 = vmul.f32 %v1420, %v1532
        %v1549 = vmul.f32 %v1421, %v1533
        %v1550 = vmul.f32 %v1422, %v1534
        %v1551 = vmul.f32 %v1423, %v1535
        %v1552 = vmul.f32 %v1424, %v1536
        %v1553 = vmul.f32 %v1425, %v1537
        %v1554 = vmul.f32 %v1426, %v1538
        %v1555 = vmul.f32 %v1427, %v1539
        %v1556 = vadd.f32 %v1540, %v1542
        %v1557 = vadd.f32 %v1556, %v1544
        %v1558 = vadd.f32 %v1557, %v1546
        %v1559 = vadd.f32 %v1558, %v1548
        %v1560 = vadd.f32 %v1559, %v1550
        %v1561 = vadd.f32 %v1560, %v1552
        %v1562 = vadd.f32 %v1561, %v1554
        %v1563 = vadd.f32 %v1541, %v1543
        %v1564 = vadd.f32 %v1563, %v1545
        %v1565 = vadd.f32 %v1564, %v1547
        %v1566 = vadd.f32 %v1565, %v1549
        %v1567 = vadd.f32 %v1566, %v1551
        %v1568 = vadd.f32 %v1567, %v1553
        %v1569 = vadd.f32 %v1568, %v1555
        %v1570 = vrcp.pop %v1562
        %v1571 = vrcp.pop %v1569
        %v1572 = vmul.f32 %v1540, %v1570
        %v1573 = vmul.f32 %v1541, %v1571
        %v1574 = vmul.f32 %v1542, %v1570
        %v1575 = vmul.f32 %v1543, %v1571
        %v1576 = vmul.f32 %v1544, %v1570
        %v1577 = vmul.f32 %v1545, %v1571
        %v1578 = vmul.f32 %v1546, %v1570
        %v1579 = vmul.f32 %v1547, %v1571
        %v1580 = vmul.f32 %v1548, %v1570
        %v1581 = vmul.f32 %v1549, %v1571
        %v1582 = vmul.f32 %v1550, %v1570
        %v1583 = vmul.f32 %v1551, %v1571
        %v1584 = vmul.f32 %v1552, %v1570
        %v1585 = vmul.f32 %v1553, %v1571
        %v1586 = vmul.f32 %v1554, %v1570
        %v1587 = vmul.f32 %v1555, %v1571
        %v1588 = vrot.slane %v1572, 4
        %v1589 = vadd.f32 %v1572, %v1588
        %v1590 = vrot.slane %v1589, 2
        %v1591 = vadd.f32 %v1589, %v1590
        %v1592 = vrot.slane %v1591, 1
        %v1593 = vadd.f32 %v1591, %v1592
        %v1594 = vrot.slane %v1573, 4
        %v1595 = vadd.f32 %v1573, %v1594
        %v1596 = vrot.slane %v1595, 2
        %v1597 = vadd.f32 %v1595, %v1596
        %v1598 = vrot.slane %v1597, 1
        %v1599 = vadd.f32 %v1597, %v1598
        %v1600 = vrot.slane %v1574, 4
        %v1601 = vadd.f32 %v1574, %v1600
        %v1602 = vrot.slane %v1601, 2
        %v1603 = vadd.f32 %v1601, %v1602
        %v1604 = vrot.slane %v1603, 1
        %v1605 = vadd.f32 %v1603, %v1604
        %v1606 = vrot.slane %v1575, 4
        %v1607 = vadd.f32 %v1575, %v1606
        %v1608 = vrot.slane %v1607, 2
        %v1609 = vadd.f32 %v1607, %v1608
        %v1610 = vrot.slane %v1609, 1
        %v1611 = vadd.f32 %v1609, %v1610
        %v1612 = vrot.slane %v1576, 4
        %v1613 = vadd.f32 %v1576, %v1612
        %v1614 = vrot.slane %v1613, 2
        %v1615 = vadd.f32 %v1613, %v1614
        %v1616 = vrot.slane %v1615, 1
        %v1617 = vadd.f32 %v1615, %v1616
        %v1618 = vrot.slane %v1577, 4
        %v1619 = vadd.f32 %v1577, %v1618
        %v1620 = vrot.slane %v1619, 2
        %v1621 = vadd.f32 %v1619, %v1620
        %v1622 = vrot.slane %v1621, 1
        %v1623 = vadd.f32 %v1621, %v1622
        %v1624 = vrot.slane %v1578, 4
        %v1625 = vadd.f32 %v1578, %v1624
        %v1626 = vrot.slane %v1625, 2
        %v1627 = vadd.f32 %v1625, %v1626
        %v1628 = vrot.slane %v1627, 1
        %v1629 = vadd.f32 %v1627, %v1628
        %v1630 = vrot.slane %v1579, 4
        %v1631 = vadd.f32 %v1579, %v1630
        %v1632 = vrot.slane %v1631, 2
        %v1633 = vadd.f32 %v1631, %v1632
        %v1634 = vrot.slane %v1633, 1
        %v1635 = vadd.f32 %v1633, %v1634
        %v1636 = vrot.slane %v1580, 4
        %v1637 = vadd.f32 %v1580, %v1636
        %v1638 = vrot.slane %v1637, 2
        %v1639 = vadd.f32 %v1637, %v1638
        %v1640 = vrot.slane %v1639, 1
        %v1641 = vadd.f32 %v1639, %v1640
        %v1642 = vrot.slane %v1581, 4
        %v1643 = vadd.f32 %v1581, %v1642
        %v1644 = vrot.slane %v1643, 2
        %v1645 = vadd.f32 %v1643, %v1644
        %v1646 = vrot.slane %v1645, 1
        %v1647 = vadd.f32 %v1645, %v1646
        %v1648 = vrot.slane %v1582, 4
        %v1649 = vadd.f32 %v1582, %v1648
        %v1650 = vrot.slane %v1649, 2
        %v1651 = vadd.f32 %v1649, %v1650
        %v1652 = vrot.slane %v1651, 1
        %v1653 = vadd.f32 %v1651, %v1652
        %v1654 = vrot.slane %v1583, 4
        %v1655 = vadd.f32 %v1583, %v1654
        %v1656 = vrot.slane %v1655, 2
        %v1657 = vadd.f32 %v1655, %v1656
        %v1658 = vrot.slane %v1657, 1
        %v1659 = vadd.f32 %v1657, %v1658
        %v1660 = vrot.slane %v1584, 4
        %v1661 = vadd.f32 %v1584, %v1660
        %v1662 = vrot.slane %v1661, 2
        %v1663 = vadd.f32 %v1661, %v1662
        %v1664 = vrot.slane %v1663, 1
        %v1665 = vadd.f32 %v1663, %v1664
        %v1666 = vrot.slane %v1585, 4
        %v1667 = vadd.f32 %v1585, %v1666
        %v1668 = vrot.slane %v1667, 2
        %v1669 = vadd.f32 %v1667, %v1668
        %v1670 = vrot.slane %v1669, 1
        %v1671 = vadd.f32 %v1669, %v1670
        %v1672 = vrot.slane %v1586, 4
        %v1673 = vadd.f32 %v1586, %v1672
        %v1674 = vrot.slane %v1673, 2
        %v1675 = vadd.f32 %v1673, %v1674
        %v1676 = vrot.slane %v1675, 1
        %v1677 = vadd.f32 %v1675, %v1676
        %v1678 = vrot.slane %v1587, 4
        %v1679 = vadd.f32 %v1587, %v1678
        %v1680 = vrot.slane %v1679, 2
        %v1681 = vadd.f32 %v1679, %v1680
        %v1682 = vrot.slane %v1681, 1
        %v1683 = vadd.f32 %v1681, %v1682
        %v1684 = vrcp.pop %v1593
        %v1685 = vrcp.pop %v1599
        %v1686 = vrcp.pop %v1605
        %v1687 = vrcp.pop %v1611
        %v1688 = vrcp.pop %v1617
        %v1689 = vrcp.pop %v1623
        %v1690 = vrcp.pop %v1629
        %v1691 = vrcp.pop %v1635
        %v1692 = vrcp.pop %v1641
        %v1693 = vrcp.pop %v1647
        %v1694 = vrcp.pop %v1653
        %v1695 = vrcp.pop %v1659
        %v1696 = vrcp.pop %v1665
        %v1697 = vrcp.pop %v1671
        %v1698 = vrcp.pop %v1677
        %v1699 = vrcp.pop %v1683
        %v1700 = vmul.f32 %v1572, %v1684
        %v1701 = vmul.f32 %v1573, %v1685
        %v1702 = vmul.f32 %v1574, %v1686
        %v1703 = vmul.f32 %v1575, %v1687
        %v1704 = vmul.f32 %v1576, %v1688
        %v1705 = vmul.f32 %v1577, %v1689
        %v1706 = vmul.f32 %v1578, %v1690
        %v1707 = vmul.f32 %v1579, %v1691
        %v1708 = vmul.f32 %v1580, %v1692
        %v1709 = vmul.f32 %v1581, %v1693
        %v1710 = vmul.f32 %v1582, %v1694
        %v1711 = vmul.f32 %v1583, %v1695
        %v1712 = vmul.f32 %v1584, %v1696
        %v1713 = vmul.f32 %v1585, %v1697
        %v1714 = vmul.f32 %v1586, %v1698
        %v1715 = vmul.f32 %v1587, %v1699
        %v1716 = vadd.f32 %v1700, %v1702
        %v1717 = vadd.f32 %v1716, %v1704
        %v1718 = vadd.f32 %v1717, %v1706
        %v1719 = vadd.f32 %v1718, %v1708
        %v1720 = vadd.f32 %v1719, %v1710
        %v1721 = vadd.f32 %v1720, %v1712
        %v1722 = vadd.f32 %v1721, %v1714
        %v1723 = vadd.f32 %v1701, %v1703
        %v1724 = vadd.f32 %v1723, %v1705
        %v1725 = vadd.f32 %v1724, %v1707
        %v1726 = vadd.f32 %v1725, %v1709
        %v1727 = vadd.f32 %v1726, %v1711
        %v1728 = vadd.f32 %v1727, %v1713
        %v1729 = vadd.f32 %v1728, %v1715
        %v1730 = vrcp.pop %v1722
        %v1731 = vrcp.pop %v1729
        %v1732 = vmul.f32 %v1700, %v1730
        %v1733 = vmul.f32 %v1701, %v1731
        %v1734 = vmul.f32 %v1702, %v1730
        %v1735 = vmul.f32 %v1703, %v1731
        %v1736 = vmul.f32 %v1704, %v1730
        %v1737 = vmul.f32 %v1705, %v1731
        %v1738 = vmul.f32 %v1706, %v1730
        %v1739 = vmul.f32 %v1707, %v1731
        %v1740 = vmul.f32 %v1708, %v1730
        %v1741 = vmul.f32 %v1709, %v1731
        %v1742 = vmul.f32 %v1710, %v1730
        %v1743 = vmul.f32 %v1711, %v1731
        %v1744 = vmul.f32 %v1712, %v1730
        %v1745 = vmul.f32 %v1713, %v1731
        %v1746 = vmul.f32 %v1714, %v1730
        %v1747 = vmul.f32 %v1715, %v1731
        %v1748 = vrot.slane %v1732, 4
        %v1749 = vadd.f32 %v1732, %v1748
        %v1750 = vrot.slane %v1749, 2
        %v1751 = vadd.f32 %v1749, %v1750
        %v1752 = vrot.slane %v1751, 1
        %v1753 = vadd.f32 %v1751, %v1752
        %v1754 = vrot.slane %v1733, 4
        %v1755 = vadd.f32 %v1733, %v1754
        %v1756 = vrot.slane %v1755, 2
        %v1757 = vadd.f32 %v1755, %v1756
        %v1758 = vrot.slane %v1757, 1
        %v1759 = vadd.f32 %v1757, %v1758
        %v1760 = vrot.slane %v1734, 4
        %v1761 = vadd.f32 %v1734, %v1760
        %v1762 = vrot.slane %v1761, 2
        %v1763 = vadd.f32 %v1761, %v1762
        %v1764 = vrot.slane %v1763, 1
        %v1765 = vadd.f32 %v1763, %v1764
        %v1766 = vrot.slane %v1735, 4
        %v1767 = vadd.f32 %v1735, %v1766
        %v1768 = vrot.slane %v1767, 2
        %v1769 = vadd.f32 %v1767, %v1768
        %v1770 = vrot.slane %v1769, 1
        %v1771 = vadd.f32 %v1769, %v1770
        %v1772 = vrot.slane %v1736, 4
        %v1773 = vadd.f32 %v1736, %v1772
        %v1774 = vrot.slane %v1773, 2
        %v1775 = vadd.f32 %v1773, %v1774
        %v1776 = vrot.slane %v1775, 1
        %v1777 = vadd.f32 %v1775, %v1776
        %v1778 = vrot.slane %v1737, 4
        %v1779 = vadd.f32 %v1737, %v1778
        %v1780 = vrot.slane %v1779, 2
        %v1781 = vadd.f32 %v1779, %v1780
        %v1782 = vrot.slane %v1781, 1
        %v1783 = vadd.f32 %v1781, %v1782
        %v1784 = vrot.slane %v1738, 4
        %v1785 = vadd.f32 %v1738, %v1784
        %v1786 = vrot.slane %v1785, 2
        %v1787 = vadd.f32 %v1785, %v1786
        %v1788 = vrot.slane %v1787, 1
        %v1789 = vadd.f32 %v1787, %v1788
        %v1790 = vrot.slane %v1739, 4
        %v1791 = vadd.f32 %v1739, %v1790
        %v1792 = vrot.slane %v1791, 2
        %v1793 = vadd.f32 %v1791, %v1792
        %v1794 = vrot.slane %v1793, 1
        %v1795 = vadd.f32 %v1793, %v1794
        %v1796 = vrot.slane %v1740, 4
        %v1797 = vadd.f32 %v1740, %v1796
        %v1798 = vrot.slane %v1797, 2
        %v1799 = vadd.f32 %v1797, %v1798
        %v1800 = vrot.slane %v1799, 1
        %v1801 = vadd.f32 %v1799, %v1800
        %v1802 = vrot.slane %v1741, 4
        %v1803 = vadd.f32 %v1741, %v1802
        %v1804 = vrot.slane %v1803, 2
        %v1805 = vadd.f32 %v1803, %v1804
        %v1806 = vrot.slane %v1805, 1
        %v1807 = vadd.f32 %v1805, %v1806
        %v1808 = vrot.slane %v1742, 4
        %v1809 = vadd.f32 %v1742, %v1808
        %v1810 = vrot.slane %v1809, 2
        %v1811 = vadd.f32 %v1809, %v1810
        %v1812 = vrot.slane %v1811, 1
        %v1813 = vadd.f32 %v1811, %v1812
        %v1814 = vrot.slane %v1743, 4
        %v1815 = vadd.f32 %v1743, %v1814
        %v1816 = vrot.slane %v1815, 2
        %v1817 = vadd.f32 %v1815, %v1816
        %v1818 = vrot.slane %v1817, 1
        %v1819 = vadd.f32 %v1817, %v1818
        %v1820 = vrot.slane %v1744, 4
        %v1821 = vadd.f32 %v1744, %v1820
        %v1822 = vrot.slane %v1821, 2
        %v1823 = vadd.f32 %v1821, %v1822
        %v1824 = vrot.slane %v1823, 1
        %v1825 = vadd.f32 %v1823, %v1824
        %v1826 = vrot.slane %v1745, 4
        %v1827 = vadd.f32 %v1745, %v1826
        %v1828 = vrot.slane %v1827, 2
        %v1829 = vadd.f32 %v1827, %v1828
        %v1830 = vrot.slane %v1829, 1
        %v1831 = vadd.f32 %v1829, %v1830
        %v1832 = vrot.slane %v1746, 4
        %v1833 = vadd.f32 %v1746, %v1832
        %v1834 = vrot.slane %v1833, 2
        %v1835 = vadd.f32 %v1833, %v1834
        %v1836 = vrot.slane %v1835, 1
        %v1837 = vadd.f32 %v1835, %v1836
        %v1838 = vrot.slane %v1747, 4
        %v1839 = vadd.f32 %v1747, %v1838
        %v1840 = vrot.slane %v1839, 2
        %v1841 = vadd.f32 %v1839, %v1840
        %v1842 = vrot.slane %v1841, 1
        %v1843 = vadd.f32 %v1841, %v1842
        %v1844 = vrcp.pop %v1753
        %v1845 = vrcp.pop %v1759
        %v1846 = vrcp.pop %v1765
        %v1847 = vrcp.pop %v1771
        %v1848 = vrcp.pop %v1777
        %v1849 = vrcp.pop %v1783
        %v1850 = vrcp.pop %v1789
        %v1851 = vrcp.pop %v1795
        %v1852 = vrcp.pop %v1801
        %v1853 = vrcp.pop %v1807
        %v1854 = vrcp.pop %v1813
        %v1855 = vrcp.pop %v1819
        %v1856 = vrcp.pop %v1825
        %v1857 = vrcp.pop %v1831
        %v1858 = vrcp.pop %v1837
        %v1859 = vrcp.pop %v1843
        %v1860 = vmul.f32 %v1732, %v1844
        %v1861 = vmul.f32 %v1733, %v1845
        %v1862 = vmul.f32 %v1734, %v1846
        %v1863 = vmul.f32 %v1735, %v1847
        %v1864 = vmul.f32 %v1736, %v1848
        %v1865 = vmul.f32 %v1737, %v1849
        %v1866 = vmul.f32 %v1738, %v1850
        %v1867 = vmul.f32 %v1739, %v1851
        %v1868 = vmul.f32 %v1740, %v1852
        %v1869 = vmul.f32 %v1741, %v1853
        %v1870 = vmul.f32 %v1742, %v1854
        %v1871 = vmul.f32 %v1743, %v1855
        %v1872 = vmul.f32 %v1744, %v1856
        %v1873 = vmul.f32 %v1745, %v1857
        %v1874 = vmul.f32 %v1746, %v1858
        %v1875 = vmul.f32 %v1747, %v1859
        %v1876 = vadd.f32 %v1860, %v1862
        %v1877 = vadd.f32 %v1876, %v1864
        %v1878 = vadd.f32 %v1877, %v1866
        %v1879 = vadd.f32 %v1878, %v1868
        %v1880 = vadd.f32 %v1879, %v1870
        %v1881 = vadd.f32 %v1880, %v1872
        %v1882 = vadd.f32 %v1881, %v1874
        %v1883 = vadd.f32 %v1861, %v1863
        %v1884 = vadd.f32 %v1883, %v1865
        %v1885 = vadd.f32 %v1884, %v1867
        %v1886 = vadd.f32 %v1885, %v1869
        %v1887 = vadd.f32 %v1886, %v1871
        %v1888 = vadd.f32 %v1887, %v1873
        %v1889 = vadd.f32 %v1888, %v1875
        %v1890 = vrcp.pop %v1882
        %v1891 = vrcp.pop %v1889
        %v1892 = vmul.f32 %v1860, %v1890
        %v1893 = vmul.f32 %v1861, %v1891
        %v1894 = vmul.f32 %v1862, %v1890
        %v1895 = vmul.f32 %v1863, %v1891
        %v1896 = vmul.f32 %v1864, %v1890
        %v1897 = vmul.f32 %v1865, %v1891
        %v1898 = vmul.f32 %v1866, %v1890
        %v1899 = vmul.f32 %v1867, %v1891
        %v1900 = vmul.f32 %v1868, %v1890
        %v1901 = vmul.f32 %v1869, %v1891
        %v1902 = vmul.f32 %v1870, %v1890
        %v1903 = vmul.f32 %v1871, %v1891
        %v1904 = vmul.f32 %v1872, %v1890
        %v1905 = vmul.f32 %v1873, %v1891
        %v1906 = vmul.f32 %v1874, %v1890
        %v1907 = vmul.f32 %v1875, %v1891
        %v1908 = vrot.slane %v1892, 4
        %v1909 = vadd.f32 %v1892, %v1908
        %v1910 = vrot.slane %v1909, 2
        %v1911 = vadd.f32 %v1909, %v1910
        %v1912 = vrot.slane %v1911, 1
        %v1913 = vadd.f32 %v1911, %v1912
        %v1914 = vrot.slane %v1893, 4
        %v1915 = vadd.f32 %v1893, %v1914
        %v1916 = vrot.slane %v1915, 2
        %v1917 = vadd.f32 %v1915, %v1916
        %v1918 = vrot.slane %v1917, 1
        %v1919 = vadd.f32 %v1917, %v1918
        %v1920 = vrot.slane %v1894, 4
        %v1921 = vadd.f32 %v1894, %v1920
        %v1922 = vrot.slane %v1921, 2
        %v1923 = vadd.f32 %v1921, %v1922
        %v1924 = vrot.slane %v1923, 1
        %v1925 = vadd.f32 %v1923, %v1924
        %v1926 = vrot.slane %v1895, 4
        %v1927 = vadd.f32 %v1895, %v1926
        %v1928 = vrot.slane %v1927, 2
        %v1929 = vadd.f32 %v1927, %v1928
        %v1930 = vrot.slane %v1929, 1
        %v1931 = vadd.f32 %v1929, %v1930
        %v1932 = vrot.slane %v1896, 4
        %v1933 = vadd.f32 %v1896, %v1932
        %v1934 = vrot.slane %v1933, 2
        %v1935 = vadd.f32 %v1933, %v1934
        %v1936 = vrot.slane %v1935, 1
        %v1937 = vadd.f32 %v1935, %v1936
        %v1938 = vrot.slane %v1897, 4
        %v1939 = vadd.f32 %v1897, %v1938
        %v1940 = vrot.slane %v1939, 2
        %v1941 = vadd.f32 %v1939, %v1940
        %v1942 = vrot.slane %v1941, 1
        %v1943 = vadd.f32 %v1941, %v1942
        %v1944 = vrot.slane %v1898, 4
        %v1945 = vadd.f32 %v1898, %v1944
        %v1946 = vrot.slane %v1945, 2
        %v1947 = vadd.f32 %v1945, %v1946
        %v1948 = vrot.slane %v1947, 1
        %v1949 = vadd.f32 %v1947, %v1948
        %v1950 = vrot.slane %v1899, 4
        %v1951 = vadd.f32 %v1899, %v1950
        %v1952 = vrot.slane %v1951, 2
        %v1953 = vadd.f32 %v1951, %v1952
        %v1954 = vrot.slane %v1953, 1
        %v1955 = vadd.f32 %v1953, %v1954
        %v1956 = vrot.slane %v1900, 4
        %v1957 = vadd.f32 %v1900, %v1956
        %v1958 = vrot.slane %v1957, 2
        %v1959 = vadd.f32 %v1957, %v1958
        %v1960 = vrot.slane %v1959, 1
        %v1961 = vadd.f32 %v1959, %v1960
        %v1962 = vrot.slane %v1901, 4
        %v1963 = vadd.f32 %v1901, %v1962
        %v1964 = vrot.slane %v1963, 2
        %v1965 = vadd.f32 %v1963, %v1964
        %v1966 = vrot.slane %v1965, 1
        %v1967 = vadd.f32 %v1965, %v1966
        %v1968 = vrot.slane %v1902, 4
        %v1969 = vadd.f32 %v1902, %v1968
        %v1970 = vrot.slane %v1969, 2
        %v1971 = vadd.f32 %v1969, %v1970
        %v1972 = vrot.slane %v1971, 1
        %v1973 = vadd.f32 %v1971, %v1972
        %v1974 = vrot.slane %v1903, 4
        %v1975 = vadd.f32 %v1903, %v1974
        %v1976 = vrot.slane %v1975, 2
        %v1977 = vadd.f32 %v1975, %v1976
        %v1978 = vrot.slane %v1977, 1
        %v1979 = vadd.f32 %v1977, %v1978
        %v1980 = vrot.slane %v1904, 4
        %v1981 = vadd.f32 %v1904, %v1980
        %v1982 = vrot.slane %v1981, 2
        %v1983 = vadd.f32 %v1981, %v1982
        %v1984 = vrot.slane %v1983, 1
        %v1985 = vadd.f32 %v1983, %v1984
        %v1986 = vrot.slane %v1905, 4
        %v1987 = vadd.f32 %v1905, %v1986
        %v1988 = vrot.slane %v1987, 2
        %v1989 = vadd.f32 %v1987, %v1988
        %v1990 = vrot.slane %v1989, 1
        %v1991 = vadd.f32 %v1989, %v1990
        %v1992 = vrot.slane %v1906, 4
        %v1993 = vadd.f32 %v1906, %v1992
        %v1994 = vrot.slane %v1993, 2
        %v1995 = vadd.f32 %v1993, %v1994
        %v1996 = vrot.slane %v1995, 1
        %v1997 = vadd.f32 %v1995, %v1996
        %v1998 = vrot.slane %v1907, 4
        %v1999 = vadd.f32 %v1907, %v1998
        %v2000 = vrot.slane %v1999, 2
        %v2001 = vadd.f32 %v1999, %v2000
        %v2002 = vrot.slane %v2001, 1
        %v2003 = vadd.f32 %v2001, %v2002
        %v2004 = vrcp.pop %v1913
        %v2005 = vrcp.pop %v1919
        %v2006 = vrcp.pop %v1925
        %v2007 = vrcp.pop %v1931
        %v2008 = vrcp.pop %v1937
        %v2009 = vrcp.pop %v1943
        %v2010 = vrcp.pop %v1949
        %v2011 = vrcp.pop %v1955
        %v2012 = vrcp.pop %v1961
        %v2013 = vrcp.pop %v1967
        %v2014 = vrcp.pop %v1973
        %v2015 = vrcp.pop %v1979
        %v2016 = vrcp.pop %v1985
        %v2017 = vrcp.pop %v1991
        %v2018 = vrcp.pop %v1997
        %v2019 = vrcp.pop %v2003
        %v2020 = vmul.f32 %v1892, %v2004
        %v2021 = vmul.f32 %v1893, %v2005
        %v2022 = vmul.f32 %v1894, %v2006
        %v2023 = vmul.f32 %v1895, %v2007
        %v2024 = vmul.f32 %v1896, %v2008
        %v2025 = vmul.f32 %v1897, %v2009
        %v2026 = vmul.f32 %v1898, %v2010
        %v2027 = vmul.f32 %v1899, %v2011
        %v2028 = vmul.f32 %v1900, %v2012
        %v2029 = vmul.f32 %v1901, %v2013
        %v2030 = vmul.f32 %v1902, %v2014
        %v2031 = vmul.f32 %v1903, %v2015
        %v2032 = vmul.f32 %v1904, %v2016
        %v2033 = vmul.f32 %v1905, %v2017
        %v2034 = vmul.f32 %v1906, %v2018
        %v2035 = vmul.f32 %v1907, %v2019
        %v2036 = vadd.f32 %v2020, %v2022
        %v2037 = vadd.f32 %v2036, %v2024
        %v2038 = vadd.f32 %v2037, %v2026
        %v2039 = vadd.f32 %v2038, %v2028
        %v2040 = vadd.f32 %v2039, %v2030
        %v2041 = vadd.f32 %v2040, %v2032
        %v2042 = vadd.f32 %v2041, %v2034
        %v2043 = vadd.f32 %v2021, %v2023
        %v2044 = vadd.f32 %v2043, %v2025
        %v2045 = vadd.f32 %v2044, %v2027
        %v2046 = vadd.f32 %v2045, %v2029
        %v2047 = vadd.f32 %v2046, %v2031
        %v2048 = vadd.f32 %v2047, %v2033
        %v2049 = vadd.f32 %v2048, %v2035
        %v2050 = vrcp.pop %v2042
        %v2051 = vrcp.pop %v2049
        %v2052 = vmul.f32 %v2020, %v2050
        %v2053 = vmul.f32 %v2021, %v2051
        %v2054 = vmul.f32 %v2022, %v2050
        %v2055 = vmul.f32 %v2023, %v2051
        %v2056 = vmul.f32 %v2024, %v2050
        %v2057 = vmul.f32 %v2025, %v2051
        %v2058 = vmul.f32 %v2026, %v2050
        %v2059 = vmul.f32 %v2027, %v2051
        %v2060 = vmul.f32 %v2028, %v2050
        %v2061 = vmul.f32 %v2029, %v2051
        %v2062 = vmul.f32 %v2030, %v2050
        %v2063 = vmul.f32 %v2031, %v2051
        %v2064 = vmul.f32 %v2032, %v2050
        %v2065 = vmul.f32 %v2033, %v2051
        %v2066 = vmul.f32 %v2034, %v2050
        %v2067 = vmul.f32 %v2035, %v2051
        %v2070 = vcombine.low %v2054, %v2055
        %v2071 = vcombine.high %v2054, %v2055
        %v2073 = vunpack.c.l.s4 1966171168
        %v2074 = vunpack.c.0.s8 %v2073
        %v2075 = vlaneseq
        %v2076 = vshrl.u32 %v2075, 7
        %v2077 = vsub.s32 %v2074, %v2076
        %v2078 = vrot.slane %v2070, %v2077
        %v2080 = vunpack.c.l.s4 1966171168
        %v2081 = vunpack.c.0.s8 %v2080
        %v2082 = vlaneseq
        %v2083 = vshrl.u32 %v2082, 7
        %v2084 = vsub.s32 %v2081, %v2083
        %v2085 = vrot.slane %v2071, %v2084
        %v2086 = vcombine.high %v2078, %v2078
        %v2087 = vcombine.high %v2085, %v2085
        %v2089 = vunpack.c.l.s4 1966171168
        %v2090 = vunpack.c.0.s8 %v2089
        %v2091 = vlaneseq
        %v2092 = vshrl.u32 %v2091, 7
        %v2093 = vsub.s32 %v2090, %v2092
        %v2094 = vrot.slane %v2078, %v2093
        %v2096 = vunpack.c.l.s4 1966171168
        %v2097 = vunpack.c.0.s8 %v2096
        %v2098 = vlaneseq
        %v2099 = vshrl.u32 %v2098, 7
        %v2100 = vsub.s32 %v2097, %v2099
        %v2101 = vrot.slane %v2085, %v2100
        %v2103 = vunpack.c.l.s4 1966171168
        %v2104 = vunpack.c.0.s8 %v2103
        %v2105 = vlaneseq
        %v2106 = vshrl.u32 %v2105, 7
        %v2107 = vsub.s32 %v2104, %v2106
        %v2108 = vrot.slane %v2086, %v2107
        %v2110 = vunpack.c.l.s4 1966171168
        %v2111 = vunpack.c.0.s8 %v2110
        %v2112 = vlaneseq
        %v2113 = vshrl.u32 %v2112, 7
        %v2114 = vsub.s32 %v2111, %v2113
        %v2115 = vrot.slane %v2087, %v2114
        %v2116 = vcombine.high %v2094, %v2094
        %v2117 = vcombine.high %v2101, %v2101
        %v2118 = vcombine.high %v2108, %v2108
        %v2119 = vcombine.high %v2115, %v2115
        %v2120 = vlaneseq
        %v2121 = vshrl.u32 %v2120, 7
        %v2122 = vsub.s32 0, %v2121
        %v2123 = vrot.slane %v2094, %v2122
        %v2124 = vlaneseq
        %v2125 = vshrl.u32 %v2124, 7
        %v2126 = vsub.s32 1, %v2125
        %v2127 = vrot.slane %v2094, %v2126
        %v2128 = vlaneseq
        %v2129 = vshrl.u32 %v2128, 7
        %v2130 = vsub.s32 0, %v2129
        %v2131 = vrot.slane %v2108, %v2130
        %v2132 = vlaneseq
        %v2133 = vshrl.u32 %v2132, 7
        %v2134 = vsub.s32 1, %v2133
        %v2135 = vrot.slane %v2108, %v2134
        %v2136 = vlaneseq
        %v2137 = vshrl.u32 %v2136, 7
        %v2138 = vsub.s32 0, %v2137
        %v2139 = vrot.slane %v2116, %v2138
        %v2140 = vlaneseq
        %v2141 = vshrl.u32 %v2140, 7
        %v2142 = vsub.s32 1, %v2141
        %v2143 = vrot.slane %v2116, %v2142
        %v2144 = vlaneseq
        %v2145 = vshrl.u32 %v2144, 7
        %v2146 = vsub.s32 0, %v2145
        %v2147 = vrot.slane %v2118, %v2146
        %v2148 = vlaneseq
        %v2149 = vshrl.u32 %v2148, 7
        %v2150 = vsub.s32 1, %v2149
        %v2151 = vrot.slane %v2118, %v2150
        %v2152 = vlaneseq
        %v2153 = vshrl.u32 %v2152, 7
        %v2154 = vsub.s32 0, %v2153
        %v2155 = vrot.slane %v2101, %v2154
        %v2156 = vlaneseq
        %v2157 = vshrl.u32 %v2156, 7
        %v2158 = vsub.s32 1, %v2157
        %v2159 = vrot.slane %v2101, %v2158
        %v2160 = vlaneseq
        %v2161 = vshrl.u32 %v2160, 7
        %v2162 = vsub.s32 0, %v2161
        %v2163 = vrot.slane %v2115, %v2162
        %v2164 = vlaneseq
        %v2165 = vshrl.u32 %v2164, 7
        %v2166 = vsub.s32 1, %v2165
        %v2167 = vrot.slane %v2115, %v2166
        %v2168 = vlaneseq
        %v2169 = vshrl.u32 %v2168, 7
        %v2170 = vsub.s32 0, %v2169
        %v2171 = vrot.slane %v2117, %v2170
        %v2172 = vlaneseq
        %v2173 = vshrl.u32 %v2172, 7
        %v2174 = vsub.s32 1, %v2173
        %v2175 = vrot.slane %v2117, %v2174
        %v2176 = vlaneseq
        %v2177 = vshrl.u32 %v2176, 7
        %v2178 = vsub.s32 0, %v2177
        %v2179 = vrot.slane %v2119, %v2178
        %v2180 = vlaneseq
        %v2181 = vshrl.u32 %v2180, 7
        %v2182 = vsub.s32 1, %v2181
        %v2183 = vrot.slane %v2119, %v2182
        %v2200 = vmul.f32 %v2123, %v2052
        %v2201 = vmul.f32 %v2127, %v2053
        %v2202 = vmul.f32 %v2131, %v2052
        %v2203 = vmul.f32 %v2135, %v2053
        %v2204 = vmul.f32 %v2139, %v2052
        %v2205 = vmul.f32 %v2143, %v2053
        %v2206 = vmul.f32 %v2147, %v2052
        %v2207 = vmul.f32 %v2151, %v2053
        %v2208 = vmul.f32 %v2155, %v2052
        %v2209 = vmul.f32 %v2159, %v2053
        %v2210 = vmul.f32 %v2163, %v2052
        %v2211 = vmul.f32 %v2167, %v2053
        %v2212 = vmul.f32 %v2171, %v2052
        %v2213 = vmul.f32 %v2175, %v2053
        %v2214 = vmul.f32 %v2179, %v2052
        %v2215 = vmul.f32 %v2183, %v2053
        %v2216 = vadd.f32 %v2052, %v2054
        %v2217 = vadd.f32 %v2053, %v2055
        %v2220 = vcombine.low %v2056, %v2057
        %v2221 = vcombine.high %v2056, %v2057
        %v2223 = vunpack.c.l.s4 1966171168
        %v2224 = vunpack.c.0.s8 %v2223
        %v2225 = vlaneseq
        %v2226 = vshrl.u32 %v2225, 7
        %v2227 = vsub.s32 %v2224, %v2226
        %v2228 = vrot.slane %v2220, %v2227
        %v2230 = vunpack.c.l.s4 1966171168
        %v2231 = vunpack.c.0.s8 %v2230
        %v2232 = vlaneseq
        %v2233 = vshrl.u32 %v2232, 7
        %v2234 = vsub.s32 %v2231, %v2233
        %v2235 = vrot.slane %v2221, %v2234
        %v2236 = vcombine.high %v2228, %v2228
        %v2237 = vcombine.high %v2235, %v2235
        %v2239 = vunpack.c.l.s4 1966171168
        %v2240 = vunpack.c.0.s8 %v2239
        %v2241 = vlaneseq
        %v2242 = vshrl.u32 %v2241, 7
        %v2243 = vsub.s32 %v2240, %v2242
        %v2244 = vrot.slane %v2228, %v2243
        %v2246 = vunpack.c.l.s4 1966171168
        %v2247 = vunpack.c.0.s8 %v2246
        %v2248 = vlaneseq
        %v2249 = vshrl.u32 %v2248, 7
        %v2250 = vsub.s32 %v2247, %v2249
        %v2251 = vrot.slane %v2235, %v2250
        %v2253 = vunpack.c.l.s4 1966171168
        %v2254 = vunpack.c.0.s8 %v2253
        %v2255 = vlaneseq
        %v2256 = vshrl.u32 %v2255, 7
        %v2257 = vsub.s32 %v2254, %v2256
        %v2258 = vrot.slane %v2236, %v2257
        %v2260 = vunpack.c.l.s4 1966171168
        %v2261 = vunpack.c.0.s8 %v2260
        %v2262 = vlaneseq
        %v2263 = vshrl.u32 %v2262, 7
        %v2264 = vsub.s32 %v2261, %v2263
        %v2265 = vrot.slane %v2237, %v2264
        %v2266 = vcombine.high %v2244, %v2244
        %v2267 = vcombine.high %v2251, %v2251
        %v2268 = vcombine.high %v2258, %v2258
        %v2269 = vcombine.high %v2265, %v2265
        %v2270 = vlaneseq
        %v2271 = vshrl.u32 %v2270, 7
        %v2272 = vsub.s32 0, %v2271
        %v2273 = vrot.slane %v2244, %v2272
        %v2274 = vlaneseq
        %v2275 = vshrl.u32 %v2274, 7
        %v2276 = vsub.s32 1, %v2275
        %v2277 = vrot.slane %v2244, %v2276
        %v2278 = vlaneseq
        %v2279 = vshrl.u32 %v2278, 7
        %v2280 = vsub.s32 0, %v2279
        %v2281 = vrot.slane %v2258, %v2280
        %v2282 = vlaneseq
        %v2283 = vshrl.u32 %v2282, 7
        %v2284 = vsub.s32 1, %v2283
        %v2285 = vrot.slane %v2258, %v2284
        %v2286 = vlaneseq
        %v2287 = vshrl.u32 %v2286, 7
        %v2288 = vsub.s32 0, %v2287
        %v2289 = vrot.slane %v2266, %v2288
        %v2290 = vlaneseq
        %v2291 = vshrl.u32 %v2290, 7
        %v2292 = vsub.s32 1, %v2291
        %v2293 = vrot.slane %v2266, %v2292
        %v2294 = vlaneseq
        %v2295 = vshrl.u32 %v2294, 7
        %v2296 = vsub.s32 0, %v2295
        %v2297 = vrot.slane %v2268, %v2296
        %v2298 = vlaneseq
        %v2299 = vshrl.u32 %v2298, 7
        %v2300 = vsub.s32 1, %v2299
        %v2301 = vrot.slane %v2268, %v2300
        %v2302 = vlaneseq
        %v2303 = vshrl.u32 %v2302, 7
        %v2304 = vsub.s32 0, %v2303
        %v2305 = vrot.slane %v2251, %v2304
        %v2306 = vlaneseq
        %v2307 = vshrl.u32 %v2306, 7
        %v2308 = vsub.s32 1, %v2307
        %v2309 = vrot.slane %v2251, %v2308
        %v2310 = vlaneseq
        %v2311 = vshrl.u32 %v2310, 7
        %v2312 = vsub.s32 0, %v2311
        %v2313 = vrot.slane %v2265, %v2312
        %v2314 = vlaneseq
        %v2315 = vshrl.u32 %v2314, 7
        %v2316 = vsub.s32 1, %v2315
        %v2317 = vrot.slane %v2265, %v2316
        %v2318 = vlaneseq
        %v2319 = vshrl.u32 %v2318, 7
        %v2320 = vsub.s32 0, %v2319
        %v2321 = vrot.slane %v2267, %v2320
        %v2322 = vlaneseq
        %v2323 = vshrl.u32 %v2322, 7
        %v2324 = vsub.s32 1, %v2323
        %v2325 = vrot.slane %v2267, %v2324
        %v2326 = vlaneseq
        %v2327 = vshrl.u32 %v2326, 7
        %v2328 = vsub.s32 0, %v2327
        %v2329 = vrot.slane %v2269, %v2328
        %v2330 = vlaneseq
        %v2331 = vshrl.u32 %v2330, 7
        %v2332 = vsub.s32 1, %v2331
        %v2333 = vrot.slane %v2269, %v2332
        %v2350 = vmul.f32 %v2273, %v2216
        %v2351 = vmul.f32 %v2277, %v2217
        %v2352 = vmul.f32 %v2281, %v2216
        %v2353 = vmul.f32 %v2285, %v2217
        %v2354 = vmul.f32 %v2289, %v2216
        %v2355 = vmul.f32 %v2293, %v2217
        %v2356 = vmul.f32 %v2297, %v2216
        %v2357 = vmul.f32 %v2301, %v2217
        %v2358 = vmul.f32 %v2305, %v2216
        %v2359 = vmul.f32 %v2309, %v2217
        %v2360 = vmul.f32 %v2313, %v2216
        %v2361 = vmul.f32 %v2317, %v2217
        %v2362 = vmul.f32 %v2321, %v2216
        %v2363 = vmul.f32 %v2325, %v2217
        %v2364 = vmul.f32 %v2329, %v2216
        %v2365 = vmul.f32 %v2333, %v2217
        %v2366 = vadd.f32 %v2200, %v2350
        %v2367 = vadd.f32 %v2201, %v2351
        %v2368 = vadd.f32 %v2202, %v2352
        %v2369 = vadd.f32 %v2203, %v2353
        %v2370 = vadd.f32 %v2204, %v2354
        %v2371 = vadd.f32 %v2205, %v2355
        %v2372 = vadd.f32 %v2206, %v2356
        %v2373 = vadd.f32 %v2207, %v2357
        %v2374 = vadd.f32 %v2208, %v2358
        %v2375 = vadd.f32 %v2209, %v2359
        %v2376 = vadd.f32 %v2210, %v2360
        %v2377 = vadd.f32 %v2211, %v2361
        %v2378 = vadd.f32 %v2212, %v2362
        %v2379 = vadd.f32 %v2213, %v2363
        %v2380 = vadd.f32 %v2214, %v2364
        %v2381 = vadd.f32 %v2215, %v2365
        %v2382 = vadd.f32 %v2216, %v2056
        %v2383 = vadd.f32 %v2217, %v2057
        %v2386 = vcombine.low %v2058, %v2059
        %v2387 = vcombine.high %v2058, %v2059
        %v2389 = vunpack.c.l.s4 1966171168
        %v2390 = vunpack.c.0.s8 %v2389
        %v2391 = vlaneseq
        %v2392 = vshrl.u32 %v2391, 7
        %v2393 = vsub.s32 %v2390, %v2392
        %v2394 = vrot.slane %v2386, %v2393
        %v2396 = vunpack.c.l.s4 1966171168
        %v2397 = vunpack.c.0.s8 %v2396
        %v2398 = vlaneseq
        %v2399 = vshrl.u32 %v2398, 7
        %v2400 = vsub.s32 %v2397, %v2399
        %v2401 = vrot.slane %v2387, %v2400
        %v2402 = vcombine.high %v2394, %v2394
        %v2403 = vcombine.high %v2401, %v2401
        %v2405 = vunpack.c.l.s4 1966171168
        %v2406 = vunpack.c.0.s8 %v2405
        %v2407 = vlaneseq
        %v2408 = vshrl.u32 %v2407, 7
        %v2409 = vsub.s32 %v2406, %v2408
        %v2410 = vrot.slane %v2394, %v2409
        %v2412 = vunpack.c.l.s4 1966171168
        %v2413 = vunpack.c.0.s8 %v2412
        %v2414 = vlaneseq
        %v2415 = vshrl.u32 %v2414, 7
        %v2416 = vsub.s32 %v2413, %v2415
        %v2417 = vrot.slane %v2401, %v2416
        %v2419 = vunpack.c.l.s4 1966171168
        %v2420 = vunpack.c.0.s8 %v2419
        %v2421 = vlaneseq
        %v2422 = vshrl.u32 %v2421, 7
        %v2423 = vsub.s32 %v2420, %v2422
        %v2424 = vrot.slane %v2402, %v2423
        %v2426 = vunpack.c.l.s4 1966171168
        %v2427 = vunpack.c.0.s8 %v2426
        %v2428 = vlaneseq
        %v2429 = vshrl.u32 %v2428, 7
        %v2430 = vsub.s32 %v2427, %v2429
        %v2431 = vrot.slane %v2403, %v2430
        %v2432 = vcombine.high %v2410, %v2410
        %v2433 = vcombine.high %v2417, %v2417
        %v2434 = vcombine.high %v2424, %v2424
        %v2435 = vcombine.high %v2431, %v2431
        %v2436 = vlaneseq
        %v2437 = vshrl.u32 %v2436, 7
        %v2438 = vsub.s32 0, %v2437
        %v2439 = vrot.slane %v2410, %v2438
        %v2440 = vlaneseq
        %v2441 = vshrl.u32 %v2440, 7
        %v2442 = vsub.s32 1, %v2441
        %v2443 = vrot.slane %v2410, %v2442
        %v2444 = vlaneseq
        %v2445 = vshrl.u32 %v2444, 7
        %v2446 = vsub.s32 0, %v2445
        %v2447 = vrot.slane %v2424, %v2446
        %v2448 = vlaneseq
        %v2449 = vshrl.u32 %v2448, 7
        %v2450 = vsub.s32 1, %v2449
        %v2451 = vrot.slane %v2424, %v2450
        %v2452 = vlaneseq
        %v2453 = vshrl.u32 %v2452, 7
        %v2454 = vsub.s32 0, %v2453
        %v2455 = vrot.slane %v2432, %v2454
        %v2456 = vlaneseq
        %v2457 = vshrl.u32 %v2456, 7
        %v2458 = vsub.s32 1, %v2457
        %v2459 = vrot.slane %v2432, %v2458
        %v2460 = vlaneseq
        %v2461 = vshrl.u32 %v2460, 7
        %v2462 = vsub.s32 0, %v2461
        %v2463 = vrot.slane %v2434, %v2462
        %v2464 = vlaneseq
        %v2465 = vshrl.u32 %v2464, 7
        %v2466 = vsub.s32 1, %v2465
        %v2467 = vrot.slane %v2434, %v2466
        %v2468 = vlaneseq
        %v2469 = vshrl.u32 %v2468, 7
        %v2470 = vsub.s32 0, %v2469
        %v2471 = vrot.slane %v2417, %v2470
        %v2472 = vlaneseq
        %v2473 = vshrl.u32 %v2472, 7
        %v2474 = vsub.s32 1, %v2473
        %v2475 = vrot.slane %v2417, %v2474
        %v2476 = vlaneseq
        %v2477 = vshrl.u32 %v2476, 7
        %v2478 = vsub.s32 0, %v2477
        %v2479 = vrot.slane %v2431, %v2478
        %v2480 = vlaneseq
        %v2481 = vshrl.u32 %v2480, 7
        %v2482 = vsub.s32 1, %v2481
        %v2483 = vrot.slane %v2431, %v2482
        %v2484 = vlaneseq
        %v2485 = vshrl.u32 %v2484, 7
        %v2486 = vsub.s32 0, %v2485
        %v2487 = vrot.slane %v2433, %v2486
        %v2488 = vlaneseq
        %v2489 = vshrl.u32 %v2488, 7
        %v2490 = vsub.s32 1, %v2489
        %v2491 = vrot.slane %v2433, %v2490
        %v2492 = vlaneseq
        %v2493 = vshrl.u32 %v2492, 7
        %v2494 = vsub.s32 0, %v2493
        %v2495 = vrot.slane %v2435, %v2494
        %v2496 = vlaneseq
        %v2497 = vshrl.u32 %v2496, 7
        %v2498 = vsub.s32 1, %v2497
        %v2499 = vrot.slane %v2435, %v2498
        %v2516 = vmul.f32 %v2439, %v2382
        %v2517 = vmul.f32 %v2443, %v2383
        %v2518 = vmul.f32 %v2447, %v2382
        %v2519 = vmul.f32 %v2451, %v2383
        %v2520 = vmul.f32 %v2455, %v2382
        %v2521 = vmul.f32 %v2459, %v2383
        %v2522 = vmul.f32 %v2463, %v2382
        %v2523 = vmul.f32 %v2467, %v2383
        %v2524 = vmul.f32 %v2471, %v2382
        %v2525 = vmul.f32 %v2475, %v2383
        %v2526 = vmul.f32 %v2479, %v2382
        %v2527 = vmul.f32 %v2483, %v2383
        %v2528 = vmul.f32 %v2487, %v2382
        %v2529 = vmul.f32 %v2491, %v2383
        %v2530 = vmul.f32 %v2495, %v2382
        %v2531 = vmul.f32 %v2499, %v2383
        %v2532 = vadd.f32 %v2366, %v2516
        %v2533 = vadd.f32 %v2367, %v2517
        %v2534 = vadd.f32 %v2368, %v2518
        %v2535 = vadd.f32 %v2369, %v2519
        %v2536 = vadd.f32 %v2370, %v2520
        %v2537 = vadd.f32 %v2371, %v2521
        %v2538 = vadd.f32 %v2372, %v2522
        %v2539 = vadd.f32 %v2373, %v2523
        %v2540 = vadd.f32 %v2374, %v2524
        %v2541 = vadd.f32 %v2375, %v2525
        %v2542 = vadd.f32 %v2376, %v2526
        %v2543 = vadd.f32 %v2377, %v2527
        %v2544 = vadd.f32 %v2378, %v2528
        %v2545 = vadd.f32 %v2379, %v2529
        %v2546 = vadd.f32 %v2380, %v2530
        %v2547 = vadd.f32 %v2381, %v2531
        %v2548 = vadd.f32 %v2382, %v2058
        %v2549 = vadd.f32 %v2383, %v2059
        %v2552 = vcombine.low %v2060, %v2061
        %v2553 = vcombine.high %v2060, %v2061
        %v2555 = vunpack.c.l.s4 1966171168
        %v2556 = vunpack.c.0.s8 %v2555
        %v2557 = vlaneseq
        %v2558 = vshrl.u32 %v2557, 7
        %v2559 = vsub.s32 %v2556, %v2558
        %v2560 = vrot.slane %v2552, %v2559
        %v2562 = vunpack.c.l.s4 1966171168
        %v2563 = vunpack.c.0.s8 %v2562
        %v2564 = vlaneseq
        %v2565 = vshrl.u32 %v2564, 7
        %v2566 = vsub.s32 %v2563, %v2565
        %v2567 = vrot.slane %v2553, %v2566
        %v2568 = vcombine.high %v2560, %v2560
        %v2569 = vcombine.high %v2567, %v2567
        %v2571 = vunpack.c.l.s4 1966171168
        %v2572 = vunpack.c.0.s8 %v2571
        %v2573 = vlaneseq
        %v2574 = vshrl.u32 %v2573, 7
        %v2575 = vsub.s32 %v2572, %v2574
        %v2576 = vrot.slane %v2560, %v2575
        %v2578 = vunpack.c.l.s4 1966171168
        %v2579 = vunpack.c.0.s8 %v2578
        %v2580 = vlaneseq
        %v2581 = vshrl.u32 %v2580, 7
        %v2582 = vsub.s32 %v2579, %v2581
        %v2583 = vrot.slane %v2567, %v2582
        %v2585 = vunpack.c.l.s4 1966171168
        %v2586 = vunpack.c.0.s8 %v2585
        %v2587 = vlaneseq
        %v2588 = vshrl.u32 %v2587, 7
        %v2589 = vsub.s32 %v2586, %v2588
        %v2590 = vrot.slane %v2568, %v2589
        %v2592 = vunpack.c.l.s4 1966171168
        %v2593 = vunpack.c.0.s8 %v2592
        %v2594 = vlaneseq
        %v2595 = vshrl.u32 %v2594, 7
        %v2596 = vsub.s32 %v2593, %v2595
        %v2597 = vrot.slane %v2569, %v2596
        %v2598 = vcombine.high %v2576, %v2576
        %v2599 = vcombine.high %v2583, %v2583
        %v2600 = vcombine.high %v2590, %v2590
        %v2601 = vcombine.high %v2597, %v2597
        %v2602 = vlaneseq
        %v2603 = vshrl.u32 %v2602, 7
        %v2604 = vsub.s32 0, %v2603
        %v2605 = vrot.slane %v2576, %v2604
        %v2606 = vlaneseq
        %v2607 = vshrl.u32 %v2606, 7
        %v2608 = vsub.s32 1, %v2607
        %v2609 = vrot.slane %v2576, %v2608
        %v2610 = vlaneseq
        %v2611 = vshrl.u32 %v2610, 7
        %v2612 = vsub.s32 0, %v2611
        %v2613 = vrot.slane %v2590, %v2612
        %v2614 = vlaneseq
        %v2615 = vshrl.u32 %v2614, 7
        %v2616 = vsub.s32 1, %v2615
        %v2617 = vrot.slane %v2590, %v2616
        %v2618 = vlaneseq
        %v2619 = vshrl.u32 %v2618, 7
        %v2620 = vsub.s32 0, %v2619
        %v2621 = vrot.slane %v2598, %v2620
        %v2622 = vlaneseq
        %v2623 = vshrl.u32 %v2622, 7
        %v2624 = vsub.s32 1, %v2623
        %v2625 = vrot.slane %v2598, %v2624
        %v2626 = vlaneseq
        %v2627 = vshrl.u32 %v2626, 7
        %v2628 = vsub.s32 0, %v2627
        %v2629 = vrot.slane %v2600, %v2628
        %v2630 = vlaneseq
        %v2631 = vshrl.u32 %v2630, 7
        %v2632 = vsub.s32 1, %v2631
        %v2633 = vrot.slane %v2600, %v2632
        %v2634 = vlaneseq
        %v2635 = vshrl.u32 %v2634, 7
        %v2636 = vsub.s32 0, %v2635
        %v2637 = vrot.slane %v2583, %v2636
        %v2638 = vlaneseq
        %v2639 = vshrl.u32 %v2638, 7
        %v2640 = vsub.s32 1, %v2639
        %v2641 = vrot.slane %v2583, %v2640
        %v2642 = vlaneseq
        %v2643 = vshrl.u32 %v2642, 7
        %v2644 = vsub.s32 0, %v2643
        %v2645 = vrot.slane %v2597, %v2644
        %v2646 = vlaneseq
        %v2647 = vshrl.u32 %v2646, 7
        %v2648 = vsub.s32 1, %v2647
        %v2649 = vrot.slane %v2597, %v2648
        %v2650 = vlaneseq
        %v2651 = vshrl.u32 %v2650, 7
        %v2652 = vsub.s32 0, %v2651
        %v2653 = vrot.slane %v2599, %v2652
        %v2654 = vlaneseq
        %v2655 = vshrl.u32 %v2654, 7
        %v2656 = vsub.s32 1, %v2655
        %v2657 = vrot.slane %v2599, %v2656
        %v2658 = vlaneseq
        %v2659 = vshrl.u32 %v2658, 7
        %v2660 = vsub.s32 0, %v2659
        %v2661 = vrot.slane %v2601, %v2660
        %v2662 = vlaneseq
        %v2663 = vshrl.u32 %v2662, 7
        %v2664 = vsub.s32 1, %v2663
        %v2665 = vrot.slane %v2601, %v2664
        %v2682 = vmul.f32 %v2605, %v2548
        %v2683 = vmul.f32 %v2609, %v2549
        %v2684 = vmul.f32 %v2613, %v2548
        %v2685 = vmul.f32 %v2617, %v2549
        %v2686 = vmul.f32 %v2621, %v2548
        %v2687 = vmul.f32 %v2625, %v2549
        %v2688 = vmul.f32 %v2629, %v2548
        %v2689 = vmul.f32 %v2633, %v2549
        %v2690 = vmul.f32 %v2637, %v2548
        %v2691 = vmul.f32 %v2641, %v2549
        %v2692 = vmul.f32 %v2645, %v2548
        %v2693 = vmul.f32 %v2649, %v2549
        %v2694 = vmul.f32 %v2653, %v2548
        %v2695 = vmul.f32 %v2657, %v2549
        %v2696 = vmul.f32 %v2661, %v2548
        %v2697 = vmul.f32 %v2665, %v2549
        %v2698 = vadd.f32 %v2532, %v2682
        %v2699 = vadd.f32 %v2533, %v2683
        %v2700 = vadd.f32 %v2534, %v2684
        %v2701 = vadd.f32 %v2535, %v2685
        %v2702 = vadd.f32 %v2536, %v2686
        %v2703 = vadd.f32 %v2537, %v2687
        %v2704 = vadd.f32 %v2538, %v2688
        %v2705 = vadd.f32 %v2539, %v2689
        %v2706 = vadd.f32 %v2540, %v2690
        %v2707 = vadd.f32 %v2541, %v2691
        %v2708 = vadd.f32 %v2542, %v2692
        %v2709 = vadd.f32 %v2543, %v2693
        %v2710 = vadd.f32 %v2544, %v2694
        %v2711 = vadd.f32 %v2545, %v2695
        %v2712 = vadd.f32 %v2546, %v2696
        %v2713 = vadd.f32 %v2547, %v2697
        %v2714 = vadd.f32 %v2548, %v2060
        %v2715 = vadd.f32 %v2549, %v2061
        %v2718 = vcombine.low %v2062, %v2063
        %v2719 = vcombine.high %v2062, %v2063
        %v2721 = vunpack.c.l.s4 1966171168
        %v2722 = vunpack.c.0.s8 %v2721
        %v2723 = vlaneseq
        %v2724 = vshrl.u32 %v2723, 7
        %v2725 = vsub.s32 %v2722, %v2724
        %v2726 = vrot.slane %v2718, %v2725
        %v2728 = vunpack.c.l.s4 1966171168
        %v2729 = vunpack.c.0.s8 %v2728
        %v2730 = vlaneseq
        %v2731 = vshrl.u32 %v2730, 7
        %v2732 = vsub.s32 %v2729, %v2731
        %v2733 = vrot.slane %v2719, %v2732
        %v2734 = vcombine.high %v2726, %v2726
        %v2735 = vcombine.high %v2733, %v2733
        %v2737 = vunpack.c.l.s4 1966171168
        %v2738 = vunpack.c.0.s8 %v2737
        %v2739 = vlaneseq
        %v2740 = vshrl.u32 %v2739, 7
        %v2741 = vsub.s32 %v2738, %v2740
        %v2742 = vrot.slane %v2726, %v2741
        %v2744 = vunpack.c.l.s4 1966171168
        %v2745 = vunpack.c.0.s8 %v2744
        %v2746 = vlaneseq
        %v2747 = vshrl.u32 %v2746, 7
        %v2748 = vsub.s32 %v2745, %v2747
        %v2749 = vrot.slane %v2733, %v2748
        %v2751 = vunpack.c.l.s4 1966171168
        %v2752 = vunpack.c.0.s8 %v2751
        %v2753 = vlaneseq
        %v2754 = vshrl.u32 %v2753, 7
        %v2755 = vsub.s32 %v2752, %v2754
        %v2756 = vrot.slane %v2734, %v2755
        %v2758 = vunpack.c.l.s4 1966171168
        %v2759 = vunpack.c.0.s8 %v2758
        %v2760 = vlaneseq
        %v2761 = vshrl.u32 %v2760, 7
        %v2762 = vsub.s32 %v2759, %v2761
        %v2763 = vrot.slane %v2735, %v2762
        %v2764 = vcombine.high %v2742, %v2742
        %v2765 = vcombine.high %v2749, %v2749
        %v2766 = vcombine.high %v2756, %v2756
        %v2767 = vcombine.high %v2763, %v2763
        %v2768 = vlaneseq
        %v2769 = vshrl.u32 %v2768, 7
        %v2770 = vsub.s32 0, %v2769
        %v2771 = vrot.slane %v2742, %v2770
        %v2772 = vlaneseq
        %v2773 = vshrl.u32 %v2772, 7
        %v2774 = vsub.s32 1, %v2773
        %v2775 = vrot.slane %v2742, %v2774
        %v2776 = vlaneseq
        %v2777 = vshrl.u32 %v2776, 7
        %v2778 = vsub.s32 0, %v2777
        %v2779 = vrot.slane %v2756, %v2778
        %v2780 = vlaneseq
        %v2781 = vshrl.u32 %v2780, 7
        %v2782 = vsub.s32 1, %v2781
        %v2783 = vrot.slane %v2756, %v2782
        %v2784 = vlaneseq
        %v2785 = vshrl.u32 %v2784, 7
        %v2786 = vsub.s32 0, %v2785
        %v2787 = vrot.slane %v2764, %v2786
        %v2788 = vlaneseq
        %v2789 = vshrl.u32 %v2788, 7
        %v2790 = vsub.s32 1, %v2789
        %v2791 = vrot.slane %v2764, %v2790
        %v2792 = vlaneseq
        %v2793 = vshrl.u32 %v2792, 7
        %v2794 = vsub.s32 0, %v2793
        %v2795 = vrot.slane %v2766, %v2794
        %v2796 = vlaneseq
        %v2797 = vshrl.u32 %v2796, 7
        %v2798 = vsub.s32 1, %v2797
        %v2799 = vrot.slane %v2766, %v2798
        %v2800 = vlaneseq
        %v2801 = vshrl.u32 %v2800, 7
        %v2802 = vsub.s32 0, %v2801
        %v2803 = vrot.slane %v2749, %v2802
        %v2804 = vlaneseq
        %v2805 = vshrl.u32 %v2804, 7
        %v2806 = vsub.s32 1, %v2805
        %v2807 = vrot.slane %v2749, %v2806
        %v2808 = vlaneseq
        %v2809 = vshrl.u32 %v2808, 7
        %v2810 = vsub.s32 0, %v2809
        %v2811 = vrot.slane %v2763, %v2810
        %v2812 = vlaneseq
        %v2813 = vshrl.u32 %v2812, 7
        %v2814 = vsub.s32 1, %v2813
        %v2815 = vrot.slane %v2763, %v2814
        %v2816 = vlaneseq
        %v2817 = vshrl.u32 %v2816, 7
        %v2818 = vsub.s32 0, %v2817
        %v2819 = vrot.slane %v2765, %v2818
        %v2820 = vlaneseq
        %v2821 = vshrl.u32 %v2820, 7
        %v2822 = vsub.s32 1, %v2821
        %v2823 = vrot.slane %v2765, %v2822
        %v2824 = vlaneseq
        %v2825 = vshrl.u32 %v2824, 7
        %v2826 = vsub.s32 0, %v2825
        %v2827 = vrot.slane %v2767, %v2826
        %v2828 = vlaneseq
        %v2829 = vshrl.u32 %v2828, 7
        %v2830 = vsub.s32 1, %v2829
        %v2831 = vrot.slane %v2767, %v2830
        %v2848 = vmul.f32 %v2771, %v2714
        %v2849 = vmul.f32 %v2775, %v2715
        %v2850 = vmul.f32 %v2779, %v2714
        %v2851 = vmul.f32 %v2783, %v2715
        %v2852 = vmul.f32 %v2787, %v2714
        %v2853 = vmul.f32 %v2791, %v2715
        %v2854 = vmul.f32 %v2795, %v2714
        %v2855 = vmul.f32 %v2799, %v2715
        %v2856 = vmul.f32 %v2803, %v2714
        %v2857 = vmul.f32 %v2807, %v2715
        %v2858 = vmul.f32 %v2811, %v2714
        %v2859 = vmul.f32 %v2815, %v2715
        %v2860 = vmul.f32 %v2819, %v2714
        %v2861 = vmul.f32 %v2823, %v2715
        %v2862 = vmul.f32 %v2827, %v2714
        %v2863 = vmul.f32 %v2831, %v2715
        %v2864 = vadd.f32 %v2698, %v2848
        %v2865 = vadd.f32 %v2699, %v2849
        %v2866 = vadd.f32 %v2700, %v2850
        %v2867 = vadd.f32 %v2701, %v2851
        %v2868 = vadd.f32 %v2702, %v2852
        %v2869 = vadd.f32 %v2703, %v2853
        %v2870 = vadd.f32 %v2704, %v2854
        %v2871 = vadd.f32 %v2705, %v2855
        %v2872 = vadd.f32 %v2706, %v2856
        %v2873 = vadd.f32 %v2707, %v2857
        %v2874 = vadd.f32 %v2708, %v2858
        %v2875 = vadd.f32 %v2709, %v2859
        %v2876 = vadd.f32 %v2710, %v2860
        %v2877 = vadd.f32 %v2711, %v2861
        %v2878 = vadd.f32 %v2712, %v2862
        %v2879 = vadd.f32 %v2713, %v2863
        %v2880 = vadd.f32 %v2714, %v2062
        %v2881 = vadd.f32 %v2715, %v2063
        %v2884 = vcombine.low %v2064, %v2065
        %v2885 = vcombine.high %v2064, %v2065
        %v2887 = vunpack.c.l.s4 1966171168
        %v2888 = vunpack.c.0.s8 %v2887
        %v2889 = vlaneseq
        %v2890 = vshrl.u32 %v2889, 7
        %v2891 = vsub.s32 %v2888, %v2890
        %v2892 = vrot.slane %v2884, %v2891
        %v2894 = vunpack.c.l.s4 1966171168
        %v2895 = vunpack.c.0.s8 %v2894
        %v2896 = vlaneseq
        %v2897 = vshrl.u32 %v2896, 7
        %v2898 = vsub.s32 %v2895, %v2897
        %v2899 = vrot.slane %v2885, %v2898
        %v2900 = vcombine.high %v2892, %v2892
        %v2901 = vcombine.high %v2899, %v2899
        %v2903 = vunpack.c.l.s4 1966171168
        %v2904 = vunpack.c.0.s8 %v2903
        %v2905 = vlaneseq
        %v2906 = vshrl.u32 %v2905, 7
        %v2907 = vsub.s32 %v2904, %v2906
        %v2908 = vrot.slane %v2892, %v2907
        %v2910 = vunpack.c.l.s4 1966171168
        %v2911 = vunpack.c.0.s8 %v2910
        %v2912 = vlaneseq
        %v2913 = vshrl.u32 %v2912, 7
        %v2914 = vsub.s32 %v2911, %v2913
        %v2915 = vrot.slane %v2899, %v2914
        %v2917 = vunpack.c.l.s4 1966171168
        %v2918 = vunpack.c.0.s8 %v2917
        %v2919 = vlaneseq
        %v2920 = vshrl.u32 %v2919, 7
        %v2921 = vsub.s32 %v2918, %v2920
        %v2922 = vrot.slane %v2900, %v2921
        %v2924 = vunpack.c.l.s4 1966171168
        %v2925 = vunpack.c.0.s8 %v2924
        %v2926 = vlaneseq
        %v2927 = vshrl.u32 %v2926, 7
        %v2928 = vsub.s32 %v2925, %v2927
        %v2929 = vrot.slane %v2901, %v2928
        %v2930 = vcombine.high %v2908, %v2908
        %v2931 = vcombine.high %v2915, %v2915
        %v2932 = vcombine.high %v2922, %v2922
        %v2933 = vcombine.high %v2929, %v2929
        %v2934 = vlaneseq
        %v2935 = vshrl.u32 %v2934, 7
        %v2936 = vsub.s32 0, %v2935
        %v2937 = vrot.slane %v2908, %v2936
        %v2938 = vlaneseq
        %v2939 = vshrl.u32 %v2938, 7
        %v2940 = vsub.s32 1, %v2939
        %v2941 = vrot.slane %v2908, %v2940
        %v2942 = vlaneseq
        %v2943 = vshrl.u32 %v2942, 7
        %v2944 = vsub.s32 0, %v2943
        %v2945 = vrot.slane %v2922, %v2944
        %v2946 = vlaneseq
        %v2947 = vshrl.u32 %v2946, 7
        %v2948 = vsub.s32 1, %v2947
        %v2949 = vrot.slane %v2922, %v2948
        %v2950 = vlaneseq
        %v2951 = vshrl.u32 %v2950, 7
        %v2952 = vsub.s32 0, %v2951
        %v2953 = vrot.slane %v2930, %v2952
        %v2954 = vlaneseq
        %v2955 = vshrl.u32 %v2954, 7
        %v2956 = vsub.s32 1, %v2955
        %v2957 = vrot.slane %v2930, %v2956
        %v2958 = vlaneseq
        %v2959 = vshrl.u32 %v2958, 7
        %v2960 = vsub.s32 0, %v2959
        %v2961 = vrot.slane %v2932, %v2960
        %v2962 = vlaneseq
        %v2963 = vshrl.u32 %v2962, 7
        %v2964 = vsub.s32 1, %v2963
        %v2965 = vrot.slane %v2932, %v2964
        %v2966 = vlaneseq
        %v2967 = vshrl.u32 %v2966, 7
        %v2968 = vsub.s32 0, %v2967
        %v2969 = vrot.slane %v2915, %v2968
        %v2970 = vlaneseq
        %v2971 = vshrl.u32 %v2970, 7
        %v2972 = vsub.s32 1, %v2971
        %v2973 = vrot.slane %v2915, %v2972
        %v2974 = vlaneseq
        %v2975 = vshrl.u32 %v2974, 7
        %v2976 = vsub.s32 0, %v2975
        %v2977 = vrot.slane %v2929, %v2976
        %v2978 = vlaneseq
        %v2979 = vshrl.u32 %v2978, 7
        %v2980 = vsub.s32 1, %v2979
        %v2981 = vrot.slane %v2929, %v2980
        %v2982 = vlaneseq
        %v2983 = vshrl.u32 %v2982, 7
        %v2984 = vsub.s32 0, %v2983
        %v2985 = vrot.slane %v2931, %v2984
        %v2986 = vlaneseq
        %v2987 = vshrl.u32 %v2986, 7
        %v2988 = vsub.s32 1, %v2987
        %v2989 = vrot.slane %v2931, %v2988
        %v2990 = vlaneseq
        %v2991 = vshrl.u32 %v2990, 7
        %v2992 = vsub.s32 0, %v2991
        %v2993 = vrot.slane %v2933, %v2992
        %v2994 = vlaneseq
        %v2995 = vshrl.u32 %v2994, 7
        %v2996 = vsub.s32 1, %v2995
        %v2997 = vrot.slane %v2933, %v2996
        %v3014 = vmul.f32 %v2937, %v2880
        %v3015 = vmul.f32 %v2941, %v2881
        %v3016 = vmul.f32 %v2945, %v2880
        %v3017 = vmul.f32 %v2949, %v2881
        %v3018 = vmul.f32 %v2953, %v2880
        %v3019 = vmul.f32 %v2957, %v2881
        %v3020 = vmul.f32 %v2961, %v2880
        %v3021 = vmul.f32 %v2965, %v2881
        %v3022 = vmul.f32 %v2969, %v2880
        %v3023 = vmul.f32 %v2973, %v2881
        %v3024 = vmul.f32 %v2977, %v2880
        %v3025 = vmul.f32 %v2981, %v2881
        %v3026 = vmul.f32 %v2985, %v2880
        %v3027 = vmul.f32 %v2989, %v2881
        %v3028 = vmul.f32 %v2993, %v2880
        %v3029 = vmul.f32 %v2997, %v2881
        %v3030 = vadd.f32 %v2864, %v3014
        %v3031 = vadd.f32 %v2865, %v3015
        %v3032 = vadd.f32 %v2866, %v3016
        %v3033 = vadd.f32 %v2867, %v3017
        %v3034 = vadd.f32 %v2868, %v3018
        %v3035 = vadd.f32 %v2869, %v3019
        %v3036 = vadd.f32 %v2870, %v3020
        %v3037 = vadd.f32 %v2871, %v3021
        %v3038 = vadd.f32 %v2872, %v3022
        %v3039 = vadd.f32 %v2873, %v3023
        %v3040 = vadd.f32 %v2874, %v3024
        %v3041 = vadd.f32 %v2875, %v3025
        %v3042 = vadd.f32 %v2876, %v3026
        %v3043 = vadd.f32 %v2877, %v3027
        %v3044 = vadd.f32 %v2878, %v3028
        %v3045 = vadd.f32 %v2879, %v3029
        %v3046 = vadd.f32 %v2880, %v2064
        %v3047 = vadd.f32 %v2881, %v2065
        %v3050 = vcombine.low %v2066, %v2067
        %v3051 = vcombine.high %v2066, %v2067
        %v3053 = vunpack.c.l.s4 1966171168
        %v3054 = vunpack.c.0.s8 %v3053
        %v3055 = vlaneseq
        %v3056 = vshrl.u32 %v3055, 7
        %v3057 = vsub.s32 %v3054, %v3056
        %v3058 = vrot.slane %v3050, %v3057
        %v3060 = vunpack.c.l.s4 1966171168
        %v3061 = vunpack.c.0.s8 %v3060
        %v3062 = vlaneseq
        %v3063 = vshrl.u32 %v3062, 7
        %v3064 = vsub.s32 %v3061, %v3063
        %v3065 = vrot.slane %v3051, %v3064
        %v3066 = vcombine.high %v3058, %v3058
        %v3067 = vcombine.high %v3065, %v3065
        %v3069 = vunpack.c.l.s4 1966171168
        %v3070 = vunpack.c.0.s8 %v3069
        %v3071 = vlaneseq
        %v3072 = vshrl.u32 %v3071, 7
        %v3073 = vsub.s32 %v3070, %v3072
        %v3074 = vrot.slane %v3058, %v3073
        %v3076 = vunpack.c.l.s4 1966171168
        %v3077 = vunpack.c.0.s8 %v3076
        %v3078 = vlaneseq
        %v3079 = vshrl.u32 %v3078, 7
        %v3080 = vsub.s32 %v3077, %v3079
        %v3081 = vrot.slane %v3065, %v3080
        %v3083 = vunpack.c.l.s4 1966171168
        %v3084 = vunpack.c.0.s8 %v3083
        %v3085 = vlaneseq
        %v3086 = vshrl.u32 %v3085, 7
        %v3087 = vsub.s32 %v3084, %v3086
        %v3088 = vrot.slane %v3066, %v3087
        %v3090 = vunpack.c.l.s4 1966171168
        %v3091 = vunpack.c.0.s8 %v3090
        %v3092 = vlaneseq
        %v3093 = vshrl.u32 %v3092, 7
        %v3094 = vsub.s32 %v3091, %v3093
        %v3095 = vrot.slane %v3067, %v3094
        %v3096 = vcombine.high %v3074, %v3074
        %v3097 = vcombine.high %v3081, %v3081
        %v3098 = vcombine.high %v3088, %v3088
        %v3099 = vcombine.high %v3095, %v3095
        %v3100 = vlaneseq
        %v3101 = vshrl.u32 %v3100, 7
        %v3102 = vsub.s32 0, %v3101
        %v3103 = vrot.slane %v3074, %v3102
        %v3104 = vlaneseq
        %v3105 = vshrl.u32 %v3104, 7
        %v3106 = vsub.s32 1, %v3105
        %v3107 = vrot.slane %v3074, %v3106
        %v3108 = vlaneseq
        %v3109 = vshrl.u32 %v3108, 7
        %v3110 = vsub.s32 0, %v3109
        %v3111 = vrot.slane %v3088, %v3110
        %v3112 = vlaneseq
        %v3113 = vshrl.u32 %v3112, 7
        %v3114 = vsub.s32 1, %v3113
        %v3115 = vrot.slane %v3088, %v3114
        %v3116 = vlaneseq
        %v3117 = vshrl.u32 %v3116, 7
        %v3118 = vsub.s32 0, %v3117
        %v3119 = vrot.slane %v3096, %v3118
        %v3120 = vlaneseq
        %v3121 = vshrl.u32 %v3120, 7
        %v3122 = vsub.s32 1, %v3121
        %v3123 = vrot.slane %v3096, %v3122
        %v3124 = vlaneseq
        %v3125 = vshrl.u32 %v3124, 7
        %v3126 = vsub.s32 0, %v3125
        %v3127 = vrot.slane %v3098, %v3126
        %v3128 = vlaneseq
        %v3129 = vshrl.u32 %v3128, 7
        %v3130 = vsub.s32 1, %v3129
        %v3131 = vrot.slane %v3098, %v3130
        %v3132 = vlaneseq
        %v3133 = vshrl.u32 %v3132, 7
        %v3134 = vsub.s32 0, %v3133
        %v3135 = vrot.slane %v3081, %v3134
        %v3136 = vlaneseq
        %v3137 = vshrl.u32 %v3136, 7
        %v3138 = vsub.s32 1, %v3137
        %v3139 = vrot.slane %v3081, %v3138
        %v3140 = vlaneseq
        %v3141 = vshrl.u32 %v3140, 7
        %v3142 = vsub.s32 0, %v3141
        %v3143 = vrot.slane %v3095, %v3142
        %v3144 = vlaneseq
        %v3145 = vshrl.u32 %v3144, 7
        %v3146 = vsub.s32 1, %v3145
        %v3147 = vrot.slane %v3095, %v3146
        %v3148 = vlaneseq
        %v3149 = vshrl.u32 %v3148, 7
        %v3150 = vsub.s32 0, %v3149
        %v3151 = vrot.slane %v3097, %v3150
        %v3152 = vlaneseq
        %v3153 = vshrl.u32 %v3152, 7
        %v3154 = vsub.s32 1, %v3153
        %v3155 = vrot.slane %v3097, %v3154
        %v3156 = vlaneseq
        %v3157 = vshrl.u32 %v3156, 7
        %v3158 = vsub.s32 0, %v3157
        %v3159 = vrot.slane %v3099, %v3158
        %v3160 = vlaneseq
        %v3161 = vshrl.u32 %v3160, 7
        %v3162 = vsub.s32 1, %v3161
        %v3163 = vrot.slane %v3099, %v3162
        %v3180 = vmul.f32 %v3103, %v3046
        %v3181 = vmul.f32 %v3107, %v3047
        %v3182 = vmul.f32 %v3111, %v3046
        %v3183 = vmul.f32 %v3115, %v3047
        %v3184 = vmul.f32 %v3119, %v3046
        %v3185 = vmul.f32 %v3123, %v3047
        %v3186 = vmul.f32 %v3127, %v3046
        %v3187 = vmul.f32 %v3131, %v3047
        %v3188 = vmul.f32 %v3135, %v3046
        %v3189 = vmul.f32 %v3139, %v3047
        %v3190 = vmul.f32 %v3143, %v3046
        %v3191 = vmul.f32 %v3147, %v3047
        %v3192 = vmul.f32 %v3151, %v3046
        %v3193 = vmul.f32 %v3155, %v3047
        %v3194 = vmul.f32 %v3159, %v3046
        %v3195 = vmul.f32 %v3163, %v3047
        %v3196 = vadd.f32 %v3030, %v3180
        %v3197 = vadd.f32 %v3031, %v3181
        %v3198 = vadd.f32 %v3032, %v3182
        %v3199 = vadd.f32 %v3033, %v3183
        %v3200 = vadd.f32 %v3034, %v3184
        %v3201 = vadd.f32 %v3035, %v3185
        %v3202 = vadd.f32 %v3036, %v3186
        %v3203 = vadd.f32 %v3037, %v3187
        %v3204 = vadd.f32 %v3038, %v3188
        %v3205 = vadd.f32 %v3039, %v3189
        %v3206 = vadd.f32 %v3040, %v3190
        %v3207 = vadd.f32 %v3041, %v3191
        %v3208 = vadd.f32 %v3042, %v3192
        %v3209 = vadd.f32 %v3043, %v3193
        %v3210 = vadd.f32 %v3044, %v3194
        %v3211 = vadd.f32 %v3045, %v3195
        %v3212 = vld [vmem:[%s375] sm:$0xff]
        %v3213 = vld [vmem:[%s375 + $0x8] sm:$0xff]
        %v3214 = vmul.f32 %v3196, %v3212
        %v3215 = vmul.f32 %v3197, %v3213
        %v3216 = vmul.f32 %v3198, %v3212
        %v3217 = vmul.f32 %v3199, %v3213
        %v3218 = vmul.f32 %v3200, %v3212
        %v3219 = vmul.f32 %v3201, %v3213
        %v3220 = vmul.f32 %v3202, %v3212
        %v3221 = vmul.f32 %v3203, %v3213
        %v3222 = vmul.f32 %v3204, %v3212
        %v3223 = vmul.f32 %v3205, %v3213
        %v3224 = vmul.f32 %v3206, %v3212
        %v3225 = vmul.f32 %v3207, %v3213
        %v3226 = vmul.f32 %v3208, %v3212
        %v3227 = vmul.f32 %v3209, %v3213
        %v3228 = vmul.f32 %v3210, %v3212
        %v3229 = vmul.f32 %v3211, %v3213
        %v3230 = vld [vmem:[%s2] sm:$0xff]
        %v3231 = vld [vmem:[%s2 + $0x8] sm:$0xff]
        %v3232 = vld [vmem:[%s2 + $0x10] sm:$0xff]
        %v3233 = vld [vmem:[%s2 + $0x18] sm:$0xff]
        %v3234 = vld [vmem:[%s2 + $0x20] sm:$0xff]
        %v3235 = vld [vmem:[%s2 + $0x28] sm:$0xff]
        %v3236 = vld [vmem:[%s2 + $0x30] sm:$0xff]
        %v3237 = vld [vmem:[%s2 + $0x38] sm:$0xff]
        %v3238 = vld [vmem:[%s2 + $0x40] sm:$0xff]
        %v3239 = vld [vmem:[%s2 + $0x48] sm:$0xff]
        %v3240 = vld [vmem:[%s2 + $0x50] sm:$0xff]
        %v3241 = vld [vmem:[%s2 + $0x58] sm:$0xff]
        %v3242 = vld [vmem:[%s2 + $0x60] sm:$0xff]
        %v3243 = vld [vmem:[%s2 + $0x68] sm:$0xff]
        %v3244 = vld [vmem:[%s2 + $0x70] sm:$0xff]
        %v3245 = vld [vmem:[%s2 + $0x78] sm:$0xff]
        %v3246 = vld [vmem:[%s2 + $0x80] sm:$0xff]
        %v3247 = vld [vmem:[%s2 + $0x88] sm:$0xff]
        %v3248 = vld [vmem:[%s2 + $0x90] sm:$0xff]
        %v3249 = vld [vmem:[%s2 + $0x98] sm:$0xff]
        %v3250 = vld [vmem:[%s2 + $0xa0] sm:$0xff]
        %v3251 = vld [vmem:[%s2 + $0xa8] sm:$0xff]
        %v3252 = vld [vmem:[%s2 + $0xb0] sm:$0xff]
        %v3253 = vld [vmem:[%s2 + $0xb8] sm:$0xff]
        %v3254 = vld [vmem:[%s2 + $0xc0] sm:$0xff]
        %v3255 = vld [vmem:[%s2 + $0xc8] sm:$0xff]
        %v3256 = vld [vmem:[%s2 + $0xd0] sm:$0xff]
        %v3257 = vld [vmem:[%s2 + $0xd8] sm:$0xff]
        %v3258 = vld [vmem:[%s2 + $0xe0] sm:$0xff]
        %v3259 = vld [vmem:[%s2 + $0xe8] sm:$0xff]
        %v3260 = vld [vmem:[%s2 + $0xf0] sm:$0xff]
        %v3261 = vld [vmem:[%s2 + $0xf8] sm:$0xff]
        %v3262 = vld [vmem:[%s3] sm:$0xff]
        %v3263 = vld [vmem:[%s3 + $0x8] sm:$0xff]
        %v3264 = vld [vmem:[%s3 + $0x10] sm:$0xff]
        %v3265 = vld [vmem:[%s3 + $0x18] sm:$0xff]
        %3267 = vset.pattern.permute.xlu0 0
        %3268 = vperm.xlu0 %3267, %v3230
        %v3269 = vpop.permute.xlu0 %3268
        %3272 = vset.pattern.permute.xlu0 0
        %3273 = vperm.xlu0 %3272, %v3231
        %v3274 = vpop.permute.xlu0 %3273
        %3277 = vset.pattern.permute.xlu0 0
        %3278 = vperm.xlu0 %3277, %v3232
        %v3279 = vpop.permute.xlu0 %3278
        %3282 = vset.pattern.permute.xlu0 0
        %3283 = vperm.xlu0 %3282, %v3233
        %v3284 = vpop.permute.xlu0 %3283
        %3287 = vset.pattern.permute.xlu0 0
        %3288 = vperm.xlu0 %3287, %v3234
        %v3289 = vpop.permute.xlu0 %3288
        %3292 = vset.pattern.permute.xlu0 0
        %3293 = vperm.xlu0 %3292, %v3235
        %v3294 = vpop.permute.xlu0 %3293
        %3297 = vset.pattern.permute.xlu0 0
        %3298 = vperm.xlu0 %3297, %v3236
        %v3299 = vpop.permute.xlu0 %3298
        %3302 = vset.pattern.permute.xlu0 0
        %3303 = vperm.xlu0 %3302, %v3237
        %v3304 = vpop.permute.xlu0 %3303
        %3307 = vset.pattern.permute.xlu0 0
        %3308 = vperm.xlu0 %3307, %v3238
        %v3309 = vpop.permute.xlu0 %3308
        %3312 = vset.pattern.permute.xlu0 0
        %3313 = vperm.xlu0 %3312, %v3239
        %v3314 = vpop.permute.xlu0 %3313
        %3317 = vset.pattern.permute.xlu0 0
        %3318 = vperm.xlu0 %3317, %v3240
        %v3319 = vpop.permute.xlu0 %3318
        %3322 = vset.pattern.permute.xlu0 0
        %3323 = vperm.xlu0 %3322, %v3241
        %v3324 = vpop.permute.xlu0 %3323
        %3327 = vset.pattern.permute.xlu0 0
        %3328 = vperm.xlu0 %3327, %v3242
        %v3329 = vpop.permute.xlu0 %3328
        %3332 = vset.pattern.permute.xlu0 0
        %3333 = vperm.xlu0 %3332, %v3243
        %v3334 = vpop.permute.xlu0 %3333
        %3337 = vset.pattern.permute.xlu0 0
        %3338 = vperm.xlu0 %3337, %v3244
        %v3339 = vpop.permute.xlu0 %3338
        %3342 = vset.pattern.permute.xlu0 0
        %3343 = vperm.xlu0 %3342, %v3245
        %v3344 = vpop.permute.xlu0 %3343
        %3347 = vset.pattern.permute.xlu0 0
        %3348 = vperm.xlu0 %3347, %v3246
        %v3349 = vpop.permute.xlu0 %3348
        %3352 = vset.pattern.permute.xlu0 0
        %3353 = vperm.xlu0 %3352, %v3247
        %v3354 = vpop.permute.xlu0 %3353
        %3357 = vset.pattern.permute.xlu0 0
        %3358 = vperm.xlu0 %3357, %v3248
        %v3359 = vpop.permute.xlu0 %3358
        %3362 = vset.pattern.permute.xlu0 0
        %3363 = vperm.xlu0 %3362, %v3249
        %v3364 = vpop.permute.xlu0 %3363
        %3367 = vset.pattern.permute.xlu0 0
        %3368 = vperm.xlu0 %3367, %v3250
        %v3369 = vpop.permute.xlu0 %3368
        %3372 = vset.pattern.permute.xlu0 0
        %3373 = vperm.xlu0 %3372, %v3251
        %v3374 = vpop.permute.xlu0 %3373
        %3377 = vset.pattern.permute.xlu0 0
        %3378 = vperm.xlu0 %3377, %v3252
        %v3379 = vpop.permute.xlu0 %3378
        %3382 = vset.pattern.permute.xlu0 0
        %3383 = vperm.xlu0 %3382, %v3253
        %v3384 = vpop.permute.xlu0 %3383
        %3387 = vset.pattern.permute.xlu0 0
        %3388 = vperm.xlu0 %3387, %v3254
        %v3389 = vpop.permute.xlu0 %3388
        %3392 = vset.pattern.permute.xlu0 0
        %3393 = vperm.xlu0 %3392, %v3255
        %v3394 = vpop.permute.xlu0 %3393
        %3397 = vset.pattern.permute.xlu0 0
        %3398 = vperm.xlu0 %3397, %v3256
        %v3399 = vpop.permute.xlu0 %3398
        %3402 = vset.pattern.permute.xlu0 0
        %3403 = vperm.xlu0 %3402, %v3257
        %v3404 = vpop.permute.xlu0 %3403
        %3407 = vset.pattern.permute.xlu0 0
        %3408 = vperm.xlu0 %3407, %v3258
        %v3409 = vpop.permute.xlu0 %3408
        %3412 = vset.pattern.permute.xlu0 0
        %3413 = vperm.xlu0 %3412, %v3259
        %v3414 = vpop.permute.xlu0 %3413
        %3417 = vset.pattern.permute.xlu0 0
        %3418 = vperm.xlu0 %3417, %v3260
        %v3419 = vpop.permute.xlu0 %3418
        %3422 = vset.pattern.permute.xlu0 0
        %3423 = vperm.xlu0 %3422, %v3261
        %v3424 = vpop.permute.xlu0 %3423
        %v3426 = vmul.f32 %v3269, %v3214
        %v3427 = vmul.f32 %v3269, %v3215
        %v3428 = vmul.f32 %v3274, %v3216
        %v3429 = vmul.f32 %v3274, %v3217
        %v3430 = vmul.f32 %v3279, %v3218
        %v3431 = vmul.f32 %v3279, %v3219
        %v3432 = vmul.f32 %v3284, %v3220
        %v3433 = vmul.f32 %v3284, %v3221
        %v3434 = vmul.f32 %v3289, %v3222
        %v3435 = vmul.f32 %v3289, %v3223
        %v3436 = vmul.f32 %v3294, %v3224
        %v3437 = vmul.f32 %v3294, %v3225
        %v3438 = vmul.f32 %v3299, %v3226
        %v3439 = vmul.f32 %v3299, %v3227
        %v3440 = vmul.f32 %v3304, %v3228
        %v3441 = vmul.f32 %v3304, %v3229
        %v3442 = vmul.f32 %v3309, %v3214
        %v3443 = vmul.f32 %v3309, %v3215
        %v3444 = vmul.f32 %v3314, %v3216
        %v3445 = vmul.f32 %v3314, %v3217
        %v3446 = vmul.f32 %v3319, %v3218
        %v3447 = vmul.f32 %v3319, %v3219
        %v3448 = vmul.f32 %v3324, %v3220
        %v3449 = vmul.f32 %v3324, %v3221
        %v3450 = vmul.f32 %v3329, %v3222
        %v3451 = vmul.f32 %v3329, %v3223
        %v3452 = vmul.f32 %v3334, %v3224
        %v3453 = vmul.f32 %v3334, %v3225
        %v3454 = vmul.f32 %v3339, %v3226
        %v3455 = vmul.f32 %v3339, %v3227
        %v3456 = vmul.f32 %v3344, %v3228
        %v3457 = vmul.f32 %v3344, %v3229
        %v3458 = vmul.f32 %v3349, %v3214
        %v3459 = vmul.f32 %v3349, %v3215
        %v3460 = vmul.f32 %v3354, %v3216
        %v3461 = vmul.f32 %v3354, %v3217
        %v3462 = vmul.f32 %v3359, %v3218
        %v3463 = vmul.f32 %v3359, %v3219
        %v3464 = vmul.f32 %v3364, %v3220
        %v3465 = vmul.f32 %v3364, %v3221
        %v3466 = vmul.f32 %v3369, %v3222
        %v3467 = vmul.f32 %v3369, %v3223
        %v3468 = vmul.f32 %v3374, %v3224
        %v3469 = vmul.f32 %v3374, %v3225
        %v3470 = vmul.f32 %v3379, %v3226
        %v3471 = vmul.f32 %v3379, %v3227
        %v3472 = vmul.f32 %v3384, %v3228
        %v3473 = vmul.f32 %v3384, %v3229
        %v3474 = vmul.f32 %v3389, %v3214
        %v3475 = vmul.f32 %v3389, %v3215
        %v3476 = vmul.f32 %v3394, %v3216
        %v3477 = vmul.f32 %v3394, %v3217
        %v3478 = vmul.f32 %v3399, %v3218
        %v3479 = vmul.f32 %v3399, %v3219
        %v3480 = vmul.f32 %v3404, %v3220
        %v3481 = vmul.f32 %v3404, %v3221
        %v3482 = vmul.f32 %v3409, %v3222
        %v3483 = vmul.f32 %v3409, %v3223
        %v3484 = vmul.f32 %v3414, %v3224
        %v3485 = vmul.f32 %v3414, %v3225
        %v3486 = vmul.f32 %v3419, %v3226
        %v3487 = vmul.f32 %v3419, %v3227
        %v3488 = vmul.f32 %v3424, %v3228
        %v3489 = vmul.f32 %v3424, %v3229
        %v3490 = vrot.slane %v3426, 4
        %v3491 = vadd.f32 %v3426, %v3490
        %v3492 = vrot.slane %v3491, 2
        %v3493 = vadd.f32 %v3491, %v3492
        %v3494 = vrot.slane %v3493, 1
        %v3495 = vadd.f32 %v3493, %v3494
        %v3496 = vrot.slane %v3427, 4
        %v3497 = vadd.f32 %v3427, %v3496
        %v3498 = vrot.slane %v3497, 2
        %v3499 = vadd.f32 %v3497, %v3498
        %v3500 = vrot.slane %v3499, 1
        %v3501 = vadd.f32 %v3499, %v3500
        %v3502 = vrot.slane %v3428, 4
        %v3503 = vadd.f32 %v3428, %v3502
        %v3504 = vrot.slane %v3503, 2
        %v3505 = vadd.f32 %v3503, %v3504
        %v3506 = vrot.slane %v3505, 1
        %v3507 = vadd.f32 %v3505, %v3506
        %v3508 = vrot.slane %v3429, 4
        %v3509 = vadd.f32 %v3429, %v3508
        %v3510 = vrot.slane %v3509, 2
        %v3511 = vadd.f32 %v3509, %v3510
        %v3512 = vrot.slane %v3511, 1
        %v3513 = vadd.f32 %v3511, %v3512
        %v3514 = vrot.slane %v3430, 4
        %v3515 = vadd.f32 %v3430, %v3514
        %v3516 = vrot.slane %v3515, 2
        %v3517 = vadd.f32 %v3515, %v3516
        %v3518 = vrot.slane %v3517, 1
        %v3519 = vadd.f32 %v3517, %v3518
        %v3520 = vrot.slane %v3431, 4
        %v3521 = vadd.f32 %v3431, %v3520
        %v3522 = vrot.slane %v3521, 2
        %v3523 = vadd.f32 %v3521, %v3522
        %v3524 = vrot.slane %v3523, 1
        %v3525 = vadd.f32 %v3523, %v3524
        %v3526 = vrot.slane %v3432, 4
        %v3527 = vadd.f32 %v3432, %v3526
        %v3528 = vrot.slane %v3527, 2
        %v3529 = vadd.f32 %v3527, %v3528
        %v3530 = vrot.slane %v3529, 1
        %v3531 = vadd.f32 %v3529, %v3530
        %v3532 = vrot.slane %v3433, 4
        %v3533 = vadd.f32 %v3433, %v3532
        %v3534 = vrot.slane %v3533, 2
        %v3535 = vadd.f32 %v3533, %v3534
        %v3536 = vrot.slane %v3535, 1
        %v3537 = vadd.f32 %v3535, %v3536
        %v3538 = vrot.slane %v3434, 4
        %v3539 = vadd.f32 %v3434, %v3538
        %v3540 = vrot.slane %v3539, 2
        %v3541 = vadd.f32 %v3539, %v3540
        %v3542 = vrot.slane %v3541, 1
        %v3543 = vadd.f32 %v3541, %v3542
        %v3544 = vrot.slane %v3435, 4
        %v3545 = vadd.f32 %v3435, %v3544
        %v3546 = vrot.slane %v3545, 2
        %v3547 = vadd.f32 %v3545, %v3546
        %v3548 = vrot.slane %v3547, 1
        %v3549 = vadd.f32 %v3547, %v3548
        %v3550 = vrot.slane %v3436, 4
        %v3551 = vadd.f32 %v3436, %v3550
        %v3552 = vrot.slane %v3551, 2
        %v3553 = vadd.f32 %v3551, %v3552
        %v3554 = vrot.slane %v3553, 1
        %v3555 = vadd.f32 %v3553, %v3554
        %v3556 = vrot.slane %v3437, 4
        %v3557 = vadd.f32 %v3437, %v3556
        %v3558 = vrot.slane %v3557, 2
        %v3559 = vadd.f32 %v3557, %v3558
        %v3560 = vrot.slane %v3559, 1
        %v3561 = vadd.f32 %v3559, %v3560
        %v3562 = vrot.slane %v3438, 4
        %v3563 = vadd.f32 %v3438, %v3562
        %v3564 = vrot.slane %v3563, 2
        %v3565 = vadd.f32 %v3563, %v3564
        %v3566 = vrot.slane %v3565, 1
        %v3567 = vadd.f32 %v3565, %v3566
        %v3568 = vrot.slane %v3439, 4
        %v3569 = vadd.f32 %v3439, %v3568
        %v3570 = vrot.slane %v3569, 2
        %v3571 = vadd.f32 %v3569, %v3570
        %v3572 = vrot.slane %v3571, 1
        %v3573 = vadd.f32 %v3571, %v3572
        %v3574 = vrot.slane %v3440, 4
        %v3575 = vadd.f32 %v3440, %v3574
        %v3576 = vrot.slane %v3575, 2
        %v3577 = vadd.f32 %v3575, %v3576
        %v3578 = vrot.slane %v3577, 1
        %v3579 = vadd.f32 %v3577, %v3578
        %v3580 = vrot.slane %v3441, 4
        %v3581 = vadd.f32 %v3441, %v3580
        %v3582 = vrot.slane %v3581, 2
        %v3583 = vadd.f32 %v3581, %v3582
        %v3584 = vrot.slane %v3583, 1
        %v3585 = vadd.f32 %v3583, %v3584
        %v3586 = vrot.slane %v3442, 4
        %v3587 = vadd.f32 %v3442, %v3586
        %v3588 = vrot.slane %v3587, 2
        %v3589 = vadd.f32 %v3587, %v3588
        %v3590 = vrot.slane %v3589, 1
        %v3591 = vadd.f32 %v3589, %v3590
        %v3592 = vrot.slane %v3443, 4
        %v3593 = vadd.f32 %v3443, %v3592
        %v3594 = vrot.slane %v3593, 2
        %v3595 = vadd.f32 %v3593, %v3594
        %v3596 = vrot.slane %v3595, 1
        %v3597 = vadd.f32 %v3595, %v3596
        %v3598 = vrot.slane %v3444, 4
        %v3599 = vadd.f32 %v3444, %v3598
        %v3600 = vrot.slane %v3599, 2
        %v3601 = vadd.f32 %v3599, %v3600
        %v3602 = vrot.slane %v3601, 1
        %v3603 = vadd.f32 %v3601, %v3602
        %v3604 = vrot.slane %v3445, 4
        %v3605 = vadd.f32 %v3445, %v3604
        %v3606 = vrot.slane %v3605, 2
        %v3607 = vadd.f32 %v3605, %v3606
        %v3608 = vrot.slane %v3607, 1
        %v3609 = vadd.f32 %v3607, %v3608
        %v3610 = vrot.slane %v3446, 4
        %v3611 = vadd.f32 %v3446, %v3610
        %v3612 = vrot.slane %v3611, 2
        %v3613 = vadd.f32 %v3611, %v3612
        %v3614 = vrot.slane %v3613, 1
        %v3615 = vadd.f32 %v3613, %v3614
        %v3616 = vrot.slane %v3447, 4
        %v3617 = vadd.f32 %v3447, %v3616
        %v3618 = vrot.slane %v3617, 2
        %v3619 = vadd.f32 %v3617, %v3618
        %v3620 = vrot.slane %v3619, 1
        %v3621 = vadd.f32 %v3619, %v3620
        %v3622 = vrot.slane %v3448, 4
        %v3623 = vadd.f32 %v3448, %v3622
        %v3624 = vrot.slane %v3623, 2
        %v3625 = vadd.f32 %v3623, %v3624
        %v3626 = vrot.slane %v3625, 1
        %v3627 = vadd.f32 %v3625, %v3626
        %v3628 = vrot.slane %v3449, 4
        %v3629 = vadd.f32 %v3449, %v3628
        %v3630 = vrot.slane %v3629, 2
        %v3631 = vadd.f32 %v3629, %v3630
        %v3632 = vrot.slane %v3631, 1
        %v3633 = vadd.f32 %v3631, %v3632
        %v3634 = vrot.slane %v3450, 4
        %v3635 = vadd.f32 %v3450, %v3634
        %v3636 = vrot.slane %v3635, 2
        %v3637 = vadd.f32 %v3635, %v3636
        %v3638 = vrot.slane %v3637, 1
        %v3639 = vadd.f32 %v3637, %v3638
        %v3640 = vrot.slane %v3451, 4
        %v3641 = vadd.f32 %v3451, %v3640
        %v3642 = vrot.slane %v3641, 2
        %v3643 = vadd.f32 %v3641, %v3642
        %v3644 = vrot.slane %v3643, 1
        %v3645 = vadd.f32 %v3643, %v3644
        %v3646 = vrot.slane %v3452, 4
        %v3647 = vadd.f32 %v3452, %v3646
        %v3648 = vrot.slane %v3647, 2
        %v3649 = vadd.f32 %v3647, %v3648
        %v3650 = vrot.slane %v3649, 1
        %v3651 = vadd.f32 %v3649, %v3650
        %v3652 = vrot.slane %v3453, 4
        %v3653 = vadd.f32 %v3453, %v3652
        %v3654 = vrot.slane %v3653, 2
        %v3655 = vadd.f32 %v3653, %v3654
        %v3656 = vrot.slane %v3655, 1
        %v3657 = vadd.f32 %v3655, %v3656
        %v3658 = vrot.slane %v3454, 4
        %v3659 = vadd.f32 %v3454, %v3658
        %v3660 = vrot.slane %v3659, 2
        %v3661 = vadd.f32 %v3659, %v3660
        %v3662 = vrot.slane %v3661, 1
        %v3663 = vadd.f32 %v3661, %v3662
        %v3664 = vrot.slane %v3455, 4
        %v3665 = vadd.f32 %v3455, %v3664
        %v3666 = vrot.slane %v3665, 2
        %v3667 = vadd.f32 %v3665, %v3666
        %v3668 = vrot.slane %v3667, 1
        %v3669 = vadd.f32 %v3667, %v3668
        %v3670 = vrot.slane %v3456, 4
        %v3671 = vadd.f32 %v3456, %v3670
        %v3672 = vrot.slane %v3671, 2
        %v3673 = vadd.f32 %v3671, %v3672
        %v3674 = vrot.slane %v3673, 1
        %v3675 = vadd.f32 %v3673, %v3674
        %v3676 = vrot.slane %v3457, 4
        %v3677 = vadd.f32 %v3457, %v3676
        %v3678 = vrot.slane %v3677, 2
        %v3679 = vadd.f32 %v3677, %v3678
        %v3680 = vrot.slane %v3679, 1
        %v3681 = vadd.f32 %v3679, %v3680
        %v3682 = vrot.slane %v3458, 4
        %v3683 = vadd.f32 %v3458, %v3682
        %v3684 = vrot.slane %v3683, 2
        %v3685 = vadd.f32 %v3683, %v3684
        %v3686 = vrot.slane %v3685, 1
        %v3687 = vadd.f32 %v3685, %v3686
        %v3688 = vrot.slane %v3459, 4
        %v3689 = vadd.f32 %v3459, %v3688
        %v3690 = vrot.slane %v3689, 2
        %v3691 = vadd.f32 %v3689, %v3690
        %v3692 = vrot.slane %v3691, 1
        %v3693 = vadd.f32 %v3691, %v3692
        %v3694 = vrot.slane %v3460, 4
        %v3695 = vadd.f32 %v3460, %v3694
        %v3696 = vrot.slane %v3695, 2
        %v3697 = vadd.f32 %v3695, %v3696
        %v3698 = vrot.slane %v3697, 1
        %v3699 = vadd.f32 %v3697, %v3698
        %v3700 = vrot.slane %v3461, 4
        %v3701 = vadd.f32 %v3461, %v3700
        %v3702 = vrot.slane %v3701, 2
        %v3703 = vadd.f32 %v3701, %v3702
        %v3704 = vrot.slane %v3703, 1
        %v3705 = vadd.f32 %v3703, %v3704
        %v3706 = vrot.slane %v3462, 4
        %v3707 = vadd.f32 %v3462, %v3706
        %v3708 = vrot.slane %v3707, 2
        %v3709 = vadd.f32 %v3707, %v3708
        %v3710 = vrot.slane %v3709, 1
        %v3711 = vadd.f32 %v3709, %v3710
        %v3712 = vrot.slane %v3463, 4
        %v3713 = vadd.f32 %v3463, %v3712
        %v3714 = vrot.slane %v3713, 2
        %v3715 = vadd.f32 %v3713, %v3714
        %v3716 = vrot.slane %v3715, 1
        %v3717 = vadd.f32 %v3715, %v3716
        %v3718 = vrot.slane %v3464, 4
        %v3719 = vadd.f32 %v3464, %v3718
        %v3720 = vrot.slane %v3719, 2
        %v3721 = vadd.f32 %v3719, %v3720
        %v3722 = vrot.slane %v3721, 1
        %v3723 = vadd.f32 %v3721, %v3722
        %v3724 = vrot.slane %v3465, 4
        %v3725 = vadd.f32 %v3465, %v3724
        %v3726 = vrot.slane %v3725, 2
        %v3727 = vadd.f32 %v3725, %v3726
        %v3728 = vrot.slane %v3727, 1
        %v3729 = vadd.f32 %v3727, %v3728
        %v3730 = vrot.slane %v3466, 4
        %v3731 = vadd.f32 %v3466, %v3730
        %v3732 = vrot.slane %v3731, 2
        %v3733 = vadd.f32 %v3731, %v3732
        %v3734 = vrot.slane %v3733, 1
        %v3735 = vadd.f32 %v3733, %v3734
        %v3736 = vrot.slane %v3467, 4
        %v3737 = vadd.f32 %v3467, %v3736
        %v3738 = vrot.slane %v3737, 2
        %v3739 = vadd.f32 %v3737, %v3738
        %v3740 = vrot.slane %v3739, 1
        %v3741 = vadd.f32 %v3739, %v3740
        %v3742 = vrot.slane %v3468, 4
        %v3743 = vadd.f32 %v3468, %v3742
        %v3744 = vrot.slane %v3743, 2
        %v3745 = vadd.f32 %v3743, %v3744
        %v3746 = vrot.slane %v3745, 1
        %v3747 = vadd.f32 %v3745, %v3746
        %v3748 = vrot.slane %v3469, 4
        %v3749 = vadd.f32 %v3469, %v3748
        %v3750 = vrot.slane %v3749, 2
        %v3751 = vadd.f32 %v3749, %v3750
        %v3752 = vrot.slane %v3751, 1
        %v3753 = vadd.f32 %v3751, %v3752
        %v3754 = vrot.slane %v3470, 4
        %v3755 = vadd.f32 %v3470, %v3754
        %v3756 = vrot.slane %v3755, 2
        %v3757 = vadd.f32 %v3755, %v3756
        %v3758 = vrot.slane %v3757, 1
        %v3759 = vadd.f32 %v3757, %v3758
        %v3760 = vrot.slane %v3471, 4
        %v3761 = vadd.f32 %v3471, %v3760
        %v3762 = vrot.slane %v3761, 2
        %v3763 = vadd.f32 %v3761, %v3762
        %v3764 = vrot.slane %v3763, 1
        %v3765 = vadd.f32 %v3763, %v3764
        %v3766 = vrot.slane %v3472, 4
        %v3767 = vadd.f32 %v3472, %v3766
        %v3768 = vrot.slane %v3767, 2
        %v3769 = vadd.f32 %v3767, %v3768
        %v3770 = vrot.slane %v3769, 1
        %v3771 = vadd.f32 %v3769, %v3770
        %v3772 = vrot.slane %v3473, 4
        %v3773 = vadd.f32 %v3473, %v3772
        %v3774 = vrot.slane %v3773, 2
        %v3775 = vadd.f32 %v3773, %v3774
        %v3776 = vrot.slane %v3775, 1
        %v3777 = vadd.f32 %v3775, %v3776
        %v3778 = vrot.slane %v3474, 4
        %v3779 = vadd.f32 %v3474, %v3778
        %v3780 = vrot.slane %v3779, 2
        %v3781 = vadd.f32 %v3779, %v3780
        %v3782 = vrot.slane %v3781, 1
        %v3783 = vadd.f32 %v3781, %v3782
        %v3784 = vrot.slane %v3475, 4
        %v3785 = vadd.f32 %v3475, %v3784
        %v3786 = vrot.slane %v3785, 2
        %v3787 = vadd.f32 %v3785, %v3786
        %v3788 = vrot.slane %v3787, 1
        %v3789 = vadd.f32 %v3787, %v3788
        %v3790 = vrot.slane %v3476, 4
        %v3791 = vadd.f32 %v3476, %v3790
        %v3792 = vrot.slane %v3791, 2
        %v3793 = vadd.f32 %v3791, %v3792
        %v3794 = vrot.slane %v3793, 1
        %v3795 = vadd.f32 %v3793, %v3794
        %v3796 = vrot.slane %v3477, 4
        %v3797 = vadd.f32 %v3477, %v3796
        %v3798 = vrot.slane %v3797, 2
        %v3799 = vadd.f32 %v3797, %v3798
        %v3800 = vrot.slane %v3799, 1
        %v3801 = vadd.f32 %v3799, %v3800
        %v3802 = vrot.slane %v3478, 4
        %v3803 = vadd.f32 %v3478, %v3802
        %v3804 = vrot.slane %v3803, 2
        %v3805 = vadd.f32 %v3803, %v3804
        %v3806 = vrot.slane %v3805, 1
        %v3807 = vadd.f32 %v3805, %v3806
        %v3808 = vrot.slane %v3479, 4
        %v3809 = vadd.f32 %v3479, %v3808
        %v3810 = vrot.slane %v3809, 2
        %v3811 = vadd.f32 %v3809, %v3810
        %v3812 = vrot.slane %v3811, 1
        %v3813 = vadd.f32 %v3811, %v3812
        %v3814 = vrot.slane %v3480, 4
        %v3815 = vadd.f32 %v3480, %v3814
        %v3816 = vrot.slane %v3815, 2
        %v3817 = vadd.f32 %v3815, %v3816
        %v3818 = vrot.slane %v3817, 1
        %v3819 = vadd.f32 %v3817, %v3818
        %v3820 = vrot.slane %v3481, 4
        %v3821 = vadd.f32 %v3481, %v3820
        %v3822 = vrot.slane %v3821, 2
        %v3823 = vadd.f32 %v3821, %v3822
        %v3824 = vrot.slane %v3823, 1
        %v3825 = vadd.f32 %v3823, %v3824
        %v3826 = vrot.slane %v3482, 4
        %v3827 = vadd.f32 %v3482, %v3826
        %v3828 = vrot.slane %v3827, 2
        %v3829 = vadd.f32 %v3827, %v3828
        %v3830 = vrot.slane %v3829, 1
        %v3831 = vadd.f32 %v3829, %v3830
        %v3832 = vrot.slane %v3483, 4
        %v3833 = vadd.f32 %v3483, %v3832
        %v3834 = vrot.slane %v3833, 2
        %v3835 = vadd.f32 %v3833, %v3834
        %v3836 = vrot.slane %v3835, 1
        %v3837 = vadd.f32 %v3835, %v3836
        %v3838 = vrot.slane %v3484, 4
        %v3839 = vadd.f32 %v3484, %v3838
        %v3840 = vrot.slane %v3839, 2
        %v3841 = vadd.f32 %v3839, %v3840
        %v3842 = vrot.slane %v3841, 1
        %v3843 = vadd.f32 %v3841, %v3842
        %v3844 = vrot.slane %v3485, 4
        %v3845 = vadd.f32 %v3485, %v3844
        %v3846 = vrot.slane %v3845, 2
        %v3847 = vadd.f32 %v3845, %v3846
        %v3848 = vrot.slane %v3847, 1
        %v3849 = vadd.f32 %v3847, %v3848
        %v3850 = vrot.slane %v3486, 4
        %v3851 = vadd.f32 %v3486, %v3850
        %v3852 = vrot.slane %v3851, 2
        %v3853 = vadd.f32 %v3851, %v3852
        %v3854 = vrot.slane %v3853, 1
        %v3855 = vadd.f32 %v3853, %v3854
        %v3856 = vrot.slane %v3487, 4
        %v3857 = vadd.f32 %v3487, %v3856
        %v3858 = vrot.slane %v3857, 2
        %v3859 = vadd.f32 %v3857, %v3858
        %v3860 = vrot.slane %v3859, 1
        %v3861 = vadd.f32 %v3859, %v3860
        %v3862 = vrot.slane %v3488, 4
        %v3863 = vadd.f32 %v3488, %v3862
        %v3864 = vrot.slane %v3863, 2
        %v3865 = vadd.f32 %v3863, %v3864
        %v3866 = vrot.slane %v3865, 1
        %v3867 = vadd.f32 %v3865, %v3866
        %v3868 = vrot.slane %v3489, 4
        %v3869 = vadd.f32 %v3489, %v3868
        %v3870 = vrot.slane %v3869, 2
        %v3871 = vadd.f32 %v3869, %v3870
        %v3872 = vrot.slane %v3871, 1
        %v3873 = vadd.f32 %v3871, %v3872
        %3875 = vset.pattern.permute.xlu0 0
        %3876 = vperm.xlu0 %3875, %v3262
        %v3877 = vpop.permute.xlu0 %3876
        %3879 = vset.pattern.permute.xlu0 0
        %3880 = vperm.xlu0 %3879, %v3263
        %v3881 = vpop.permute.xlu0 %3880
        %3883 = vset.pattern.permute.xlu0 0
        %3884 = vperm.xlu0 %3883, %v3264
        %v3885 = vpop.permute.xlu0 %3884
        %3887 = vset.pattern.permute.xlu0 0
        %3888 = vperm.xlu0 %3887, %v3265
        %v3889 = vpop.permute.xlu0 %3888
        %v3890 = vrot.slane %v3877, 1
        %v3891 = vrot.slane %v3877, 2
        %v3892 = vrot.slane %v3877, 3
        %v3893 = vrot.slane %v3877, 4
        %v3894 = vrot.slane %v3877, 5
        %v3895 = vrot.slane %v3877, 6
        %v3896 = vrot.slane %v3877, 7
        %v3897 = vrot.slane %v3881, 1
        %v3898 = vrot.slane %v3881, 2
        %v3899 = vrot.slane %v3881, 3
        %v3900 = vrot.slane %v3881, 4
        %v3901 = vrot.slane %v3881, 5
        %v3902 = vrot.slane %v3881, 6
        %v3903 = vrot.slane %v3881, 7
        %v3904 = vrot.slane %v3885, 1
        %v3905 = vrot.slane %v3885, 2
        %v3906 = vrot.slane %v3885, 3
        %v3907 = vrot.slane %v3885, 4
        %v3908 = vrot.slane %v3885, 5
        %v3909 = vrot.slane %v3885, 6
        %v3910 = vrot.slane %v3885, 7
        %v3911 = vrot.slane %v3889, 1
        %v3912 = vrot.slane %v3889, 2
        %v3913 = vrot.slane %v3889, 3
        %v3914 = vrot.slane %v3889, 4
        %v3915 = vrot.slane %v3889, 5
        %v3916 = vrot.slane %v3889, 6
        %v3917 = vrot.slane %v3889, 7
        %v3950 = vadd.f32 %v3495, %v3877
        %v3951 = vadd.f32 %v3501, %v3877
        %v3952 = vadd.f32 %v3507, %v3890
        %v3953 = vadd.f32 %v3513, %v3890
        %v3954 = vadd.f32 %v3519, %v3891
        %v3955 = vadd.f32 %v3525, %v3891
        %v3956 = vadd.f32 %v3531, %v3892
        %v3957 = vadd.f32 %v3537, %v3892
        %v3958 = vadd.f32 %v3543, %v3893
        %v3959 = vadd.f32 %v3549, %v3893
        %v3960 = vadd.f32 %v3555, %v3894
        %v3961 = vadd.f32 %v3561, %v3894
        %v3962 = vadd.f32 %v3567, %v3895
        %v3963 = vadd.f32 %v3573, %v3895
        %v3964 = vadd.f32 %v3579, %v3896
        %v3965 = vadd.f32 %v3585, %v3896
        %v3966 = vadd.f32 %v3591, %v3881
        %v3967 = vadd.f32 %v3597, %v3881
        %v3968 = vadd.f32 %v3603, %v3897
        %v3969 = vadd.f32 %v3609, %v3897
        %v3970 = vadd.f32 %v3615, %v3898
        %v3971 = vadd.f32 %v3621, %v3898
        %v3972 = vadd.f32 %v3627, %v3899
        %v3973 = vadd.f32 %v3633, %v3899
        %v3974 = vadd.f32 %v3639, %v3900
        %v3975 = vadd.f32 %v3645, %v3900
        %v3976 = vadd.f32 %v3651, %v3901
        %v3977 = vadd.f32 %v3657, %v3901
        %v3978 = vadd.f32 %v3663, %v3902
        %v3979 = vadd.f32 %v3669, %v3902
        %v3980 = vadd.f32 %v3675, %v3903
        %v3981 = vadd.f32 %v3681, %v3903
        %v3982 = vadd.f32 %v3687, %v3885
        %v3983 = vadd.f32 %v3693, %v3885
        %v3984 = vadd.f32 %v3699, %v3904
        %v3985 = vadd.f32 %v3705, %v3904
        %v3986 = vadd.f32 %v3711, %v3905
        %v3987 = vadd.f32 %v3717, %v3905
        %v3988 = vadd.f32 %v3723, %v3906
        %v3989 = vadd.f32 %v3729, %v3906
        %v3990 = vadd.f32 %v3735, %v3907
        %v3991 = vadd.f32 %v3741, %v3907
        %v3992 = vadd.f32 %v3747, %v3908
        %v3993 = vadd.f32 %v3753, %v3908
        %v3994 = vadd.f32 %v3759, %v3909
        %v3995 = vadd.f32 %v3765, %v3909
        %v3996 = vadd.f32 %v3771, %v3910
        %v3997 = vadd.f32 %v3777, %v3910
        %v3998 = vadd.f32 %v3783, %v3889
        %v3999 = vadd.f32 %v3789, %v3889
        %v4000 = vadd.f32 %v3795, %v3911
        %v4001 = vadd.f32 %v3801, %v3911
        %v4002 = vadd.f32 %v3807, %v3912
        %v4003 = vadd.f32 %v3813, %v3912
        %v4004 = vadd.f32 %v3819, %v3913
        %v4005 = vadd.f32 %v3825, %v3913
        %v4006 = vadd.f32 %v3831, %v3914
        %v4007 = vadd.f32 %v3837, %v3914
        %v4008 = vadd.f32 %v3843, %v3915
        %v4009 = vadd.f32 %v3849, %v3915
        %v4010 = vadd.f32 %v3855, %v3916
        %v4011 = vadd.f32 %v3861, %v3916
        %v4012 = vadd.f32 %v3867, %v3917
        %v4013 = vadd.f32 %v3873, %v3917
        %vm4014 = vcmp.gt.f32.partialorder %v3950, 0.0
        %vm4015 = vcmp.gt.f32.partialorder %v3951, 0.0
        %vm4016 = vcmp.gt.f32.partialorder %v3952, 0.0
        %vm4017 = vcmp.gt.f32.partialorder %v3953, 0.0
        %vm4018 = vcmp.gt.f32.partialorder %v3954, 0.0
        %vm4019 = vcmp.gt.f32.partialorder %v3955, 0.0
        %vm4020 = vcmp.gt.f32.partialorder %v3956, 0.0
        %vm4021 = vcmp.gt.f32.partialorder %v3957, 0.0
        %vm4022 = vcmp.gt.f32.partialorder %v3958, 0.0
        %vm4023 = vcmp.gt.f32.partialorder %v3959, 0.0
        %vm4024 = vcmp.gt.f32.partialorder %v3960, 0.0
        %vm4025 = vcmp.gt.f32.partialorder %v3961, 0.0
        %vm4026 = vcmp.gt.f32.partialorder %v3962, 0.0
        %vm4027 = vcmp.gt.f32.partialorder %v3963, 0.0
        %vm4028 = vcmp.gt.f32.partialorder %v3964, 0.0
        %vm4029 = vcmp.gt.f32.partialorder %v3965, 0.0
        %vm4030 = vcmp.gt.f32.partialorder %v3966, 0.0
        %vm4031 = vcmp.gt.f32.partialorder %v3967, 0.0
        %vm4032 = vcmp.gt.f32.partialorder %v3968, 0.0
        %vm4033 = vcmp.gt.f32.partialorder %v3969, 0.0
        %vm4034 = vcmp.gt.f32.partialorder %v3970, 0.0
        %vm4035 = vcmp.gt.f32.partialorder %v3971, 0.0
        %vm4036 = vcmp.gt.f32.partialorder %v3972, 0.0
        %vm4037 = vcmp.gt.f32.partialorder %v3973, 0.0
        %vm4038 = vcmp.gt.f32.partialorder %v3974, 0.0
        %vm4039 = vcmp.gt.f32.partialorder %v3975, 0.0
        %vm4040 = vcmp.gt.f32.partialorder %v3976, 0.0
        %vm4041 = vcmp.gt.f32.partialorder %v3977, 0.0
        %vm4042 = vcmp.gt.f32.partialorder %v3978, 0.0
        %vm4043 = vcmp.gt.f32.partialorder %v3979, 0.0
        %vm4044 = vcmp.gt.f32.partialorder %v3980, 0.0
        %vm4045 = vcmp.gt.f32.partialorder %v3981, 0.0
        %vm4046 = vcmp.gt.f32.partialorder %v3982, 0.0
        %vm4047 = vcmp.gt.f32.partialorder %v3983, 0.0
        %vm4048 = vcmp.gt.f32.partialorder %v3984, 0.0
        %vm4049 = vcmp.gt.f32.partialorder %v3985, 0.0
        %vm4050 = vcmp.gt.f32.partialorder %v3986, 0.0
        %vm4051 = vcmp.gt.f32.partialorder %v3987, 0.0
        %vm4052 = vcmp.gt.f32.partialorder %v3988, 0.0
        %vm4053 = vcmp.gt.f32.partialorder %v3989, 0.0
        %vm4054 = vcmp.gt.f32.partialorder %v3990, 0.0
        %vm4055 = vcmp.gt.f32.partialorder %v3991, 0.0
        %vm4056 = vcmp.gt.f32.partialorder %v3992, 0.0
        %vm4057 = vcmp.gt.f32.partialorder %v3993, 0.0
        %vm4058 = vcmp.gt.f32.partialorder %v3994, 0.0
        %vm4059 = vcmp.gt.f32.partialorder %v3995, 0.0
        %vm4060 = vcmp.gt.f32.partialorder %v3996, 0.0
        %vm4061 = vcmp.gt.f32.partialorder %v3997, 0.0
        %vm4062 = vcmp.gt.f32.partialorder %v3998, 0.0
        %vm4063 = vcmp.gt.f32.partialorder %v3999, 0.0
        %vm4064 = vcmp.gt.f32.partialorder %v4000, 0.0
        %vm4065 = vcmp.gt.f32.partialorder %v4001, 0.0
        %vm4066 = vcmp.gt.f32.partialorder %v4002, 0.0
        %vm4067 = vcmp.gt.f32.partialorder %v4003, 0.0
        %vm4068 = vcmp.gt.f32.partialorder %v4004, 0.0
        %vm4069 = vcmp.gt.f32.partialorder %v4005, 0.0
        %vm4070 = vcmp.gt.f32.partialorder %v4006, 0.0
        %vm4071 = vcmp.gt.f32.partialorder %v4007, 0.0
        %vm4072 = vcmp.gt.f32.partialorder %v4008, 0.0
        %vm4073 = vcmp.gt.f32.partialorder %v4009, 0.0
        %vm4074 = vcmp.gt.f32.partialorder %v4010, 0.0
        %vm4075 = vcmp.gt.f32.partialorder %v4011, 0.0
        %vm4076 = vcmp.gt.f32.partialorder %v4012, 0.0
        %vm4077 = vcmp.gt.f32.partialorder %v4013, 0.0
        %v4078 = vmul.f32 %v3950, 0.01
        %v4079 = vmul.f32 %v3951, 0.01
        %v4080 = vmul.f32 %v3952, 0.01
        %v4081 = vmul.f32 %v3953, 0.01
        %v4082 = vmul.f32 %v3954, 0.01
        %v4083 = vmul.f32 %v3955, 0.01
        %v4084 = vmul.f32 %v3956, 0.01
        %v4085 = vmul.f32 %v3957, 0.01
        %v4086 = vmul.f32 %v3958, 0.01
        %v4087 = vmul.f32 %v3959, 0.01
        %v4088 = vmul.f32 %v3960, 0.01
        %v4089 = vmul.f32 %v3961, 0.01
        %v4090 = vmul.f32 %v3962, 0.01
        %v4091 = vmul.f32 %v3963, 0.01
        %v4092 = vmul.f32 %v3964, 0.01
        %v4093 = vmul.f32 %v3965, 0.01
        %v4094 = vmul.f32 %v3966, 0.01
        %v4095 = vmul.f32 %v3967, 0.01
        %v4096 = vmul.f32 %v3968, 0.01
        %v4097 = vmul.f32 %v3969, 0.01
        %v4098 = vmul.f32 %v3970, 0.01
        %v4099 = vmul.f32 %v3971, 0.01
        %v4100 = vmul.f32 %v3972, 0.01
        %v4101 = vmul.f32 %v3973, 0.01
        %v4102 = vmul.f32 %v3974, 0.01
        %v4103 = vmul.f32 %v3975, 0.01
        %v4104 = vmul.f32 %v3976, 0.01
        %v4105 = vmul.f32 %v3977, 0.01
        %v4106 = vmul.f32 %v3978, 0.01
        %v4107 = vmul.f32 %v3979, 0.01
        %v4108 = vmul.f32 %v3980, 0.01
        %v4109 = vmul.f32 %v3981, 0.01
        %v4110 = vmul.f32 %v3982, 0.01
        %v4111 = vmul.f32 %v3983, 0.01
        %v4112 = vmul.f32 %v3984, 0.01
        %v4113 = vmul.f32 %v3985, 0.01
        %v4114 = vmul.f32 %v3986, 0.01
        %v4115 = vmul.f32 %v3987, 0.01
        %v4116 = vmul.f32 %v3988, 0.01
        %v4117 = vmul.f32 %v3989, 0.01
        %v4118 = vmul.f32 %v3990, 0.01
        %v4119 = vmul.f32 %v3991, 0.01
        %v4120 = vmul.f32 %v3992, 0.01
        %v4121 = vmul.f32 %v3993, 0.01
        %v4122 = vmul.f32 %v3994, 0.01
        %v4123 = vmul.f32 %v3995, 0.01
        %v4124 = vmul.f32 %v3996, 0.01
        %v4125 = vmul.f32 %v3997, 0.01
        %v4126 = vmul.f32 %v3998, 0.01
        %v4127 = vmul.f32 %v3999, 0.01
        %v4128 = vmul.f32 %v4000, 0.01
        %v4129 = vmul.f32 %v4001, 0.01
        %v4130 = vmul.f32 %v4002, 0.01
        %v4131 = vmul.f32 %v4003, 0.01
        %v4132 = vmul.f32 %v4004, 0.01
        %v4133 = vmul.f32 %v4005, 0.01
        %v4134 = vmul.f32 %v4006, 0.01
        %v4135 = vmul.f32 %v4007, 0.01
        %v4136 = vmul.f32 %v4008, 0.01
        %v4137 = vmul.f32 %v4009, 0.01
        %v4138 = vmul.f32 %v4010, 0.01
        %v4139 = vmul.f32 %v4011, 0.01
        %v4140 = vmul.f32 %v4012, 0.01
        %v4141 = vmul.f32 %v4013, 0.01
        %v4142 = vsel %vm4014, %v3950, %v4078
        %v4143 = vsel %vm4015, %v3951, %v4079
        %v4144 = vsel %vm4016, %v3952, %v4080
        %v4145 = vsel %vm4017, %v3953, %v4081
        %v4146 = vsel %vm4018, %v3954, %v4082
        %v4147 = vsel %vm4019, %v3955, %v4083
        %v4148 = vsel %vm4020, %v3956, %v4084
        %v4149 = vsel %vm4021, %v3957, %v4085
        %v4150 = vsel %vm4022, %v3958, %v4086
        %v4151 = vsel %vm4023, %v3959, %v4087
        %v4152 = vsel %vm4024, %v3960, %v4088
        %v4153 = vsel %vm4025, %v3961, %v4089
        %v4154 = vsel %vm4026, %v3962, %v4090
        %v4155 = vsel %vm4027, %v3963, %v4091
        %v4156 = vsel %vm4028, %v3964, %v4092
        %v4157 = vsel %vm4029, %v3965, %v4093
        %v4158 = vsel %vm4030, %v3966, %v4094
        %v4159 = vsel %vm4031, %v3967, %v4095
        %v4160 = vsel %vm4032, %v3968, %v4096
        %v4161 = vsel %vm4033, %v3969, %v4097
        %v4162 = vsel %vm4034, %v3970, %v4098
        %v4163 = vsel %vm4035, %v3971, %v4099
        %v4164 = vsel %vm4036, %v3972, %v4100
        %v4165 = vsel %vm4037, %v3973, %v4101
        %v4166 = vsel %vm4038, %v3974, %v4102
        %v4167 = vsel %vm4039, %v3975, %v4103
        %v4168 = vsel %vm4040, %v3976, %v4104
        %v4169 = vsel %vm4041, %v3977, %v4105
        %v4170 = vsel %vm4042, %v3978, %v4106
        %v4171 = vsel %vm4043, %v3979, %v4107
        %v4172 = vsel %vm4044, %v3980, %v4108
        %v4173 = vsel %vm4045, %v3981, %v4109
        %v4174 = vsel %vm4046, %v3982, %v4110
        %v4175 = vsel %vm4047, %v3983, %v4111
        %v4176 = vsel %vm4048, %v3984, %v4112
        %v4177 = vsel %vm4049, %v3985, %v4113
        %v4178 = vsel %vm4050, %v3986, %v4114
        %v4179 = vsel %vm4051, %v3987, %v4115
        %v4180 = vsel %vm4052, %v3988, %v4116
        %v4181 = vsel %vm4053, %v3989, %v4117
        %v4182 = vsel %vm4054, %v3990, %v4118
        %v4183 = vsel %vm4055, %v3991, %v4119
        %v4184 = vsel %vm4056, %v3992, %v4120
        %v4185 = vsel %vm4057, %v3993, %v4121
        %v4186 = vsel %vm4058, %v3994, %v4122
        %v4187 = vsel %vm4059, %v3995, %v4123
        %v4188 = vsel %vm4060, %v3996, %v4124
        %v4189 = vsel %vm4061, %v3997, %v4125
        %v4190 = vsel %vm4062, %v3998, %v4126
        %v4191 = vsel %vm4063, %v3999, %v4127
        %v4192 = vsel %vm4064, %v4000, %v4128
        %v4193 = vsel %vm4065, %v4001, %v4129
        %v4194 = vsel %vm4066, %v4002, %v4130
        %v4195 = vsel %vm4067, %v4003, %v4131
        %v4196 = vsel %vm4068, %v4004, %v4132
        %v4197 = vsel %vm4069, %v4005, %v4133
        %v4198 = vsel %vm4070, %v4006, %v4134
        %v4199 = vsel %vm4071, %v4007, %v4135
        %v4200 = vsel %vm4072, %v4008, %v4136
        %v4201 = vsel %vm4073, %v4009, %v4137
        %v4202 = vsel %vm4074, %v4010, %v4138
        %v4203 = vsel %vm4075, %v4011, %v4139
        %v4204 = vsel %vm4076, %v4012, %v4140
        %v4205 = vsel %vm4077, %v4013, %v4141
        %v4206 = vld [vmem:[%s4] sm:$0xff]
        %v4207 = vld [vmem:[%s4 + $0x8] sm:$0xff]
        %v4208 = vld [vmem:[%s4 + $0x10] sm:$0xff]
        %v4209 = vld [vmem:[%s4 + $0x18] sm:$0xff]
        %v4210 = vld [vmem:[%s4 + $0x20] sm:$0xff]
        %v4211 = vld [vmem:[%s4 + $0x28] sm:$0xff]
        %v4212 = vld [vmem:[%s4 + $0x30] sm:$0xff]
        %v4213 = vld [vmem:[%s4 + $0x38] sm:$0xff]
        %v4214 = vld [vmem:[%s4 + $0x40] sm:$0xff]
        %v4215 = vld [vmem:[%s4 + $0x48] sm:$0xff]
        %v4216 = vld [vmem:[%s4 + $0x50] sm:$0xff]
        %v4217 = vld [vmem:[%s4 + $0x58] sm:$0xff]
        %v4218 = vld [vmem:[%s4 + $0x60] sm:$0xff]
        %v4219 = vld [vmem:[%s4 + $0x68] sm:$0xff]
        %v4220 = vld [vmem:[%s4 + $0x70] sm:$0xff]
        %v4221 = vld [vmem:[%s4 + $0x78] sm:$0xff]
        %v4222 = vld [vmem:[%s4 + $0x80] sm:$0xff]
        %v4223 = vld [vmem:[%s4 + $0x88] sm:$0xff]
        %v4224 = vld [vmem:[%s4 + $0x90] sm:$0xff]
        %v4225 = vld [vmem:[%s4 + $0x98] sm:$0xff]
        %v4226 = vld [vmem:[%s4 + $0xa0] sm:$0xff]
        %v4227 = vld [vmem:[%s4 + $0xa8] sm:$0xff]
        %v4228 = vld [vmem:[%s4 + $0xb0] sm:$0xff]
        %v4229 = vld [vmem:[%s4 + $0xb8] sm:$0xff]
        %v4230 = vld [vmem:[%s4 + $0xc0] sm:$0xff]
        %v4231 = vld [vmem:[%s4 + $0xc8] sm:$0xff]
        %v4232 = vld [vmem:[%s4 + $0xd0] sm:$0xff]
        %v4233 = vld [vmem:[%s4 + $0xd8] sm:$0xff]
        %v4234 = vld [vmem:[%s4 + $0xe0] sm:$0xff]
        %v4235 = vld [vmem:[%s4 + $0xe8] sm:$0xff]
        %v4236 = vld [vmem:[%s4 + $0xf0] sm:$0xff]
        %v4237 = vld [vmem:[%s4 + $0xf8] sm:$0xff]
        %v4238 = vld [vmem:[%s6] sm:$0xff]
        %v4239 = vld [vmem:[%s6 + $0x8] sm:$0xff]
        %v4240 = vld [vmem:[%s6 + $0x10] sm:$0xff]
        %v4241 = vld [vmem:[%s6 + $0x18] sm:$0xff]
        %v4242 = vld [vmem:[%s6 + $0x20] sm:$0xff]
        %v4243 = vld [vmem:[%s6 + $0x28] sm:$0xff]
        %v4244 = vld [vmem:[%s6 + $0x30] sm:$0xff]
        %v4245 = vld [vmem:[%s6 + $0x38] sm:$0xff]
        %v4246 = vld [vmem:[%s6 + $0x40] sm:$0xff]
        %v4247 = vld [vmem:[%s6 + $0x48] sm:$0xff]
        %v4248 = vld [vmem:[%s6 + $0x50] sm:$0xff]
        %v4249 = vld [vmem:[%s6 + $0x58] sm:$0xff]
        %v4250 = vld [vmem:[%s6 + $0x60] sm:$0xff]
        %v4251 = vld [vmem:[%s6 + $0x68] sm:$0xff]
        %v4252 = vld [vmem:[%s6 + $0x70] sm:$0xff]
        %v4253 = vld [vmem:[%s6 + $0x78] sm:$0xff]
        %v4254 = vld [vmem:[%s6 + $0x80] sm:$0xff]
        %v4255 = vld [vmem:[%s6 + $0x88] sm:$0xff]
        %v4256 = vld [vmem:[%s6 + $0x90] sm:$0xff]
        %v4257 = vld [vmem:[%s6 + $0x98] sm:$0xff]
        %v4258 = vld [vmem:[%s6 + $0xa0] sm:$0xff]
        %v4259 = vld [vmem:[%s6 + $0xa8] sm:$0xff]
        %v4260 = vld [vmem:[%s6 + $0xb0] sm:$0xff]
        %v4261 = vld [vmem:[%s6 + $0xb8] sm:$0xff]
        %v4262 = vld [vmem:[%s6 + $0xc0] sm:$0xff]
        %v4263 = vld [vmem:[%s6 + $0xc8] sm:$0xff]
        %v4264 = vld [vmem:[%s6 + $0xd0] sm:$0xff]
        %v4265 = vld [vmem:[%s6 + $0xd8] sm:$0xff]
        %v4266 = vld [vmem:[%s6 + $0xe0] sm:$0xff]
        %v4267 = vld [vmem:[%s6 + $0xe8] sm:$0xff]
        %v4268 = vld [vmem:[%s6 + $0xf0] sm:$0xff]
        %v4269 = vld [vmem:[%s6 + $0xf8] sm:$0xff]
        %v4270 = vld [vmem:[%s5] sm:$0xff]
        %v4271 = vld [vmem:[%s7] sm:$0xff]
        %4273 = vset.pattern.permute.xlu0 0
        %4274 = vperm.xlu0 %4273, %v4206
        %v4275 = vpop.permute.xlu0 %4274
        %4278 = vset.pattern.permute.xlu0 0
        %4279 = vperm.xlu0 %4278, %v4207
        %v4280 = vpop.permute.xlu0 %4279
        %4283 = vset.pattern.permute.xlu0 0
        %4284 = vperm.xlu0 %4283, %v4208
        %v4285 = vpop.permute.xlu0 %4284
        %4288 = vset.pattern.permute.xlu0 0
        %4289 = vperm.xlu0 %4288, %v4209
        %v4290 = vpop.permute.xlu0 %4289
        %4293 = vset.pattern.permute.xlu0 0
        %4294 = vperm.xlu0 %4293, %v4210
        %v4295 = vpop.permute.xlu0 %4294
        %4298 = vset.pattern.permute.xlu0 0
        %4299 = vperm.xlu0 %4298, %v4211
        %v4300 = vpop.permute.xlu0 %4299
        %4303 = vset.pattern.permute.xlu0 0
        %4304 = vperm.xlu0 %4303, %v4212
        %v4305 = vpop.permute.xlu0 %4304
        %4308 = vset.pattern.permute.xlu0 0
        %4309 = vperm.xlu0 %4308, %v4213
        %v4310 = vpop.permute.xlu0 %4309
        %4313 = vset.pattern.permute.xlu0 0
        %4314 = vperm.xlu0 %4313, %v4214
        %v4315 = vpop.permute.xlu0 %4314
        %4318 = vset.pattern.permute.xlu0 0
        %4319 = vperm.xlu0 %4318, %v4215
        %v4320 = vpop.permute.xlu0 %4319
        %4323 = vset.pattern.permute.xlu0 0
        %4324 = vperm.xlu0 %4323, %v4216
        %v4325 = vpop.permute.xlu0 %4324
        %4328 = vset.pattern.permute.xlu0 0
        %4329 = vperm.xlu0 %4328, %v4217
        %v4330 = vpop.permute.xlu0 %4329
        %4333 = vset.pattern.permute.xlu0 0
        %4334 = vperm.xlu0 %4333, %v4218
        %v4335 = vpop.permute.xlu0 %4334
        %4338 = vset.pattern.permute.xlu0 0
        %4339 = vperm.xlu0 %4338, %v4219
        %v4340 = vpop.permute.xlu0 %4339
        %4343 = vset.pattern.permute.xlu0 0
        %4344 = vperm.xlu0 %4343, %v4220
        %v4345 = vpop.permute.xlu0 %4344
        %4348 = vset.pattern.permute.xlu0 0
        %4349 = vperm.xlu0 %4348, %v4221
        %v4350 = vpop.permute.xlu0 %4349
        %4353 = vset.pattern.permute.xlu0 0
        %4354 = vperm.xlu0 %4353, %v4222
        %v4355 = vpop.permute.xlu0 %4354
        %4358 = vset.pattern.permute.xlu0 0
        %4359 = vperm.xlu0 %4358, %v4223
        %v4360 = vpop.permute.xlu0 %4359
        %4363 = vset.pattern.permute.xlu0 0
        %4364 = vperm.xlu0 %4363, %v4224
        %v4365 = vpop.permute.xlu0 %4364
        %4368 = vset.pattern.permute.xlu0 0
        %4369 = vperm.xlu0 %4368, %v4225
        %v4370 = vpop.permute.xlu0 %4369
        %4373 = vset.pattern.permute.xlu0 0
        %4374 = vperm.xlu0 %4373, %v4226
        %v4375 = vpop.permute.xlu0 %4374
        %4378 = vset.pattern.permute.xlu0 0
        %4379 = vperm.xlu0 %4378, %v4227
        %v4380 = vpop.permute.xlu0 %4379
        %4383 = vset.pattern.permute.xlu0 0
        %4384 = vperm.xlu0 %4383, %v4228
        %v4385 = vpop.permute.xlu0 %4384
        %4388 = vset.pattern.permute.xlu0 0
        %4389 = vperm.xlu0 %4388, %v4229
        %v4390 = vpop.permute.xlu0 %4389
        %4393 = vset.pattern.permute.xlu0 0
        %4394 = vperm.xlu0 %4393, %v4230
        %v4395 = vpop.permute.xlu0 %4394
        %4398 = vset.pattern.permute.xlu0 0
        %4399 = vperm.xlu0 %4398, %v4231
        %v4400 = vpop.permute.xlu0 %4399
        %4403 = vset.pattern.permute.xlu0 0
        %4404 = vperm.xlu0 %4403, %v4232
        %v4405 = vpop.permute.xlu0 %4404
        %4408 = vset.pattern.permute.xlu0 0
        %4409 = vperm.xlu0 %4408, %v4233
        %v4410 = vpop.permute.xlu0 %4409
        %4413 = vset.pattern.permute.xlu0 0
        %4414 = vperm.xlu0 %4413, %v4234
        %v4415 = vpop.permute.xlu0 %4414
        %4418 = vset.pattern.permute.xlu0 0
        %4419 = vperm.xlu0 %4418, %v4235
        %v4420 = vpop.permute.xlu0 %4419
        %4423 = vset.pattern.permute.xlu0 0
        %4424 = vperm.xlu0 %4423, %v4236
        %v4425 = vpop.permute.xlu0 %4424
        %4428 = vset.pattern.permute.xlu0 0
        %4429 = vperm.xlu0 %4428, %v4237
        %v4430 = vpop.permute.xlu0 %4429
        %v4496 = vrot.slane %v4144, 7
        %vm4497 = vcmask 1041409
        %v4498 = vsel %vm4497, %v4496, %v4142
        %v4499 = vrot.slane %v4146, 6
        %vm4500 = vcmask 1042434
        %v4501 = vsel %vm4500, %v4499, %v4498
        %v4502 = vrot.slane %v4148, 5
        %vm4503 = vcmask 1043459
        %v4504 = vsel %vm4503, %v4502, %v4501
        %v4505 = vrot.slane %v4150, 4
        %vm4506 = vcmask 1044484
        %v4507 = vsel %vm4506, %v4505, %v4504
        %v4508 = vrot.slane %v4152, 3
        %vm4509 = vcmask 1045509
        %v4510 = vsel %vm4509, %v4508, %v4507
        %v4511 = vrot.slane %v4154, 2
        %vm4512 = vcmask 1046534
        %v4513 = vsel %vm4512, %v4511, %v4510
        %v4514 = vrot.slane %v4156, 1
        %vm4515 = vcmask 1047559
        %v4516 = vsel %vm4515, %v4514, %v4513
        %v4517 = vrot.slane %v4145, 7
        %v4518 = vsel %vm4497, %v4517, %v4143
        %v4519 = vrot.slane %v4147, 6
        %v4520 = vsel %vm4500, %v4519, %v4518
        %v4521 = vrot.slane %v4149, 5
        %v4522 = vsel %vm4503, %v4521, %v4520
        %v4523 = vrot.slane %v4151, 4
        %v4524 = vsel %vm4506, %v4523, %v4522
        %v4525 = vrot.slane %v4153, 3
        %v4526 = vsel %vm4509, %v4525, %v4524
        %v4527 = vrot.slane %v4155, 2
        %v4528 = vsel %vm4512, %v4527, %v4526
        %v4529 = vrot.slane %v4157, 1
        %v4530 = vsel %vm4515, %v4529, %v4528
        %v4531 = vrot.slane %v4160, 7
        %v4532 = vsel %vm4497, %v4531, %v4158
        %v4533 = vrot.slane %v4162, 6
        %v4534 = vsel %vm4500, %v4533, %v4532
        %v4535 = vrot.slane %v4164, 5
        %v4536 = vsel %vm4503, %v4535, %v4534
        %v4537 = vrot.slane %v4166, 4
        %v4538 = vsel %vm4506, %v4537, %v4536
        %v4539 = vrot.slane %v4168, 3
        %v4540 = vsel %vm4509, %v4539, %v4538
        %v4541 = vrot.slane %v4170, 2
        %v4542 = vsel %vm4512, %v4541, %v4540
        %v4543 = vrot.slane %v4172, 1
        %v4544 = vsel %vm4515, %v4543, %v4542
        %v4545 = vrot.slane %v4161, 7
        %v4546 = vsel %vm4497, %v4545, %v4159
        %v4547 = vrot.slane %v4163, 6
        %v4548 = vsel %vm4500, %v4547, %v4546
        %v4549 = vrot.slane %v4165, 5
        %v4550 = vsel %vm4503, %v4549, %v4548
        %v4551 = vrot.slane %v4167, 4
        %v4552 = vsel %vm4506, %v4551, %v4550
        %v4553 = vrot.slane %v4169, 3
        %v4554 = vsel %vm4509, %v4553, %v4552
        %v4555 = vrot.slane %v4171, 2
        %v4556 = vsel %vm4512, %v4555, %v4554
        %v4557 = vrot.slane %v4173, 1
        %v4558 = vsel %vm4515, %v4557, %v4556
        %v4559 = vrot.slane %v4176, 7
        %v4560 = vsel %vm4497, %v4559, %v4174
        %v4561 = vrot.slane %v4178, 6
        %v4562 = vsel %vm4500, %v4561, %v4560
        %v4563 = vrot.slane %v4180, 5
        %v4564 = vsel %vm4503, %v4563, %v4562
        %v4565 = vrot.slane %v4182, 4
        %v4566 = vsel %vm4506, %v4565, %v4564
        %v4567 = vrot.slane %v4184, 3
        %v4568 = vsel %vm4509, %v4567, %v4566
        %v4569 = vrot.slane %v4186, 2
        %v4570 = vsel %vm4512, %v4569, %v4568
        %v4571 = vrot.slane %v4188, 1
        %v4572 = vsel %vm4515, %v4571, %v4570
        %v4573 = vrot.slane %v4177, 7
        %v4574 = vsel %vm4497, %v4573, %v4175
        %v4575 = vrot.slane %v4179, 6
        %v4576 = vsel %vm4500, %v4575, %v4574
        %v4577 = vrot.slane %v4181, 5
        %v4578 = vsel %vm4503, %v4577, %v4576
        %v4579 = vrot.slane %v4183, 4
        %v4580 = vsel %vm4506, %v4579, %v4578
        %v4581 = vrot.slane %v4185, 3
        %v4582 = vsel %vm4509, %v4581, %v4580
        %v4583 = vrot.slane %v4187, 2
        %v4584 = vsel %vm4512, %v4583, %v4582
        %v4585 = vrot.slane %v4189, 1
        %v4586 = vsel %vm4515, %v4585, %v4584
        %v4587 = vrot.slane %v4192, 7
        %v4588 = vsel %vm4497, %v4587, %v4190
        %v4589 = vrot.slane %v4194, 6
        %v4590 = vsel %vm4500, %v4589, %v4588
        %v4591 = vrot.slane %v4196, 5
        %v4592 = vsel %vm4503, %v4591, %v4590
        %v4593 = vrot.slane %v4198, 4
        %v4594 = vsel %vm4506, %v4593, %v4592
        %v4595 = vrot.slane %v4200, 3
        %v4596 = vsel %vm4509, %v4595, %v4594
        %v4597 = vrot.slane %v4202, 2
        %v4598 = vsel %vm4512, %v4597, %v4596
        %v4599 = vrot.slane %v4204, 1
        %v4600 = vsel %vm4515, %v4599, %v4598
        %v4601 = vrot.slane %v4193, 7
        %v4602 = vsel %vm4497, %v4601, %v4191
        %v4603 = vrot.slane %v4195, 6
        %v4604 = vsel %vm4500, %v4603, %v4602
        %v4605 = vrot.slane %v4197, 5
        %v4606 = vsel %vm4503, %v4605, %v4604
        %v4607 = vrot.slane %v4199, 4
        %v4608 = vsel %vm4506, %v4607, %v4606
        %v4609 = vrot.slane %v4201, 3
        %v4610 = vsel %vm4509, %v4609, %v4608
        %v4611 = vrot.slane %v4203, 2
        %v4612 = vsel %vm4512, %v4611, %v4610
        %v4613 = vrot.slane %v4205, 1
        %v4614 = vsel %vm4515, %v4613, %v4612
        %v4623 = vmul.f32 %v4275, %v4516
        %v4624 = vmul.f32 %v4275, %v4530
        %v4625 = vmul.f32 %v4280, %v4516
        %v4626 = vmul.f32 %v4280, %v4530
        %v4627 = vmul.f32 %v4285, %v4516
        %v4628 = vmul.f32 %v4285, %v4530
        %v4629 = vmul.f32 %v4290, %v4516
        %v4630 = vmul.f32 %v4290, %v4530
        %v4631 = vmul.f32 %v4295, %v4516
        %v4632 = vmul.f32 %v4295, %v4530
        %v4633 = vmul.f32 %v4300, %v4516
        %v4634 = vmul.f32 %v4300, %v4530
        %v4635 = vmul.f32 %v4305, %v4516
        %v4636 = vmul.f32 %v4305, %v4530
        %v4637 = vmul.f32 %v4310, %v4516
        %v4638 = vmul.f32 %v4310, %v4530
        %v4639 = vmul.f32 %v4315, %v4544
        %v4640 = vmul.f32 %v4315, %v4558
        %v4641 = vmul.f32 %v4320, %v4544
        %v4642 = vmul.f32 %v4320, %v4558
        %v4643 = vmul.f32 %v4325, %v4544
        %v4644 = vmul.f32 %v4325, %v4558
        %v4645 = vmul.f32 %v4330, %v4544
        %v4646 = vmul.f32 %v4330, %v4558
        %v4647 = vmul.f32 %v4335, %v4544
        %v4648 = vmul.f32 %v4335, %v4558
        %v4649 = vmul.f32 %v4340, %v4544
        %v4650 = vmul.f32 %v4340, %v4558
        %v4651 = vmul.f32 %v4345, %v4544
        %v4652 = vmul.f32 %v4345, %v4558
        %v4653 = vmul.f32 %v4350, %v4544
        %v4654 = vmul.f32 %v4350, %v4558
        %v4655 = vmul.f32 %v4355, %v4572
        %v4656 = vmul.f32 %v4355, %v4586
        %v4657 = vmul.f32 %v4360, %v4572
        %v4658 = vmul.f32 %v4360, %v4586
        %v4659 = vmul.f32 %v4365, %v4572
        %v4660 = vmul.f32 %v4365, %v4586
        %v4661 = vmul.f32 %v4370, %v4572
        %v4662 = vmul.f32 %v4370, %v4586
        %v4663 = vmul.f32 %v4375, %v4572
        %v4664 = vmul.f32 %v4375, %v4586
        %v4665 = vmul.f32 %v4380, %v4572
        %v4666 = vmul.f32 %v4380, %v4586
        %v4667 = vmul.f32 %v4385, %v4572
        %v4668 = vmul.f32 %v4385, %v4586
        %v4669 = vmul.f32 %v4390, %v4572
        %v4670 = vmul.f32 %v4390, %v4586
        %v4671 = vmul.f32 %v4395, %v4600
        %v4672 = vmul.f32 %v4395, %v4614
        %v4673 = vmul.f32 %v4400, %v4600
        %v4674 = vmul.f32 %v4400, %v4614
        %v4675 = vmul.f32 %v4405, %v4600
        %v4676 = vmul.f32 %v4405, %v4614
        %v4677 = vmul.f32 %v4410, %v4600
        %v4678 = vmul.f32 %v4410, %v4614
        %v4679 = vmul.f32 %v4415, %v4600
        %v4680 = vmul.f32 %v4415, %v4614
        %v4681 = vmul.f32 %v4420, %v4600
        %v4682 = vmul.f32 %v4420, %v4614
        %v4683 = vmul.f32 %v4425, %v4600
        %v4684 = vmul.f32 %v4425, %v4614
        %v4685 = vmul.f32 %v4430, %v4600
        %v4686 = vmul.f32 %v4430, %v4614
        %v4687 = vadd.f32 %v4623, %v4639
        %v4688 = vadd.f32 %v4687, %v4655
        %v4689 = vadd.f32 %v4688, %v4671
        %v4690 = vadd.f32 %v4624, %v4640
        %v4691 = vadd.f32 %v4690, %v4656
        %v4692 = vadd.f32 %v4691, %v4672
        %v4693 = vadd.f32 %v4625, %v4641
        %v4694 = vadd.f32 %v4693, %v4657
        %v4695 = vadd.f32 %v4694, %v4673
        %v4696 = vadd.f32 %v4626, %v4642
        %v4697 = vadd.f32 %v4696, %v4658
        %v4698 = vadd.f32 %v4697, %v4674
        %v4699 = vadd.f32 %v4627, %v4643
        %v4700 = vadd.f32 %v4699, %v4659
        %v4701 = vadd.f32 %v4700, %v4675
        %v4702 = vadd.f32 %v4628, %v4644
        %v4703 = vadd.f32 %v4702, %v4660
        %v4704 = vadd.f32 %v4703, %v4676
        %v4705 = vadd.f32 %v4629, %v4645
        %v4706 = vadd.f32 %v4705, %v4661
        %v4707 = vadd.f32 %v4706, %v4677
        %v4708 = vadd.f32 %v4630, %v4646
        %v4709 = vadd.f32 %v4708, %v4662
        %v4710 = vadd.f32 %v4709, %v4678
        %v4711 = vadd.f32 %v4631, %v4647
        %v4712 = vadd.f32 %v4711, %v4663
        %v4713 = vadd.f32 %v4712, %v4679
        %v4714 = vadd.f32 %v4632, %v4648
        %v4715 = vadd.f32 %v4714, %v4664
        %v4716 = vadd.f32 %v4715, %v4680
        %v4717 = vadd.f32 %v4633, %v4649
        %v4718 = vadd.f32 %v4717, %v4665
        %v4719 = vadd.f32 %v4718, %v4681
        %v4720 = vadd.f32 %v4634, %v4650
        %v4721 = vadd.f32 %v4720, %v4666
        %v4722 = vadd.f32 %v4721, %v4682
        %v4723 = vadd.f32 %v4635, %v4651
        %v4724 = vadd.f32 %v4723, %v4667
        %v4725 = vadd.f32 %v4724, %v4683
        %v4726 = vadd.f32 %v4636, %v4652
        %v4727 = vadd.f32 %v4726, %v4668
        %v4728 = vadd.f32 %v4727, %v4684
        %v4729 = vadd.f32 %v4637, %v4653
        %v4730 = vadd.f32 %v4729, %v4669
        %v4731 = vadd.f32 %v4730, %v4685
        %v4732 = vadd.f32 %v4638, %v4654
        %v4733 = vadd.f32 %v4732, %v4670
        %v4734 = vadd.f32 %v4733, %v4686
        %4736 = vset.pattern.permute.xlu0 0
        %4737 = vperm.xlu0 %4736, %v4238
        %v4738 = vpop.permute.xlu0 %4737
        %4741 = vset.pattern.permute.xlu0 0
        %4742 = vperm.xlu0 %4741, %v4239
        %v4743 = vpop.permute.xlu0 %4742
        %4746 = vset.pattern.permute.xlu0 0
        %4747 = vperm.xlu0 %4746, %v4240
        %v4748 = vpop.permute.xlu0 %4747
        %4751 = vset.pattern.permute.xlu0 0
        %4752 = vperm.xlu0 %4751, %v4241
        %v4753 = vpop.permute.xlu0 %4752
        %4756 = vset.pattern.permute.xlu0 0
        %4757 = vperm.xlu0 %4756, %v4242
        %v4758 = vpop.permute.xlu0 %4757
        %4761 = vset.pattern.permute.xlu0 0
        %4762 = vperm.xlu0 %4761, %v4243
        %v4763 = vpop.permute.xlu0 %4762
        %4766 = vset.pattern.permute.xlu0 0
        %4767 = vperm.xlu0 %4766, %v4244
        %v4768 = vpop.permute.xlu0 %4767
        %4771 = vset.pattern.permute.xlu0 0
        %4772 = vperm.xlu0 %4771, %v4245
        %v4773 = vpop.permute.xlu0 %4772
        %4776 = vset.pattern.permute.xlu0 0
        %4777 = vperm.xlu0 %4776, %v4246
        %v4778 = vpop.permute.xlu0 %4777
        %4781 = vset.pattern.permute.xlu0 0
        %4782 = vperm.xlu0 %4781, %v4247
        %v4783 = vpop.permute.xlu0 %4782
        %4786 = vset.pattern.permute.xlu0 0
        %4787 = vperm.xlu0 %4786, %v4248
        %v4788 = vpop.permute.xlu0 %4787
        %4791 = vset.pattern.permute.xlu0 0
        %4792 = vperm.xlu0 %4791, %v4249
        %v4793 = vpop.permute.xlu0 %4792
        %4796 = vset.pattern.permute.xlu0 0
        %4797 = vperm.xlu0 %4796, %v4250
        %v4798 = vpop.permute.xlu0 %4797
        %4801 = vset.pattern.permute.xlu0 0
        %4802 = vperm.xlu0 %4801, %v4251
        %v4803 = vpop.permute.xlu0 %4802
        %4806 = vset.pattern.permute.xlu0 0
        %4807 = vperm.xlu0 %4806, %v4252
        %v4808 = vpop.permute.xlu0 %4807
        %4811 = vset.pattern.permute.xlu0 0
        %4812 = vperm.xlu0 %4811, %v4253
        %v4813 = vpop.permute.xlu0 %4812
        %4816 = vset.pattern.permute.xlu0 0
        %4817 = vperm.xlu0 %4816, %v4254
        %v4818 = vpop.permute.xlu0 %4817
        %4821 = vset.pattern.permute.xlu0 0
        %4822 = vperm.xlu0 %4821, %v4255
        %v4823 = vpop.permute.xlu0 %4822
        %4826 = vset.pattern.permute.xlu0 0
        %4827 = vperm.xlu0 %4826, %v4256
        %v4828 = vpop.permute.xlu0 %4827
        %4831 = vset.pattern.permute.xlu0 0
        %4832 = vperm.xlu0 %4831, %v4257
        %v4833 = vpop.permute.xlu0 %4832
        %4836 = vset.pattern.permute.xlu0 0
        %4837 = vperm.xlu0 %4836, %v4258
        %v4838 = vpop.permute.xlu0 %4837
        %4841 = vset.pattern.permute.xlu0 0
        %4842 = vperm.xlu0 %4841, %v4259
        %v4843 = vpop.permute.xlu0 %4842
        %4846 = vset.pattern.permute.xlu0 0
        %4847 = vperm.xlu0 %4846, %v4260
        %v4848 = vpop.permute.xlu0 %4847
        %4851 = vset.pattern.permute.xlu0 0
        %4852 = vperm.xlu0 %4851, %v4261
        %v4853 = vpop.permute.xlu0 %4852
        %4856 = vset.pattern.permute.xlu0 0
        %4857 = vperm.xlu0 %4856, %v4262
        %v4858 = vpop.permute.xlu0 %4857
        %4861 = vset.pattern.permute.xlu0 0
        %4862 = vperm.xlu0 %4861, %v4263
        %v4863 = vpop.permute.xlu0 %4862
        %4866 = vset.pattern.permute.xlu0 0
        %4867 = vperm.xlu0 %4866, %v4264
        %v4868 = vpop.permute.xlu0 %4867
        %4871 = vset.pattern.permute.xlu0 0
        %4872 = vperm.xlu0 %4871, %v4265
        %v4873 = vpop.permute.xlu0 %4872
        %4876 = vset.pattern.permute.xlu0 0
        %4877 = vperm.xlu0 %4876, %v4266
        %v4878 = vpop.permute.xlu0 %4877
        %4881 = vset.pattern.permute.xlu0 0
        %4882 = vperm.xlu0 %4881, %v4267
        %v4883 = vpop.permute.xlu0 %4882
        %4886 = vset.pattern.permute.xlu0 0
        %4887 = vperm.xlu0 %4886, %v4268
        %v4888 = vpop.permute.xlu0 %4887
        %4891 = vset.pattern.permute.xlu0 0
        %4892 = vperm.xlu0 %4891, %v4269
        %v4893 = vpop.permute.xlu0 %4892
        %v4895 = vmul.f32 %v4738, %v4516
        %v4896 = vmul.f32 %v4738, %v4530
        %v4897 = vmul.f32 %v4743, %v4516
        %v4898 = vmul.f32 %v4743, %v4530
        %v4899 = vmul.f32 %v4748, %v4516
        %v4900 = vmul.f32 %v4748, %v4530
        %v4901 = vmul.f32 %v4753, %v4516
        %v4902 = vmul.f32 %v4753, %v4530
        %v4903 = vmul.f32 %v4758, %v4516
        %v4904 = vmul.f32 %v4758, %v4530
        %v4905 = vmul.f32 %v4763, %v4516
        %v4906 = vmul.f32 %v4763, %v4530
        %v4907 = vmul.f32 %v4768, %v4516
        %v4908 = vmul.f32 %v4768, %v4530
        %v4909 = vmul.f32 %v4773, %v4516
        %v4910 = vmul.f32 %v4773, %v4530
        %v4911 = vmul.f32 %v4778, %v4544
        %v4912 = vmul.f32 %v4778, %v4558
        %v4913 = vmul.f32 %v4783, %v4544
        %v4914 = vmul.f32 %v4783, %v4558
        %v4915 = vmul.f32 %v4788, %v4544
        %v4916 = vmul.f32 %v4788, %v4558
        %v4917 = vmul.f32 %v4793, %v4544
        %v4918 = vmul.f32 %v4793, %v4558
        %v4919 = vmul.f32 %v4798, %v4544
        %v4920 = vmul.f32 %v4798, %v4558
        %v4921 = vmul.f32 %v4803, %v4544
        %v4922 = vmul.f32 %v4803, %v4558
        %v4923 = vmul.f32 %v4808, %v4544
        %v4924 = vmul.f32 %v4808, %v4558
        %v4925 = vmul.f32 %v4813, %v4544
        %v4926 = vmul.f32 %v4813, %v4558
        %v4927 = vmul.f32 %v4818, %v4572
        %v4928 = vmul.f32 %v4818, %v4586
        %v4929 = vmul.f32 %v4823, %v4572
        %v4930 = vmul.f32 %v4823, %v4586
        %v4931 = vmul.f32 %v4828, %v4572
        %v4932 = vmul.f32 %v4828, %v4586
        %v4933 = vmul.f32 %v4833, %v4572
        %v4934 = vmul.f32 %v4833, %v4586
        %v4935 = vmul.f32 %v4838, %v4572
        %v4936 = vmul.f32 %v4838, %v4586
        %v4937 = vmul.f32 %v4843, %v4572
        %v4938 = vmul.f32 %v4843, %v4586
        %v4939 = vmul.f32 %v4848, %v4572
        %v4940 = vmul.f32 %v4848, %v4586
        %v4941 = vmul.f32 %v4853, %v4572
        %v4942 = vmul.f32 %v4853, %v4586
        %v4943 = vmul.f32 %v4858, %v4600
        %v4944 = vmul.f32 %v4858, %v4614
        %v4945 = vmul.f32 %v4863, %v4600
        %v4946 = vmul.f32 %v4863, %v4614
        %v4947 = vmul.f32 %v4868, %v4600
        %v4948 = vmul.f32 %v4868, %v4614
        %v4949 = vmul.f32 %v4873, %v4600
        %v4950 = vmul.f32 %v4873, %v4614
        %v4951 = vmul.f32 %v4878, %v4600
        %v4952 = vmul.f32 %v4878, %v4614
        %v4953 = vmul.f32 %v4883, %v4600
        %v4954 = vmul.f32 %v4883, %v4614
        %v4955 = vmul.f32 %v4888, %v4600
        %v4956 = vmul.f32 %v4888, %v4614
        %v4957 = vmul.f32 %v4893, %v4600
        %v4958 = vmul.f32 %v4893, %v4614
        %v4959 = vadd.f32 %v4895, %v4911
        %v4960 = vadd.f32 %v4959, %v4927
        %v4961 = vadd.f32 %v4960, %v4943
        %v4962 = vadd.f32 %v4896, %v4912
        %v4963 = vadd.f32 %v4962, %v4928
        %v4964 = vadd.f32 %v4963, %v4944
        %v4965 = vadd.f32 %v4897, %v4913
        %v4966 = vadd.f32 %v4965, %v4929
        %v4967 = vadd.f32 %v4966, %v4945
        %v4968 = vadd.f32 %v4898, %v4914
        %v4969 = vadd.f32 %v4968, %v4930
        %v4970 = vadd.f32 %v4969, %v4946
        %v4971 = vadd.f32 %v4899, %v4915
        %v4972 = vadd.f32 %v4971, %v4931
        %v4973 = vadd.f32 %v4972, %v4947
        %v4974 = vadd.f32 %v4900, %v4916
        %v4975 = vadd.f32 %v4974, %v4932
        %v4976 = vadd.f32 %v4975, %v4948
        %v4977 = vadd.f32 %v4901, %v4917
        %v4978 = vadd.f32 %v4977, %v4933
        %v4979 = vadd.f32 %v4978, %v4949
        %v4980 = vadd.f32 %v4902, %v4918
        %v4981 = vadd.f32 %v4980, %v4934
        %v4982 = vadd.f32 %v4981, %v4950
        %v4983 = vadd.f32 %v4903, %v4919
        %v4984 = vadd.f32 %v4983, %v4935
        %v4985 = vadd.f32 %v4984, %v4951
        %v4986 = vadd.f32 %v4904, %v4920
        %v4987 = vadd.f32 %v4986, %v4936
        %v4988 = vadd.f32 %v4987, %v4952
        %v4989 = vadd.f32 %v4905, %v4921
        %v4990 = vadd.f32 %v4989, %v4937
        %v4991 = vadd.f32 %v4990, %v4953
        %v4992 = vadd.f32 %v4906, %v4922
        %v4993 = vadd.f32 %v4992, %v4938
        %v4994 = vadd.f32 %v4993, %v4954
        %v4995 = vadd.f32 %v4907, %v4923
        %v4996 = vadd.f32 %v4995, %v4939
        %v4997 = vadd.f32 %v4996, %v4955
        %v4998 = vadd.f32 %v4908, %v4924
        %v4999 = vadd.f32 %v4998, %v4940
        %v5000 = vadd.f32 %v4999, %v4956
        %v5001 = vadd.f32 %v4909, %v4925
        %v5002 = vadd.f32 %v5001, %v4941
        %v5003 = vadd.f32 %v5002, %v4957
        %v5004 = vadd.f32 %v4910, %v4926
        %v5005 = vadd.f32 %v5004, %v4942
        %v5006 = vadd.f32 %v5005, %v4958
        %v5007 = vmul.f32 %v3196, %v4689
        %v5008 = vmul.f32 %v3197, %v4692
        %v5009 = vmul.f32 %v3198, %v4695
        %v5010 = vmul.f32 %v3199, %v4698
        %v5011 = vmul.f32 %v3200, %v4701
        %v5012 = vmul.f32 %v3201, %v4704
        %v5013 = vmul.f32 %v3202, %v4707
        %v5014 = vmul.f32 %v3203, %v4710
        %v5015 = vmul.f32 %v3204, %v4713
        %v5016 = vmul.f32 %v3205, %v4716
        %v5017 = vmul.f32 %v3206, %v4719
        %v5018 = vmul.f32 %v3207, %v4722
        %v5019 = vmul.f32 %v3208, %v4725
        %v5020 = vmul.f32 %v3209, %v4728
        %v5021 = vmul.f32 %v3210, %v4731
        %v5022 = vmul.f32 %v3211, %v4734
        %v5023 = vrot.slane %v5007, 4
        %v5024 = vadd.f32 %v5007, %v5023
        %v5025 = vrot.slane %v5024, 2
        %v5026 = vadd.f32 %v5024, %v5025
        %v5027 = vrot.slane %v5026, 1
        %v5028 = vadd.f32 %v5026, %v5027
        %v5029 = vrot.slane %v5008, 4
        %v5030 = vadd.f32 %v5008, %v5029
        %v5031 = vrot.slane %v5030, 2
        %v5032 = vadd.f32 %v5030, %v5031
        %v5033 = vrot.slane %v5032, 1
        %v5034 = vadd.f32 %v5032, %v5033
        %v5035 = vrot.slane %v5009, 4
        %v5036 = vadd.f32 %v5009, %v5035
        %v5037 = vrot.slane %v5036, 2
        %v5038 = vadd.f32 %v5036, %v5037
        %v5039 = vrot.slane %v5038, 1
        %v5040 = vadd.f32 %v5038, %v5039
        %v5041 = vrot.slane %v5010, 4
        %v5042 = vadd.f32 %v5010, %v5041
        %v5043 = vrot.slane %v5042, 2
        %v5044 = vadd.f32 %v5042, %v5043
        %v5045 = vrot.slane %v5044, 1
        %v5046 = vadd.f32 %v5044, %v5045
        %v5047 = vrot.slane %v5011, 4
        %v5048 = vadd.f32 %v5011, %v5047
        %v5049 = vrot.slane %v5048, 2
        %v5050 = vadd.f32 %v5048, %v5049
        %v5051 = vrot.slane %v5050, 1
        %v5052 = vadd.f32 %v5050, %v5051
        %v5053 = vrot.slane %v5012, 4
        %v5054 = vadd.f32 %v5012, %v5053
        %v5055 = vrot.slane %v5054, 2
        %v5056 = vadd.f32 %v5054, %v5055
        %v5057 = vrot.slane %v5056, 1
        %v5058 = vadd.f32 %v5056, %v5057
        %v5059 = vrot.slane %v5013, 4
        %v5060 = vadd.f32 %v5013, %v5059
        %v5061 = vrot.slane %v5060, 2
        %v5062 = vadd.f32 %v5060, %v5061
        %v5063 = vrot.slane %v5062, 1
        %v5064 = vadd.f32 %v5062, %v5063
        %v5065 = vrot.slane %v5014, 4
        %v5066 = vadd.f32 %v5014, %v5065
        %v5067 = vrot.slane %v5066, 2
        %v5068 = vadd.f32 %v5066, %v5067
        %v5069 = vrot.slane %v5068, 1
        %v5070 = vadd.f32 %v5068, %v5069
        %v5071 = vrot.slane %v5015, 4
        %v5072 = vadd.f32 %v5015, %v5071
        %v5073 = vrot.slane %v5072, 2
        %v5074 = vadd.f32 %v5072, %v5073
        %v5075 = vrot.slane %v5074, 1
        %v5076 = vadd.f32 %v5074, %v5075
        %v5077 = vrot.slane %v5016, 4
        %v5078 = vadd.f32 %v5016, %v5077
        %v5079 = vrot.slane %v5078, 2
        %v5080 = vadd.f32 %v5078, %v5079
        %v5081 = vrot.slane %v5080, 1
        %v5082 = vadd.f32 %v5080, %v5081
        %v5083 = vrot.slane %v5017, 4
        %v5084 = vadd.f32 %v5017, %v5083
        %v5085 = vrot.slane %v5084, 2
        %v5086 = vadd.f32 %v5084, %v5085
        %v5087 = vrot.slane %v5086, 1
        %v5088 = vadd.f32 %v5086, %v5087
        %v5089 = vrot.slane %v5018, 4
        %v5090 = vadd.f32 %v5018, %v5089
        %v5091 = vrot.slane %v5090, 2
        %v5092 = vadd.f32 %v5090, %v5091
        %v5093 = vrot.slane %v5092, 1
        %v5094 = vadd.f32 %v5092, %v5093
        %v5095 = vrot.slane %v5019, 4
        %v5096 = vadd.f32 %v5019, %v5095
        %v5097 = vrot.slane %v5096, 2
        %v5098 = vadd.f32 %v5096, %v5097
        %v5099 = vrot.slane %v5098, 1
        %v5100 = vadd.f32 %v5098, %v5099
        %v5101 = vrot.slane %v5020, 4
        %v5102 = vadd.f32 %v5020, %v5101
        %v5103 = vrot.slane %v5102, 2
        %v5104 = vadd.f32 %v5102, %v5103
        %v5105 = vrot.slane %v5104, 1
        %v5106 = vadd.f32 %v5104, %v5105
        %v5107 = vrot.slane %v5021, 4
        %v5108 = vadd.f32 %v5021, %v5107
        %v5109 = vrot.slane %v5108, 2
        %v5110 = vadd.f32 %v5108, %v5109
        %v5111 = vrot.slane %v5110, 1
        %v5112 = vadd.f32 %v5110, %v5111
        %v5113 = vrot.slane %v5022, 4
        %v5114 = vadd.f32 %v5022, %v5113
        %v5115 = vrot.slane %v5114, 2
        %v5116 = vadd.f32 %v5114, %v5115
        %v5117 = vrot.slane %v5116, 1
        %v5118 = vadd.f32 %v5116, %v5117
        %5120 = vset.pattern.permute.xlu0 0
        %5121 = vperm.xlu0 %5120, %v4270
        %v5122 = vpop.permute.xlu0 %5121
        %v5123 = vrot.slane %v5122, 1
        %v5124 = vrot.slane %v5122, 2
        %v5125 = vrot.slane %v5122, 3
        %v5126 = vrot.slane %v5122, 4
        %v5127 = vrot.slane %v5122, 5
        %v5128 = vrot.slane %v5122, 6
        %v5129 = vrot.slane %v5122, 7
        %v5138 = vadd.f32 %v5028, %v5122
        %v5139 = vadd.f32 %v5034, %v5122
        %v5140 = vadd.f32 %v5040, %v5123
        %v5141 = vadd.f32 %v5046, %v5123
        %v5142 = vadd.f32 %v5052, %v5124
        %v5143 = vadd.f32 %v5058, %v5124
        %v5144 = vadd.f32 %v5064, %v5125
        %v5145 = vadd.f32 %v5070, %v5125
        %v5146 = vadd.f32 %v5076, %v5126
        %v5147 = vadd.f32 %v5082, %v5126
        %v5148 = vadd.f32 %v5088, %v5127
        %v5149 = vadd.f32 %v5094, %v5127
        %v5150 = vadd.f32 %v5100, %v5128
        %v5151 = vadd.f32 %v5106, %v5128
        %v5152 = vadd.f32 %v5112, %v5129
        %v5153 = vadd.f32 %v5118, %v5129
        %v5154 = vmul.f32 %v3196, %v4961
        %v5155 = vmul.f32 %v3197, %v4964
        %v5156 = vmul.f32 %v3198, %v4967
        %v5157 = vmul.f32 %v3199, %v4970
        %v5158 = vmul.f32 %v3200, %v4973
        %v5159 = vmul.f32 %v3201, %v4976
        %v5160 = vmul.f32 %v3202, %v4979
        %v5161 = vmul.f32 %v3203, %v4982
        %v5162 = vmul.f32 %v3204, %v4985
        %v5163 = vmul.f32 %v3205, %v4988
        %v5164 = vmul.f32 %v3206, %v4991
        %v5165 = vmul.f32 %v3207, %v4994
        %v5166 = vmul.f32 %v3208, %v4997
        %v5167 = vmul.f32 %v3209, %v5000
        %v5168 = vmul.f32 %v3210, %v5003
        %v5169 = vmul.f32 %v3211, %v5006
        %v5170 = vrot.slane %v5154, 4
        %v5171 = vadd.f32 %v5154, %v5170
        %v5172 = vrot.slane %v5171, 2
        %v5173 = vadd.f32 %v5171, %v5172
        %v5174 = vrot.slane %v5173, 1
        %v5175 = vadd.f32 %v5173, %v5174
        %v5176 = vrot.slane %v5155, 4
        %v5177 = vadd.f32 %v5155, %v5176
        %v5178 = vrot.slane %v5177, 2
        %v5179 = vadd.f32 %v5177, %v5178
        %v5180 = vrot.slane %v5179, 1
        %v5181 = vadd.f32 %v5179, %v5180
        %v5182 = vrot.slane %v5156, 4
        %v5183 = vadd.f32 %v5156, %v5182
        %v5184 = vrot.slane %v5183, 2
        %v5185 = vadd.f32 %v5183, %v5184
        %v5186 = vrot.slane %v5185, 1
        %v5187 = vadd.f32 %v5185, %v5186
        %v5188 = vrot.slane %v5157, 4
        %v5189 = vadd.f32 %v5157, %v5188
        %v5190 = vrot.slane %v5189, 2
        %v5191 = vadd.f32 %v5189, %v5190
        %v5192 = vrot.slane %v5191, 1
        %v5193 = vadd.f32 %v5191, %v5192
        %v5194 = vrot.slane %v5158, 4
        %v5195 = vadd.f32 %v5158, %v5194
        %v5196 = vrot.slane %v5195, 2
        %v5197 = vadd.f32 %v5195, %v5196
        %v5198 = vrot.slane %v5197, 1
        %v5199 = vadd.f32 %v5197, %v5198
        %v5200 = vrot.slane %v5159, 4
        %v5201 = vadd.f32 %v5159, %v5200
        %v5202 = vrot.slane %v5201, 2
        %v5203 = vadd.f32 %v5201, %v5202
        %v5204 = vrot.slane %v5203, 1
        %v5205 = vadd.f32 %v5203, %v5204
        %v5206 = vrot.slane %v5160, 4
        %v5207 = vadd.f32 %v5160, %v5206
        %v5208 = vrot.slane %v5207, 2
        %v5209 = vadd.f32 %v5207, %v5208
        %v5210 = vrot.slane %v5209, 1
        %v5211 = vadd.f32 %v5209, %v5210
        %v5212 = vrot.slane %v5161, 4
        %v5213 = vadd.f32 %v5161, %v5212
        %v5214 = vrot.slane %v5213, 2
        %v5215 = vadd.f32 %v5213, %v5214
        %v5216 = vrot.slane %v5215, 1
        %v5217 = vadd.f32 %v5215, %v5216
        %v5218 = vrot.slane %v5162, 4
        %v5219 = vadd.f32 %v5162, %v5218
        %v5220 = vrot.slane %v5219, 2
        %v5221 = vadd.f32 %v5219, %v5220
        %v5222 = vrot.slane %v5221, 1
        %v5223 = vadd.f32 %v5221, %v5222
        %v5224 = vrot.slane %v5163, 4
        %v5225 = vadd.f32 %v5163, %v5224
        %v5226 = vrot.slane %v5225, 2
        %v5227 = vadd.f32 %v5225, %v5226
        %v5228 = vrot.slane %v5227, 1
        %v5229 = vadd.f32 %v5227, %v5228
        %v5230 = vrot.slane %v5164, 4
        %v5231 = vadd.f32 %v5164, %v5230
        %v5232 = vrot.slane %v5231, 2
        %v5233 = vadd.f32 %v5231, %v5232
        %v5234 = vrot.slane %v5233, 1
        %v5235 = vadd.f32 %v5233, %v5234
        %v5236 = vrot.slane %v5165, 4
        %v5237 = vadd.f32 %v5165, %v5236
        %v5238 = vrot.slane %v5237, 2
        %v5239 = vadd.f32 %v5237, %v5238
        %v5240 = vrot.slane %v5239, 1
        %v5241 = vadd.f32 %v5239, %v5240
        %v5242 = vrot.slane %v5166, 4
        %v5243 = vadd.f32 %v5166, %v5242
        %v5244 = vrot.slane %v5243, 2
        %v5245 = vadd.f32 %v5243, %v5244
        %v5246 = vrot.slane %v5245, 1
        %v5247 = vadd.f32 %v5245, %v5246
        %v5248 = vrot.slane %v5167, 4
        %v5249 = vadd.f32 %v5167, %v5248
        %v5250 = vrot.slane %v5249, 2
        %v5251 = vadd.f32 %v5249, %v5250
        %v5252 = vrot.slane %v5251, 1
        %v5253 = vadd.f32 %v5251, %v5252
        %v5254 = vrot.slane %v5168, 4
        %v5255 = vadd.f32 %v5168, %v5254
        %v5256 = vrot.slane %v5255, 2
        %v5257 = vadd.f32 %v5255, %v5256
        %v5258 = vrot.slane %v5257, 1
        %v5259 = vadd.f32 %v5257, %v5258
        %v5260 = vrot.slane %v5169, 4
        %v5261 = vadd.f32 %v5169, %v5260
        %v5262 = vrot.slane %v5261, 2
        %v5263 = vadd.f32 %v5261, %v5262
        %v5264 = vrot.slane %v5263, 1
        %v5265 = vadd.f32 %v5263, %v5264
        %5267 = vset.pattern.permute.xlu0 0
        %5268 = vperm.xlu0 %5267, %v4271
        %v5269 = vpop.permute.xlu0 %5268
        %v5270 = vrot.slane %v5269, 1
        %v5271 = vrot.slane %v5269, 2
        %v5272 = vrot.slane %v5269, 3
        %v5273 = vrot.slane %v5269, 4
        %v5274 = vrot.slane %v5269, 5
        %v5275 = vrot.slane %v5269, 6
        %v5276 = vrot.slane %v5269, 7
        %v5285 = vadd.f32 %v5175, %v5269
        %v5286 = vadd.f32 %v5181, %v5269
        %v5287 = vadd.f32 %v5187, %v5270
        %v5288 = vadd.f32 %v5193, %v5270
        %v5289 = vadd.f32 %v5199, %v5271
        %v5290 = vadd.f32 %v5205, %v5271
        %v5291 = vadd.f32 %v5211, %v5272
        %v5292 = vadd.f32 %v5217, %v5272
        %v5293 = vadd.f32 %v5223, %v5273
        %v5294 = vadd.f32 %v5229, %v5273
        %v5295 = vadd.f32 %v5235, %v5274
        %v5296 = vadd.f32 %v5241, %v5274
        %v5297 = vadd.f32 %v5247, %v5275
        %v5298 = vadd.f32 %v5253, %v5275
        %v5299 = vadd.f32 %v5259, %v5276
        %v5300 = vadd.f32 %v5265, %v5276
        %v5301 = vmul.f32 %v5138, 1.442695
        %v5302 = vpow.pop %v5301
        %v5303 = vmul.f32 %v5139, 1.442695
        %v5304 = vpow.pop %v5303
        %v5305 = vmul.f32 %v5140, 1.442695
        %v5306 = vpow.pop %v5305
        %v5307 = vmul.f32 %v5141, 1.442695
        %v5308 = vpow.pop %v5307
        %v5309 = vmul.f32 %v5142, 1.442695
        %v5310 = vpow.pop %v5309
        %v5311 = vmul.f32 %v5143, 1.442695
        %v5312 = vpow.pop %v5311
        %v5313 = vmul.f32 %v5144, 1.442695
        %v5314 = vpow.pop %v5313
        %v5315 = vmul.f32 %v5145, 1.442695
        %v5316 = vpow.pop %v5315
        %v5317 = vmul.f32 %v5146, 1.442695
        %v5318 = vpow.pop %v5317
        %v5319 = vmul.f32 %v5147, 1.442695
        %v5320 = vpow.pop %v5319
        %v5321 = vmul.f32 %v5148, 1.442695
        %v5322 = vpow.pop %v5321
        %v5323 = vmul.f32 %v5149, 1.442695
        %v5324 = vpow.pop %v5323
        %v5325 = vmul.f32 %v5150, 1.442695
        %v5326 = vpow.pop %v5325
        %v5327 = vmul.f32 %v5151, 1.442695
        %v5328 = vpow.pop %v5327
        %v5329 = vmul.f32 %v5152, 1.442695
        %v5330 = vpow.pop %v5329
        %v5331 = vmul.f32 %v5153, 1.442695
        %v5332 = vpow.pop %v5331
        %v5349 = vrot.slane %v5306, 7
        %v5350 = vsel %vm4497, %v5349, %v5302
        %v5351 = vrot.slane %v5310, 6
        %v5352 = vsel %vm4500, %v5351, %v5350
        %v5353 = vrot.slane %v5314, 5
        %v5354 = vsel %vm4503, %v5353, %v5352
        %v5355 = vrot.slane %v5318, 4
        %v5356 = vsel %vm4506, %v5355, %v5354
        %v5357 = vrot.slane %v5322, 3
        %v5358 = vsel %vm4509, %v5357, %v5356
        %v5359 = vrot.slane %v5326, 2
        %v5360 = vsel %vm4512, %v5359, %v5358
        %v5361 = vrot.slane %v5330, 1
        %v5362 = vsel %vm4515, %v5361, %v5360
        %v5363 = vrot.slane %v5308, 7
        %v5364 = vsel %vm4497, %v5363, %v5304
        %v5365 = vrot.slane %v5312, 6
        %v5366 = vsel %vm4500, %v5365, %v5364
        %v5367 = vrot.slane %v5316, 5
        %v5368 = vsel %vm4503, %v5367, %v5366
        %v5369 = vrot.slane %v5320, 4
        %v5370 = vsel %vm4506, %v5369, %v5368
        %v5371 = vrot.slane %v5324, 3
        %v5372 = vsel %vm4509, %v5371, %v5370
        %v5373 = vrot.slane %v5328, 2
        %v5374 = vsel %vm4512, %v5373, %v5372
        %v5375 = vrot.slane %v5332, 1
        %v5376 = vsel %vm4515, %v5375, %v5374
        %v5379 = vmul.f32 %v3212, %v5362
        %v5380 = vmul.f32 %v3213, %v5376
        %v5397 = vrot.slane %v5287, 7
        %v5398 = vsel %vm4497, %v5397, %v5285
        %v5399 = vrot.slane %v5289, 6
        %v5400 = vsel %vm4500, %v5399, %v5398
        %v5401 = vrot.slane %v5291, 5
        %v5402 = vsel %vm4503, %v5401, %v5400
        %v5403 = vrot.slane %v5293, 4
        %v5404 = vsel %vm4506, %v5403, %v5402
        %v5405 = vrot.slane %v5295, 3
        %v5406 = vsel %vm4509, %v5405, %v5404
        %v5407 = vrot.slane %v5297, 2
        %v5408 = vsel %vm4512, %v5407, %v5406
        %v5409 = vrot.slane %v5299, 1
        %v5410 = vsel %vm4515, %v5409, %v5408
        %v5411 = vrot.slane %v5288, 7
        %v5412 = vsel %vm4497, %v5411, %v5286
        %v5413 = vrot.slane %v5290, 6
        %v5414 = vsel %vm4500, %v5413, %v5412
        %v5415 = vrot.slane %v5292, 5
        %v5416 = vsel %vm4503, %v5415, %v5414
        %v5417 = vrot.slane %v5294, 4
        %v5418 = vsel %vm4506, %v5417, %v5416
        %v5419 = vrot.slane %v5296, 3
        %v5420 = vsel %vm4509, %v5419, %v5418
        %v5421 = vrot.slane %v5298, 2
        %v5422 = vsel %vm4512, %v5421, %v5420
        %v5423 = vrot.slane %v5300, 1
        %v5424 = vsel %vm4515, %v5423, %v5422
        %v5427 = vadd.f32 %v5379, %v5410
        %v5428 = vadd.f32 %v5380, %v5424
        %v5429 = vmul.f32 %v5427, %v5427
        %v5430 = vmul.f32 %v5428, %v5428
        %v5431 = vadd.f32 %v5429, 1.837877
        %v5432 = vadd.f32 %v5430, 1.837877
        %v5433 = vmul.f32 %v5431, -0.5
        %v5434 = vmul.f32 %v5432, -0.5
        %v5435 = vrot.slane %v5433, 4
        %v5436 = vadd.f32 %v5433, %v5435
        %v5437 = vrot.slane %v5436, 2
        %v5438 = vadd.f32 %v5436, %v5437
        %v5439 = vrot.slane %v5438, 1
        %v5440 = vadd.f32 %v5438, %v5439
        %v5441 = vrot.slane %v5434, 4
        %v5442 = vadd.f32 %v5434, %v5441
        %v5443 = vrot.slane %v5442, 2
        %v5444 = vadd.f32 %v5442, %v5443
        %v5445 = vrot.slane %v5444, 1
        %v5446 = vadd.f32 %v5444, %v5445
        %v5463 = vrot.slane %v5140, 7
        %v5464 = vsel %vm4497, %v5463, %v5138
        %v5465 = vrot.slane %v5142, 6
        %v5466 = vsel %vm4500, %v5465, %v5464
        %v5467 = vrot.slane %v5144, 5
        %v5468 = vsel %vm4503, %v5467, %v5466
        %v5469 = vrot.slane %v5146, 4
        %v5470 = vsel %vm4506, %v5469, %v5468
        %v5471 = vrot.slane %v5148, 3
        %v5472 = vsel %vm4509, %v5471, %v5470
        %v5473 = vrot.slane %v5150, 2
        %v5474 = vsel %vm4512, %v5473, %v5472
        %v5475 = vrot.slane %v5152, 1
        %v5476 = vsel %vm4515, %v5475, %v5474
        %v5477 = vrot.slane %v5141, 7
        %v5478 = vsel %vm4497, %v5477, %v5139
        %v5479 = vrot.slane %v5143, 6
        %v5480 = vsel %vm4500, %v5479, %v5478
        %v5481 = vrot.slane %v5145, 5
        %v5482 = vsel %vm4503, %v5481, %v5480
        %v5483 = vrot.slane %v5147, 4
        %v5484 = vsel %vm4506, %v5483, %v5482
        %v5485 = vrot.slane %v5149, 3
        %v5486 = vsel %vm4509, %v5485, %v5484
        %v5487 = vrot.slane %v5151, 2
        %v5488 = vsel %vm4512, %v5487, %v5486
        %v5489 = vrot.slane %v5153, 1
        %v5490 = vsel %vm4515, %v5489, %v5488
        %v5493 = vrot.slane %v5476, 4
        %v5494 = vadd.f32 %v5476, %v5493
        %v5495 = vrot.slane %v5494, 2
        %v5496 = vadd.f32 %v5494, %v5495
        %v5497 = vrot.slane %v5496, 1
        %v5498 = vadd.f32 %v5496, %v5497
        %v5499 = vrot.slane %v5490, 4
        %v5500 = vadd.f32 %v5490, %v5499
        %v5501 = vrot.slane %v5500, 2
        %v5502 = vadd.f32 %v5500, %v5501
        %v5503 = vrot.slane %v5502, 1
        %v5504 = vadd.f32 %v5502, %v5503
        %v5505 = vadd.f32 %v5440, %v5498
        %v5506 = vadd.f32 %v5446, %v5504
        %v5509 = vcombine.low %v5505, %v5506
        %v5511 = vunpack.c.l.s4 1966171168
        %v5512 = vunpack.c.0.s8 %v5511
        %v5513 = vlaneseq
        %v5514 = vshrl.u32 %v5513, 7
        %v5515 = vsub.s32 %v5512, %v5514
        %v5516 = vrot.slane %v5509, %v5515
        %v5518 = vunpack.c.l.s4 1966171168
        %v5519 = vunpack.c.0.s8 %v5518
        %v5520 = vlaneseq
        %v5521 = vshrl.u32 %v5520, 7
        %v5522 = vsub.s32 %v5519, %v5521
        %v5523 = vrot.slane %v5516, %v5522
        %v5525 = vlaneseq
        %vm5526 = vcmp.ge.s32.totalorder %v5525, 0
        %vm5527 = vcmp.lt.s32.totalorder %v5525, 256
        %vm5528 = vmand %vm5526, %vm5527
        %5529 = vst.msk [vmem:[%s369] sm:$0x3] %vm5528, %v5523
        %s5530 = sand.u32 %s208, 1
        %s5531 = scalar_lea.sflag [#allocation4], %s5530
        %s5532 = sand.u32 %s208, 1
        %s5533 = smul.addr %s5532, 2
        %s5534 = scalar_lea.vmem [#allocation3], %s5533
        // Predicated region
        $region76: #{tpu_custom_call.1} parent=70 // pred_check
          %p5535 = pneg %p218
        $region77: #{tpu_custom_call.1} parent=70 // pred_check_branch
          %5537 = sbr.rel (%p5535) target = $region79
        $region78: #{tpu_custom_call.1} parent=70 // pred_region
          %s5538 = smul.u32 2, %s22
          %s5540 = ssub.s32 32, 32
          %5541 = vsyncadd %s5531, %s5540
          %s5542 = smul.addr %s5538, 16
          %s5543 = scalar_lea.hbm %s8, %s5542
          %s5545 = sshll.u32 %s5534, 4
          %s5546 = int_to_ptr.vmem [resolvable:$true] %s5545
          %5548 = dma.vmem_to_hbm [thread:$0]  %s5546, 32, %s5543, %s5531
        $region79: #{tpu_custom_call.1} parent=70 // pred_fallthru
          _
      $region71: #{tpu_custom_call.1} parent=5 // pred_fallthru
        _
      %p5549 = scmp.le.s32.totalorder 2, %s17
      // Predicated region
      $region80: #{tpu_custom_call.1} parent=5 // pred_check
        %p5550 = pneg %p5549
      $region81: #{tpu_custom_call.1} parent=5 // pred_check_branch
        %5552 = sbr.rel (%p5550) target = $region83
      $region82: #{tpu_custom_call.1} parent=5 // pred_region
        %s5553 = ssub.s32 %s17, 2
        // Predicated region
        $region84: #{tpu_custom_call.1} parent=82 // pred_check
          %p5554 = pneg %p224
        $region85: #{tpu_custom_call.1} parent=82 // pred_check_branch
          %5556 = sbr.rel (%p5554) target = $region87
        $region86: #{tpu_custom_call.1} parent=82 // pred_region
          %s5557 = sand.u32 %s209, 1
          %s5558 = scalar_lea.sflag [#allocation4], %s5557
          %s5559 = sand.u32 %s209, 1
          %s5560 = smul.addr %s5559, 2
          %s5561 = scalar_lea.vmem [#allocation3], %s5560
          %5562 = dma.done %s5558, 32
        $region87: #{tpu_custom_call.1} parent=82 // pred_fallthru
          _
      $region83: #{tpu_custom_call.1} parent=5 // pred_fallthru
        _
    $region6: #{tpu_custom_call.1} parent=1 // loop_footer
      %s21 = sadd.s32 1, %s17
    $region7: #{tpu_custom_call.1} parent=1 // loop_footer_branch
      %16 = sbr.rel target = $region3
    $region8: #{tpu_custom_call.1} parent=1 // loop_exit
      _
    %5563 = vsyncpa [#allocation4], 1
    %s5564 = scalar_lea.sflag [#allocation4], 1
    %5565 = vsyncpa %s5564, 1

</llo_original>
